<compile_context>
chip_gen: v6e
topology: v6e:2x2x1
jax: 0.10.0
libtpu: 0.0.40
codegen_flags: <defaults>
</compile_context>

<pallas_src>
import functools
import math

import jax
import jax.numpy as jnp
from jax.experimental import pallas as pl
from jax.experimental.pallas import tpu as pltpu

LANE = 128
SUBLANE = 8
TILE_N = 512  # block fits comfortably in 32 MiB scoped VMEM on all of v5e/v6e/v7x


def _round_up(x, m):
    return (x + m - 1) // m * m


# ------------------------------ Pallas kernel ------------------------------ #
def _siren_fused_kernel(*refs, num_linear):
    """Full SIREN MLP on one (TILE_N, din) row tile.

    refs = (x_ref, w0_ref, b0_ref, w1_ref, b1_ref, ..., wL_ref, bL_ref, o_ref)

    Weights are pre-transposed to (din, dout), zero-padded to lane multiples,
    and (for hidden layers) have w0 folded in, so each hidden layer is
        h = sin(h @ W' + b')
    and the final layer is a plain affine map (Identity final activation).
    Activations never touch HBM between layers.
    """
    x_ref = refs[0]
    o_ref = refs[-1]
    layer_refs = refs[1:-1]

    h = x_ref[...].astype(jnp.float32)
    for i in range(num_linear):
        w_ref = layer_refs[2 * i]
        b_ref = layer_refs[2 * i + 1]
        k = h.shape[1]
        if k <= SUBLANE:
            # Tiny contraction (first layer, din=2): broadcast FMAs on the VPU
            # instead of a K=2 MXU matmul that wastes the systolic array.
            z = b_ref[...]                                   # (1, dout)
            for j in range(k):
                z = z + h[:, j:j + 1] * w_ref[j:j + 1, :]    # (tile, dout)
        else:
            z = jnp.dot(h, w_ref[...], preferred_element_type=jnp.float32)
            z = z + b_ref[...]                               # bias broadcast
        if i < num_linear - 1:
            h = jnp.sin(z)     # w0 already folded into W', b' (EUP op)
        else:
            h = z              # last layer: Identity (final_activation=None)
    o_ref[...] = h.astype(o_ref.dtype)


# ------------------------------ Forward wrapper ----------------------------- #
def siren_net_forward(packed_params, x, dim_out, *, tile_n=TILE_N):
    """Run the fused SIREN kernel; returns (N, dim_out)."""
    n, din = x.shape
    dout_pad = packed_params[-1][0].shape[1]

    # Pad N up to a sublane/tile multiple; extra rows are sliced off afterwards.
    n_pad = _round_up(max(n, SUBLANE), SUBLANE)
    tile = min(tile_n, n_pad)
    n_pad = _round_up(n_pad, tile)
    if n_pad != n:
        x = jnp.pad(x, ((0, n_pad - n), (0, 0)))

    flat_params = []
    in_specs = [pl.BlockSpec((tile, din), lambda i: (i, 0))]
    for wt, b in packed_params:
        flat_params += [wt, b]
        in_specs += [
            pl.BlockSpec(wt.shape, lambda i: (0, 0)),   # weights VMEM-resident
            pl.BlockSpec(b.shape, lambda i: (0, 0)),    # bias VMEM-resident
        ]

    # Advisory cost estimate (helps XLA scheduling around the custom call).
    itemsize = jnp.dtype(jnp.float32).itemsize
    flops = 0
    transcendentals = 0
    bytes_accessed = n_pad * din * itemsize + n_pad * dout_pad * itemsize
    for idx, (wt, b) in enumerate(packed_params):
        flops += 2 * n_pad * wt.shape[0] * wt.shape[1]
        bytes_accessed += (wt.size + b.size) * itemsize
        if idx < len(packed_params) - 1:
            transcendentals += n_pad * wt.shape[1]

    kernel = functools.partial(_siren_fused_kernel,
                               num_linear=len(packed_params))
    out = pl.pallas_call(
        kernel,
        out_shape=jax.ShapeDtypeStruct((n_pad, dout_pad), x.dtype),
        grid=(n_pad // tile,),
        in_specs=in_specs,
        out_specs=pl.BlockSpec((tile, dout_pad), lambda i: (i, 0)),
        compiler_params=pltpu.CompilerParams(
            dimension_semantics=("parallel",)),   # shard row tiles across TCs
        cost_estimate=pl.CostEstimate(
            flops=int(flops),
            transcendentals=int(transcendentals),
            bytes_accessed=int(bytes_accessed)),
    )(x, *flat_params)
    return out[:n, :dim_out]


# --------------------------- Parameter construction ------------------------- #
def init_siren_params(key, dim_in, dim_hidden, dim_out, num_layers,
                      w0=1.0, w0_initial=30.0, c=6.0, dtype=jnp.float32):
    """Deterministic init matching Siren.init_ (uniform(-w_std, w_std))."""
    params = []
    layer_dims, w0s = [], []
    for ind in range(num_layers):
        is_first = ind == 0
        layer_w0 = w0_initial if is_first else w0
        layer_dim_in = dim_in if is_first else dim_hidden
        layer_dims.append((layer_dim_in, dim_hidden))
        w0s.append((layer_w0, is_first))
    layer_dims.append((dim_hidden, dim_out))   # last layer
    w0s.append((w0, False))

    for (din, dout), (layer_w0, is_first) in zip(layer_dims, w0s):
        w_std = (1.0 / din) if is_first else (math.sqrt(c / din) / layer_w0)
        key, kw, kb = jax.random.split(key, 3)
        w = jax.random.uniform(kw, (dout, din), dtype=dtype,
                               minval=-w_std, maxval=w_std)
        b = jax.random.uniform(kb, (dout,), dtype=dtype,
                               minval=-w_std, maxval=w_std)
        params.append({"weight": w, "bias": b, "w0": layer_w0})
    return params


def pack_siren_params(params, dim_in, dim_hidden, dim_out, dtype=jnp.float32):
    """One-time prep: transpose, fold w0 (hidden layers), zero-pad to lanes."""
    dh_pad = _round_up(dim_hidden, LANE)
    dout_pad = _round_up(dim_out, LANE)
    packed = []
    n = len(params)
    for idx, p in enumerate(params):
        w = p["weight"].astype(jnp.float32)     # (dout_l, din_l)
        b = p["bias"].astype(jnp.float32)
        is_last = idx == n - 1
        if not is_last:
            w = p["w0"] * w                     # fold Sine frequency
            b = p["w0"] * b
        wt = w.T                                # (din_l, dout_l)
        din_l, dout_l = wt.shape
        din_tgt = dim_in if idx == 0 else dh_pad
        dout_tgt = dout_pad if is_last else dh_pad
        wt_p = jnp.zeros((din_tgt, dout_tgt), dtype).at[:din_l, :dout_l].set(
            wt.astype(dtype))
        b_p = jnp.zeros((1, dout_tgt), dtype).at[0, :dout_l].set(b.astype(dtype))
        packed.append((wt_p, b_p))
    return packed


# ----------------------------- Pure-JAX reference --------------------------- #
def siren_net_reference(params, x):
    h = x
    for p in params[:-1]:
        h = jnp.sin(p["w0"] * (h @ p["weight"].T + p["bias"]))
    last = params[-1]
    return h @ last["weight"].T + last["bias"]


# ------------------------------------ Main ---------------------------------- #
if __name__ == "__main__":
    dim_in, dim_hidden, dim_out, num_layers = 2, 32, 3, 3
    n_points = 500   # not a multiple of the tile -> exercises padding + slicing

    key = jax.random.PRNGKey(0)
    key, kx = jax.random.split(key)
    x = jax.random.uniform(kx, (n_points, dim_in), dtype=jnp.float32,
                           minval=-1.0, maxval=1.0)

    params = init_siren_params(key, dim_in, dim_hidden, dim_out, num_layers,
                               w0=1.0, w0_initial=30.0)
    packed = pack_siren_params(params, dim_in, dim_hidden, dim_out)

    # tile_n=128 here so the 1-D grid has multiple steps (multi-tile path).
    out = siren_net_forward(packed, x, dim_out, tile_n=128)
    out = jax.block_until_ready(out)

    ref = siren_net_reference(params, x)
    assert out.shape == (n_points, dim_out), out.shape
    max_err = float(jnp.max(jnp.abs(out - ref)))
    assert jnp.allclose(out, ref, atol=2e-4, rtol=2e-4), max_err

    print("KERNEL_OK")
</pallas_src>

<mosaic_0001>
module attributes {stable_mosaic.version = 11 : i64} {
  func.func @_siren_fused_kernel(%arg0: i32, %arg1: memref<128x2xf32, #tpu.memory_space<vmem>>, %arg2: memref<2x128xf32, #tpu.memory_space<vmem>>, %arg3: memref<1x128xf32, #tpu.memory_space<vmem>>, %arg4: memref<128x128xf32, #tpu.memory_space<vmem>>, %arg5: memref<1x128xf32, #tpu.memory_space<vmem>>, %arg6: memref<128x128xf32, #tpu.memory_space<vmem>>, %arg7: memref<1x128xf32, #tpu.memory_space<vmem>>, %arg8: memref<128x128xf32, #tpu.memory_space<vmem>>, %arg9: memref<1x128xf32, #tpu.memory_space<vmem>>, %arg10: memref<128x128xf32, #tpu.memory_space<vmem>>) attributes {dimension_semantics = [#tpu.dimension_semantics<parallel>], iteration_bounds = array<i64: 4>, scalar_prefetch = 0 : i64, scratch_operands = 0 : i64, tpu.core_type = #tpu.core_type<tc>, window_params = [{transform_indices = @transform_0, window_bounds = array<i64: 128, 2>}, {pipeline_mode = #tpu.pipeline_mode<synchronous>, transform_indices = @transform_1, window_bounds = array<i64: 2, 128>}, {pipeline_mode = #tpu.pipeline_mode<synchronous>, transform_indices = @transform_2, window_bounds = array<i64: 1, 128>}, {pipeline_mode = #tpu.pipeline_mode<synchronous>, transform_indices = @transform_3, window_bounds = array<i64: 128, 128>}, {pipeline_mode = #tpu.pipeline_mode<synchronous>, transform_indices = @transform_4, window_bounds = array<i64: 1, 128>}, {pipeline_mode = #tpu.pipeline_mode<synchronous>, transform_indices = @transform_5, window_bounds = array<i64: 128, 128>}, {pipeline_mode = #tpu.pipeline_mode<synchronous>, transform_indices = @transform_6, window_bounds = array<i64: 1, 128>}, {pipeline_mode = #tpu.pipeline_mode<synchronous>, transform_indices = @transform_7, window_bounds = array<i64: 128, 128>}, {pipeline_mode = #tpu.pipeline_mode<synchronous>, transform_indices = @transform_8, window_bounds = array<i64: 1, 128>}, {transform_indices = @transform_9, window_bounds = array<i64: 128, 128>}]} {
    %c0 = arith.constant 0 : index
    %c0_0 = arith.constant 0 : index
    %0 = vector.load %arg1[%c0, %c0_0] : memref<128x2xf32, #tpu.memory_space<vmem>>, vector<128x2xf32>
    %c0_1 = arith.constant 0 : index
    %c0_2 = arith.constant 0 : index
    %1 = vector.load %arg3[%c0_1, %c0_2] : memref<1x128xf32, #tpu.memory_space<vmem>>, vector<1x128xf32>
    %2 = vector.extract_strided_slice %0 {offsets = [0, 0], sizes = [128, 1], strides = [1, 1]} : vector<128x2xf32> to vector<128x1xf32>
    %c0_3 = arith.constant 0 : index
    %c0_4 = arith.constant 0 : index
    %3 = vector.load %arg2[%c0_3, %c0_4] : memref<2x128xf32, #tpu.memory_space<vmem>>, vector<1x128xf32>
    %4 = vector.broadcast %2 : vector<128x1xf32> to vector<128x128xf32>
    %5 = vector.broadcast %3 : vector<1x128xf32> to vector<128x128xf32>
    %6 = arith.mulf %4, %5 : vector<128x128xf32>
    %7 = vector.broadcast %1 : vector<1x128xf32> to vector<128x128xf32>
    %8 = arith.addf %7, %6 : vector<128x128xf32>
    %9 = vector.extract_strided_slice %0 {offsets = [0, 1], sizes = [128, 1], strides = [1, 1]} : vector<128x2xf32> to vector<128x1xf32>
    %c1 = arith.constant 1 : index
    %c0_5 = arith.constant 0 : index
    %10 = vector.load %arg2[%c1, %c0_5] : memref<2x128xf32, #tpu.memory_space<vmem>>, vector<1x128xf32>
    %11 = vector.broadcast %9 : vector<128x1xf32> to vector<128x128xf32>
    %12 = vector.broadcast %10 : vector<1x128xf32> to vector<128x128xf32>
    %13 = arith.mulf %11, %12 : vector<128x128xf32>
    %14 = arith.addf %8, %13 : vector<128x128xf32>
    %15 = math.sin %14 : vector<128x128xf32>
    %c0_6 = arith.constant 0 : index
    %c0_7 = arith.constant 0 : index
    %16 = vector.load %arg4[%c0_6, %c0_7] : memref<128x128xf32, #tpu.memory_space<vmem>>, vector<128x128xf32>
    %cst = arith.constant dense<0.000000e+00> : vector<128x128xf32>
    %17 = tpu.matmul %15, %16, %cst {dimension_numbers = #tpu.dot_dimension_numbers<[1], [0], [0], [1], [0, 0, 1, 1], [], []>} : vector<128x128xf32>, vector<128x128xf32>, vector<128x128xf32> -> vector<128x128xf32>
    %c0_8 = arith.constant 0 : index
    %c0_9 = arith.constant 0 : index
    %18 = vector.load %arg5[%c0_8, %c0_9] : memref<1x128xf32, #tpu.memory_space<vmem>>, vector<1x128xf32>
    %19 = vector.broadcast %18 : vector<1x128xf32> to vector<128x128xf32>
    %20 = arith.addf %17, %19 : vector<128x128xf32>
    %21 = math.sin %20 : vector<128x128xf32>
    %c0_10 = arith.constant 0 : index
    %c0_11 = arith.constant 0 : index
    %22 = vector.load %arg6[%c0_10, %c0_11] : memref<128x128xf32, #tpu.memory_space<vmem>>, vector<128x128xf32>
    %cst_12 = arith.constant dense<0.000000e+00> : vector<128x128xf32>
    %23 = tpu.matmul %21, %22, %cst_12 {dimension_numbers = #tpu.dot_dimension_numbers<[1], [0], [0], [1], [0, 0, 1, 1], [], []>} : vector<128x128xf32>, vector<128x128xf32>, vector<128x128xf32> -> vector<128x128xf32>
    %c0_13 = arith.constant 0 : index
    %c0_14 = arith.constant 0 : index
    %24 = vector.load %arg7[%c0_13, %c0_14] : memref<1x128xf32, #tpu.memory_space<vmem>>, vector<1x128xf32>
    %25 = vector.broadcast %24 : vector<1x128xf32> to vector<128x128xf32>
    %26 = arith.addf %23, %25 : vector<128x128xf32>
    %27 = math.sin %26 : vector<128x128xf32>
    %c0_15 = arith.constant 0 : index
    %c0_16 = arith.constant 0 : index
    %28 = vector.load %arg8[%c0_15, %c0_16] : memref<128x128xf32, #tpu.memory_space<vmem>>, vector<128x128xf32>
    %cst_17 = arith.constant dense<0.000000e+00> : vector<128x128xf32>
    %29 = tpu.matmul %27, %28, %cst_17 {dimension_numbers = #tpu.dot_dimension_numbers<[1], [0], [0], [1], [0, 0, 1, 1], [], []>} : vector<128x128xf32>, vector<128x128xf32>, vector<128x128xf32> -> vector<128x128xf32>
    %c0_18 = arith.constant 0 : index
    %c0_19 = arith.constant 0 : index
    %30 = vector.load %arg9[%c0_18, %c0_19] : memref<1x128xf32, #tpu.memory_space<vmem>>, vector<1x128xf32>
    %31 = vector.broadcast %30 : vector<1x128xf32> to vector<128x128xf32>
    %32 = arith.addf %29, %31 : vector<128x128xf32>
    %c0_20 = arith.constant 0 : index
    %c0_21 = arith.constant 0 : index
    %33 = vector.load %arg10[%c0_20, %c0_21] : memref<128x128xf32, #tpu.memory_space<vmem>>, vector<128x128xf32>
    tpu.vector_store %arg10[%c0_20, %c0_21], %32 {strides = array<i32>} : memref<128x128xf32, #tpu.memory_space<vmem>>, vector<128x128xf32>,
    return
  }
  func.func @transform_0(%arg0: i32) -> (i32, i32) {
    %c0_i32 = arith.constant 0 : i32
    %c0_i32_0 = arith.constant 0 : i32
    return %arg0, %c0_i32 : i32, i32
  }
  func.func @transform_1(%arg0: i32) -> (i32, i32) {
    %c0_i32 = arith.constant 0 : i32
    %c0_i32_0 = arith.constant 0 : i32
    %c0_i32_1 = arith.constant 0 : i32
    return %c0_i32, %c0_i32_0 : i32, i32
  }
  func.func @transform_2(%arg0: i32) -> (i32, i32) {
    %c0_i32 = arith.constant 0 : i32
    %c0_i32_0 = arith.constant 0 : i32
    %c0_i32_1 = arith.constant 0 : i32
    return %c0_i32, %c0_i32_0 : i32, i32
  }
  func.func @transform_3(%arg0: i32) -> (i32, i32) {
    %c0_i32 = arith.constant 0 : i32
    %c0_i32_0 = arith.constant 0 : i32
    %c0_i32_1 = arith.constant 0 : i32
    return %c0_i32, %c0_i32_0 : i32, i32
  }
  func.func @transform_4(%arg0: i32) -> (i32, i32) {
    %c0_i32 = arith.constant 0 : i32
    %c0_i32_0 = arith.constant 0 : i32
    %c0_i32_1 = arith.constant 0 : i32
    return %c0_i32, %c0_i32_0 : i32, i32
  }
  func.func @transform_5(%arg0: i32) -> (i32, i32) {
    %c0_i32 = arith.constant 0 : i32
    %c0_i32_0 = arith.constant 0 : i32
    %c0_i32_1 = arith.constant 0 : i32
    return %c0_i32, %c0_i32_0 : i32, i32
  }
  func.func @transform_6(%arg0: i32) -> (i32, i32) {
    %c0_i32 = arith.constant 0 : i32
    %c0_i32_0 = arith.constant 0 : i32
    %c0_i32_1 = arith.constant 0 : i32
    return %c0_i32, %c0_i32_0 : i32, i32
  }
  func.func @transform_7(%arg0: i32) -> (i32, i32) {
    %c0_i32 = arith.constant 0 : i32
    %c0_i32_0 = arith.constant 0 : i32
    %c0_i32_1 = arith.constant 0 : i32
    return %c0_i32, %c0_i32_0 : i32, i32
  }
  func.func @transform_8(%arg0: i32) -> (i32, i32) {
    %c0_i32 = arith.constant 0 : i32
    %c0_i32_0 = arith.constant 0 : i32
    %c0_i32_1 = arith.constant 0 : i32
    return %c0_i32, %c0_i32_0 : i32, i32
  }
  func.func @transform_9(%arg0: i32) -> (i32, i32) {
    %c0_i32 = arith.constant 0 : i32
    %c0_i32_0 = arith.constant 0 : i32
    return %arg0, %c0_i32 : i32, i32
  }
}

</mosaic_0001>

<llo_original>
// kernel: tpu_custom_call.1
$region0: #{tpu_custom_call.1}
  #allocation0 [shape = 'u32[]', space=smem, size = 0x4, offset = 0x4, fixed_abs, tag = 'smem constant byte address 0x4 - core index']
  #allocation1 [shape = 'u32[144,128]{1,0:T(1,128)}', space=vmem, size = 0x12000, scoped, tag = 'internal scratch']
  %s0 = inlined_call_operand.vmem [shape: f32[512,2], index: 0, kind: input, shape index: {}]
  %s1 = inlined_call_operand.vmem [shape: f32[2,128], index: 1, kind: input, shape index: {}]
  %s2 = inlined_call_operand.vmem [shape: f32[1,128], index: 2, kind: input, shape index: {}]
  %s3 = inlined_call_operand.vmem [shape: f32[128,128], index: 3, kind: input, shape index: {}]
  %s4 = inlined_call_operand.vmem [shape: f32[1,128], index: 4, kind: input, shape index: {}]
  %s5 = inlined_call_operand.vmem [shape: f32[128,128], index: 5, kind: input, shape index: {}]
  %s6 = inlined_call_operand.vmem [shape: f32[1,128], index: 6, kind: input, shape index: {}]
  %s7 = inlined_call_operand.vmem [shape: f32[128,128], index: 7, kind: input, shape index: {}]
  %s8 = inlined_call_operand.vmem [shape: f32[1,128], index: 8, kind: input, shape index: {}]
  %s9 = inlined_call_operand.hbm [shape: f32[512,128], index: 9, kind: output, shape index: {}]
  %s10 = sld [smem:[#allocation0]]
  $region69: #{tpu_custom_call.1} parent=0
    _
  %s12 = ssub.s32 1, %s10
  %s13 = scalar_select 0, %s12, %s10
  $region1: #{tpu_custom_call.1} parent=0
    #allocation2 [shape = 'u8[131072]{0}', space=vmem, size = 0x20000, scoped, tag = 'output window, operand 0']
    #allocation3 [shape = 's32[2]{0}', space=sflag, size = 0x8, scoped, tag = 'scoped memory for tpu_custom_call.1']
    %14 = vsyncpa [#allocation3], 0
    %s15 = scalar_lea.sflag [#allocation3], 1
    %16 = vsyncpa %s15, 0
    loop: start=0, step=1, limit=6
    $region2: #{tpu_custom_call.1} parent=1 // loop_pre_header
      _
    $region3: #{tpu_custom_call.1} parent=1 // loop_header
      %s18 = sphi 0, %s22
      %p19 = scmp.ge.s32.totalorder %s18, 6
      %s28 = sphi 0, %s30
      %s31 = sphi 0, %s28
      %s32 = sphi 0, %s31
      %s48 = sphi 0, %s32
      %s52 = sphi 0, %s52
      %s54 = sphi 0, %s52
      %s55 = sphi 0, %s54
      %s69 = sphi 0, %s55
      %s73 = sphi 0, %s73
      %s75 = sphi 0, %s73
      %s76 = sphi 0, %s75
      %s90 = sphi 0, %s76
      %s94 = sphi 0, %s94
      %s96 = sphi 0, %s94
      %s97 = sphi 0, %s96
      %s111 = sphi 0, %s97
      %s115 = sphi 0, %s115
      %s117 = sphi 0, %s115
      %s118 = sphi 0, %s117
      %s132 = sphi 0, %s118
      %s136 = sphi 0, %s136
      %s138 = sphi 0, %s136
      %s139 = sphi 0, %s138
      %s153 = sphi 0, %s139
      %s157 = sphi 0, %s157
      %s159 = sphi 0, %s157
      %s160 = sphi 0, %s159
      %s174 = sphi 0, %s160
      %s178 = sphi 0, %s178
      %s180 = sphi 0, %s178
      %s181 = sphi 0, %s180
      %s195 = sphi 0, %s181
      %s199 = sphi 0, %s199
      %s201 = sphi 0, %s199
      %s202 = sphi 0, %s201
      %s216 = sphi 0, %s202
      %s222 = sphi 0, %s224
      %s225 = sphi 0, %s222
      %s226 = sphi 0, %s225
      %s242 = sphi 0, %s226
    $region4: #{tpu_custom_call.1} parent=1 // loop_header_branch
      %21 = sbr.rel (%p19) target = $region8
    $region5: #{tpu_custom_call.1} parent=1 // loop_body
      %s23 = ssub.s32 %s18, 1
      %s24 = ssub.s32 %s18, 2
      %s25 = sadd.s32 %s18, 1
      %s26 = ssub.s32 %s18, %s25
      %p27 = scmp.eq.s32.totalorder %s26, 0
      %s29 = sadd.s32 %s28, 1
      %s30 = scalar_select %p27, %s28, %s29
      %p33 = pneg %p27
      %p34 = scmp.eq.s32.totalorder %s18, 3
      %p35 = por %p33, %p34
      %p36 = scmp.ne.s32.totalorder %s28, %s31
      %p37 = scmp.eq.s32.totalorder %s18, 0
      %p38 = por %p36, %p37
      %p39 = scmp.ne.s32.totalorder %s28, %s31
      %p40 = scmp.eq.s32.totalorder %s23, 3
      %p41 = por %p39, %p40
      %p42 = scmp.ne.s32.totalorder %s31, %s32
      %p43 = scmp.eq.s32.totalorder %s23, 0
      %p44 = por %p42, %p43
      %p45 = scmp.ne.s32.totalorder %s31, %s32
      %p46 = scmp.eq.s32.totalorder %s24, 3
      %p47 = por %p45, %p46
      %p49 = scmp.ne.s32.totalorder %s32, %s48
      %p50 = scmp.eq.s32.totalorder %s24, 0
      %p51 = por %p49, %p50
      %s53 = sadd.s32 %s52, 1
      %p56 = scmp.eq.s32.totalorder %s18, 3
      %p57 = scmp.ne.s32.totalorder %s52, %s54
      %p58 = scmp.eq.s32.totalorder %s18, 0
      %p59 = por %p57, %p58
      %p60 = scmp.ne.s32.totalorder %s52, %s54
      %p61 = scmp.eq.s32.totalorder %s23, 3
      %p62 = por %p60, %p61
      %p63 = scmp.ne.s32.totalorder %s54, %s55
      %p64 = scmp.eq.s32.totalorder %s23, 0
      %p65 = por %p63, %p64
      %p66 = scmp.ne.s32.totalorder %s54, %s55
      %p67 = scmp.eq.s32.totalorder %s24, 3
      %p68 = por %p66, %p67
      %p70 = scmp.ne.s32.totalorder %s55, %s69
      %p71 = scmp.eq.s32.totalorder %s24, 0
      %p72 = por %p70, %p71
      %s74 = sadd.s32 %s73, 1
      %p77 = scmp.eq.s32.totalorder %s18, 3
      %p78 = scmp.ne.s32.totalorder %s73, %s75
      %p79 = scmp.eq.s32.totalorder %s18, 0
      %p80 = por %p78, %p79
      %p81 = scmp.ne.s32.totalorder %s73, %s75
      %p82 = scmp.eq.s32.totalorder %s23, 3
      %p83 = por %p81, %p82
      %p84 = scmp.ne.s32.totalorder %s75, %s76
      %p85 = scmp.eq.s32.totalorder %s23, 0
      %p86 = por %p84, %p85
      %p87 = scmp.ne.s32.totalorder %s75, %s76
      %p88 = scmp.eq.s32.totalorder %s24, 3
      %p89 = por %p87, %p88
      %p91 = scmp.ne.s32.totalorder %s76, %s90
      %p92 = scmp.eq.s32.totalorder %s24, 0
      %p93 = por %p91, %p92
      %s95 = sadd.s32 %s94, 1
      %p98 = scmp.eq.s32.totalorder %s18, 3
      %p99 = scmp.ne.s32.totalorder %s94, %s96
      %p100 = scmp.eq.s32.totalorder %s18, 0
      %p101 = por %p99, %p100
      %p102 = scmp.ne.s32.totalorder %s94, %s96
      %p103 = scmp.eq.s32.totalorder %s23, 3
      %p104 = por %p102, %p103
      %p105 = scmp.ne.s32.totalorder %s96, %s97
      %p106 = scmp.eq.s32.totalorder %s23, 0
      %p107 = por %p105, %p106
      %p108 = scmp.ne.s32.totalorder %s96, %s97
      %p109 = scmp.eq.s32.totalorder %s24, 3
      %p110 = por %p108, %p109
      %p112 = scmp.ne.s32.totalorder %s97, %s111
      %p113 = scmp.eq.s32.totalorder %s24, 0
      %p114 = por %p112, %p113
      %s116 = sadd.s32 %s115, 1
      %p119 = scmp.eq.s32.totalorder %s18, 3
      %p120 = scmp.ne.s32.totalorder %s115, %s117
      %p121 = scmp.eq.s32.totalorder %s18, 0
      %p122 = por %p120, %p121
      %p123 = scmp.ne.s32.totalorder %s115, %s117
      %p124 = scmp.eq.s32.totalorder %s23, 3
      %p125 = por %p123, %p124
      %p126 = scmp.ne.s32.totalorder %s117, %s118
      %p127 = scmp.eq.s32.totalorder %s23, 0
      %p128 = por %p126, %p127
      %p129 = scmp.ne.s32.totalorder %s117, %s118
      %p130 = scmp.eq.s32.totalorder %s24, 3
      %p131 = por %p129, %p130
      %p133 = scmp.ne.s32.totalorder %s118, %s132
      %p134 = scmp.eq.s32.totalorder %s24, 0
      %p135 = por %p133, %p134
      %s137 = sadd.s32 %s136, 1
      %p140 = scmp.eq.s32.totalorder %s18, 3
      %p141 = scmp.ne.s32.totalorder %s136, %s138
      %p142 = scmp.eq.s32.totalorder %s18, 0
      %p143 = por %p141, %p142
      %p144 = scmp.ne.s32.totalorder %s136, %s138
      %p145 = scmp.eq.s32.totalorder %s23, 3
      %p146 = por %p144, %p145
      %p147 = scmp.ne.s32.totalorder %s138, %s139
      %p148 = scmp.eq.s32.totalorder %s23, 0
      %p149 = por %p147, %p148
      %p150 = scmp.ne.s32.totalorder %s138, %s139
      %p151 = scmp.eq.s32.totalorder %s24, 3
      %p152 = por %p150, %p151
      %p154 = scmp.ne.s32.totalorder %s139, %s153
      %p155 = scmp.eq.s32.totalorder %s24, 0
      %p156 = por %p154, %p155
      %s158 = sadd.s32 %s157, 1
      %p161 = scmp.eq.s32.totalorder %s18, 3
      %p162 = scmp.ne.s32.totalorder %s157, %s159
      %p163 = scmp.eq.s32.totalorder %s18, 0
      %p164 = por %p162, %p163
      %p165 = scmp.ne.s32.totalorder %s157, %s159
      %p166 = scmp.eq.s32.totalorder %s23, 3
      %p167 = por %p165, %p166
      %p168 = scmp.ne.s32.totalorder %s159, %s160
      %p169 = scmp.eq.s32.totalorder %s23, 0
      %p170 = por %p168, %p169
      %p171 = scmp.ne.s32.totalorder %s159, %s160
      %p172 = scmp.eq.s32.totalorder %s24, 3
      %p173 = por %p171, %p172
      %p175 = scmp.ne.s32.totalorder %s160, %s174
      %p176 = scmp.eq.s32.totalorder %s24, 0
      %p177 = por %p175, %p176
      %s179 = sadd.s32 %s178, 1
      %p182 = scmp.eq.s32.totalorder %s18, 3
      %p183 = scmp.ne.s32.totalorder %s178, %s180
      %p184 = scmp.eq.s32.totalorder %s18, 0
      %p185 = por %p183, %p184
      %p186 = scmp.ne.s32.totalorder %s178, %s180
      %p187 = scmp.eq.s32.totalorder %s23, 3
      %p188 = por %p186, %p187
      %p189 = scmp.ne.s32.totalorder %s180, %s181
      %p190 = scmp.eq.s32.totalorder %s23, 0
      %p191 = por %p189, %p190
      %p192 = scmp.ne.s32.totalorder %s180, %s181
      %p193 = scmp.eq.s32.totalorder %s24, 3
      %p194 = por %p192, %p193
      %p196 = scmp.ne.s32.totalorder %s181, %s195
      %p197 = scmp.eq.s32.totalorder %s24, 0
      %p198 = por %p196, %p197
      %s200 = sadd.s32 %s199, 1
      %p203 = scmp.eq.s32.totalorder %s18, 3
      %p204 = scmp.ne.s32.totalorder %s199, %s201
      %p205 = scmp.eq.s32.totalorder %s18, 0
      %p206 = por %p204, %p205
      %p207 = scmp.ne.s32.totalorder %s199, %s201
      %p208 = scmp.eq.s32.totalorder %s23, 3
      %p209 = por %p207, %p208
      %p210 = scmp.ne.s32.totalorder %s201, %s202
      %p211 = scmp.eq.s32.totalorder %s23, 0
      %p212 = por %p210, %p211
      %p213 = scmp.ne.s32.totalorder %s201, %s202
      %p214 = scmp.eq.s32.totalorder %s24, 3
      %p215 = por %p213, %p214
      %p217 = scmp.ne.s32.totalorder %s202, %s216
      %p218 = scmp.eq.s32.totalorder %s24, 0
      %p219 = por %p217, %p218
      %s220 = ssub.s32 %s18, %s25
      %p221 = scmp.eq.s32.totalorder %s220, 0
      %s223 = sadd.s32 %s222, 1
      %s224 = scalar_select %p221, %s222, %s223
      %p227 = pneg %p221
      %p228 = scmp.eq.s32.totalorder %s18, 3
      %p229 = por %p227, %p228
      %p230 = scmp.ne.s32.totalorder %s222, %s225
      %p231 = scmp.eq.s32.totalorder %s18, 0
      %p232 = por %p230, %p231
      %p233 = scmp.ne.s32.totalorder %s222, %s225
      %p234 = scmp.eq.s32.totalorder %s23, 3
      %p235 = por %p233, %p234
      %p236 = scmp.ne.s32.totalorder %s225, %s226
      %p237 = scmp.eq.s32.totalorder %s23, 0
      %p238 = por %p236, %p237
      %p239 = scmp.ne.s32.totalorder %s225, %s226
      %p240 = scmp.eq.s32.totalorder %s24, 3
      %p241 = por %p239, %p240
      %p243 = scmp.ne.s32.totalorder %s226, %s242
      %p244 = scmp.eq.s32.totalorder %s24, 0
      %p245 = por %p243, %p244
      %p246 = scmp.le.s32.totalorder 1, %s18
      %p247 = scmp.lt.s32.totalorder %s18, 5
      %p248 = pnand %p246, %p247
      %p249 = pneg %p248
      // Predicated region
      $region9: #{tpu_custom_call.1} parent=5 // pred_check
        _
      $region10: #{tpu_custom_call.1} parent=5 // pred_check_branch
        %251 = sbr.rel (%p248) target = $region12
      $region11: #{tpu_custom_call.1} parent=5 // pred_region
        %s252 = ssub.s32 %s18, 1
        // Predicated region
        $region13: #{tpu_custom_call.1} parent=11 // pred_check
          %p253 = pneg %p65
        $region14: #{tpu_custom_call.1} parent=11 // pred_check_branch
          %255 = sbr.rel (%p253) target = $region16
        $region15: #{tpu_custom_call.1} parent=11 // pred_region
          _
        $region16: #{tpu_custom_call.1} parent=11 // pred_fallthru
          _
        // Predicated region
        $region17: #{tpu_custom_call.1} parent=11 // pred_check
          %p256 = pneg %p86
        $region18: #{tpu_custom_call.1} parent=11 // pred_check_branch
          %258 = sbr.rel (%p256) target = $region20
        $region19: #{tpu_custom_call.1} parent=11 // pred_region
          _
        $region20: #{tpu_custom_call.1} parent=11 // pred_fallthru
          _
        // Predicated region
        $region21: #{tpu_custom_call.1} parent=11 // pred_check
          %p259 = pneg %p107
        $region22: #{tpu_custom_call.1} parent=11 // pred_check_branch
          %261 = sbr.rel (%p259) target = $region24
        $region23: #{tpu_custom_call.1} parent=11 // pred_region
          _
        $region24: #{tpu_custom_call.1} parent=11 // pred_fallthru
          _
        // Predicated region
        $region25: #{tpu_custom_call.1} parent=11 // pred_check
          %p262 = pneg %p128
        $region26: #{tpu_custom_call.1} parent=11 // pred_check_branch
          %264 = sbr.rel (%p262) target = $region28
        $region27: #{tpu_custom_call.1} parent=11 // pred_region
          _
        $region28: #{tpu_custom_call.1} parent=11 // pred_fallthru
          _
        // Predicated region
        $region29: #{tpu_custom_call.1} parent=11 // pred_check
          %p265 = pneg %p149
        $region30: #{tpu_custom_call.1} parent=11 // pred_check_branch
          %267 = sbr.rel (%p265) target = $region32
        $region31: #{tpu_custom_call.1} parent=11 // pred_region
          _
        $region32: #{tpu_custom_call.1} parent=11 // pred_fallthru
          _
        // Predicated region
        $region33: #{tpu_custom_call.1} parent=11 // pred_check
          %p268 = pneg %p170
        $region34: #{tpu_custom_call.1} parent=11 // pred_check_branch
          %270 = sbr.rel (%p268) target = $region36
        $region35: #{tpu_custom_call.1} parent=11 // pred_region
          _
        $region36: #{tpu_custom_call.1} parent=11 // pred_fallthru
          _
        // Predicated region
        $region37: #{tpu_custom_call.1} parent=11 // pred_check
          %p271 = pneg %p191
        $region38: #{tpu_custom_call.1} parent=11 // pred_check_branch
          %273 = sbr.rel (%p271) target = $region40
        $region39: #{tpu_custom_call.1} parent=11 // pred_region
          _
        $region40: #{tpu_custom_call.1} parent=11 // pred_fallthru
          _
        // Predicated region
        $region41: #{tpu_custom_call.1} parent=11 // pred_check
          %p274 = pneg %p212
        $region42: #{tpu_custom_call.1} parent=11 // pred_check_branch
          %276 = sbr.rel (%p274) target = $region44
        $region43: #{tpu_custom_call.1} parent=11 // pred_region
          _
        $region44: #{tpu_custom_call.1} parent=11 // pred_fallthru
          _
      $region12: #{tpu_custom_call.1} parent=5 // pred_fallthru
        _
      %p277 = scmp.lt.s32.totalorder %s18, 4
      // Predicated region
      $region45: #{tpu_custom_call.1} parent=5 // pred_check
        %p278 = pneg %p277
      $region46: #{tpu_custom_call.1} parent=5 // pred_check_branch
        %280 = sbr.rel (%p278) target = $region48
      $region47: #{tpu_custom_call.1} parent=5 // pred_region
        // Predicated region
        $region49: #{tpu_custom_call.1} parent=47 // pred_check
          %p281 = pneg %p38
        $region50: #{tpu_custom_call.1} parent=47 // pred_check_branch
          %283 = sbr.rel (%p281) target = $region52
        $region51: #{tpu_custom_call.1} parent=47 // pred_region
          %s284 = smul.u32 16, %s18
          %p285 = scmp.lt.s32.totalorder %s284, 63
          %s286 = scalar_select %p285, %s284, 63
          %s287 = smul.addr %s286, 8
          %s288 = scalar_lea.vmem %s0, %s287
          %s289 = smul.u32 16, %s18
        $region52: #{tpu_custom_call.1} parent=47 // pred_fallthru
          _
      $region48: #{tpu_custom_call.1} parent=5 // pred_fallthru
        _
      %p290 = scmp.le.s32.totalorder 1, %s18
      %p291 = scmp.lt.s32.totalorder %s18, 5
      %p292 = pnand %p290, %p291
      %p293 = pneg %p292
      // Predicated region
      $region53: #{tpu_custom_call.1} parent=5 // pred_check
        _
      $region54: #{tpu_custom_call.1} parent=5 // pred_check_branch
        %295 = sbr.rel (%p292) target = $region56
      $region55: #{tpu_custom_call.1} parent=5 // pred_region
        %s296 = ssub.s32 %s18, 1
        %s297 = smul.u32 16, %s23
        %p298 = scmp.lt.s32.totalorder %s297, 63
        %s299 = scalar_select %p298, %s297, 63
        %s300 = smul.addr %s299, 8
        %s301 = scalar_lea.vmem %s0, %s300
        %p302 = pneg %p44
        %p303 = pneg %p41
        %p304 = pneg %p65
        %p305 = pneg %p62
        %p306 = pneg %p86
        %p307 = pneg %p83
        %p308 = pneg %p107
        %p309 = pneg %p104
        %p310 = pneg %p128
        %p311 = pneg %p125
        %p312 = pneg %p149
        %p313 = pneg %p146
        %p314 = pneg %p170
        %p315 = pneg %p167
        %p316 = pneg %p191
        %p317 = pneg %p188
        %p318 = pneg %p212
        %p319 = pneg %p209
        %p320 = pneg %p238
        %p321 = pneg %p235
        %s322 = sand.u32 %s225, 1
        %s323 = scalar_lea.sflag [#allocation3], %s322
        %s324 = sand.u32 %s225, 1
        %s325 = smul.addr %s324, 128
        %s326 = scalar_lea.vmem [#allocation2], %s325
        %s327 = smul.u32 16, %s23
        %p328 = scmp.lt.s32.totalorder %s327, 63
        %s329 = scalar_select %p328, %s327, 63
        %s330 = smul.addr %s329, 8
        %s331 = scalar_lea.vmem %s0, %s330
        %s332 = smul.u32 16, %s23
        %s333 = smul.u32 16, %s23
        %v334 = vld [vmem:[%s331] sm:$0xff]
        %v335 = vld [vmem:[%s331 + $0x8] sm:$0xff]
        %v336 = vld [vmem:[%s331 + $0x10] sm:$0xff]
        %v337 = vld [vmem:[%s331 + $0x18] sm:$0xff]
        %v338 = vld [vmem:[%s331 + $0x20] sm:$0xff]
        %v339 = vld [vmem:[%s331 + $0x28] sm:$0xff]
        %v340 = vld [vmem:[%s331 + $0x30] sm:$0xff]
        %v341 = vld [vmem:[%s331 + $0x38] sm:$0xff]
        %v342 = vld [vmem:[%s331 + $0x40] sm:$0xff]
        %v343 = vld [vmem:[%s331 + $0x48] sm:$0xff]
        %v344 = vld [vmem:[%s331 + $0x50] sm:$0xff]
        %v345 = vld [vmem:[%s331 + $0x58] sm:$0xff]
        %v346 = vld [vmem:[%s331 + $0x60] sm:$0xff]
        %v347 = vld [vmem:[%s331 + $0x68] sm:$0xff]
        %v348 = vld [vmem:[%s331 + $0x70] sm:$0xff]
        %v349 = vld [vmem:[%s331 + $0x78] sm:$0xff]
        %v350 = vld [vmem:[%s2] sm:$0x1]
        %v351 = vld [vmem:[%s1] sm:$0x1]
        %353 = vset.pattern.permute.xlu0 0
        %354 = vperm.xlu0 %353, %v334
        %v355 = vpop.permute.xlu0 %354
        %358 = vset.pattern.permute.xlu0 0
        %359 = vperm.xlu0 %358, %v335
        %v360 = vpop.permute.xlu0 %359
        %363 = vset.pattern.permute.xlu0 0
        %364 = vperm.xlu0 %363, %v336
        %v365 = vpop.permute.xlu0 %364
        %368 = vset.pattern.permute.xlu0 0
        %369 = vperm.xlu0 %368, %v337
        %v370 = vpop.permute.xlu0 %369
        %373 = vset.pattern.permute.xlu0 0
        %374 = vperm.xlu0 %373, %v338
        %v375 = vpop.permute.xlu0 %374
        %378 = vset.pattern.permute.xlu0 0
        %379 = vperm.xlu0 %378, %v339
        %v380 = vpop.permute.xlu0 %379
        %383 = vset.pattern.permute.xlu0 0
        %384 = vperm.xlu0 %383, %v340
        %v385 = vpop.permute.xlu0 %384
        %388 = vset.pattern.permute.xlu0 0
        %389 = vperm.xlu0 %388, %v341
        %v390 = vpop.permute.xlu0 %389
        %393 = vset.pattern.permute.xlu0 0
        %394 = vperm.xlu0 %393, %v342
        %v395 = vpop.permute.xlu0 %394
        %398 = vset.pattern.permute.xlu0 0
        %399 = vperm.xlu0 %398, %v343
        %v400 = vpop.permute.xlu0 %399
        %403 = vset.pattern.permute.xlu0 0
        %404 = vperm.xlu0 %403, %v344
        %v405 = vpop.permute.xlu0 %404
        %408 = vset.pattern.permute.xlu0 0
        %409 = vperm.xlu0 %408, %v345
        %v410 = vpop.permute.xlu0 %409
        %413 = vset.pattern.permute.xlu0 0
        %414 = vperm.xlu0 %413, %v346
        %v415 = vpop.permute.xlu0 %414
        %418 = vset.pattern.permute.xlu0 0
        %419 = vperm.xlu0 %418, %v347
        %v420 = vpop.permute.xlu0 %419
        %423 = vset.pattern.permute.xlu0 0
        %424 = vperm.xlu0 %423, %v348
        %v425 = vpop.permute.xlu0 %424
        %428 = vset.pattern.permute.xlu0 0
        %429 = vperm.xlu0 %428, %v349
        %v430 = vpop.permute.xlu0 %429
        %v432 = vlaneseq
        %v433 = vshrl.u32 %v432, 7
        %v434 = vsub.s32 0, %v433
        %v435 = vrot.slane %v351, %v434
        %v436 = vmul.f32 %v355, %v435
        %v437 = vmul.f32 %v360, %v435
        %v438 = vmul.f32 %v365, %v435
        %v439 = vmul.f32 %v370, %v435
        %v440 = vmul.f32 %v375, %v435
        %v441 = vmul.f32 %v380, %v435
        %v442 = vmul.f32 %v385, %v435
        %v443 = vmul.f32 %v390, %v435
        %v444 = vmul.f32 %v395, %v435
        %v445 = vmul.f32 %v400, %v435
        %v446 = vmul.f32 %v405, %v435
        %v447 = vmul.f32 %v410, %v435
        %v448 = vmul.f32 %v415, %v435
        %v449 = vmul.f32 %v420, %v435
        %v450 = vmul.f32 %v425, %v435
        %v451 = vmul.f32 %v430, %v435
        %v453 = vlaneseq
        %v454 = vshrl.u32 %v453, 7
        %v455 = vsub.s32 0, %v454
        %v456 = vrot.slane %v350, %v455
        %v458 = vadd.f32 %v456, %v436
        %v459 = vadd.f32 %v456, %v437
        %v460 = vadd.f32 %v456, %v438
        %v461 = vadd.f32 %v456, %v439
        %v462 = vadd.f32 %v456, %v440
        %v463 = vadd.f32 %v456, %v441
        %v464 = vadd.f32 %v456, %v442
        %v465 = vadd.f32 %v456, %v443
        %v466 = vadd.f32 %v456, %v444
        %v467 = vadd.f32 %v456, %v445
        %v468 = vadd.f32 %v456, %v446
        %v469 = vadd.f32 %v456, %v447
        %v470 = vadd.f32 %v456, %v448
        %v471 = vadd.f32 %v456, %v449
        %v472 = vadd.f32 %v456, %v450
        %v473 = vadd.f32 %v456, %v451
        %v474 = vld [vmem:[%s1 + $0x1] sm:$0x1]
        %475 = vset.pattern.permute.xlu0 1
        %476 = vperm.xlu0 %475, %v334
        %v477 = vpop.permute.xlu0 %476
        %479 = vset.pattern.permute.xlu0 1
        %480 = vperm.xlu0 %479, %v335
        %v481 = vpop.permute.xlu0 %480
        %483 = vset.pattern.permute.xlu0 1
        %484 = vperm.xlu0 %483, %v336
        %v485 = vpop.permute.xlu0 %484
        %487 = vset.pattern.permute.xlu0 1
        %488 = vperm.xlu0 %487, %v337
        %v489 = vpop.permute.xlu0 %488
        %491 = vset.pattern.permute.xlu0 1
        %492 = vperm.xlu0 %491, %v338
        %v493 = vpop.permute.xlu0 %492
        %495 = vset.pattern.permute.xlu0 1
        %496 = vperm.xlu0 %495, %v339
        %v497 = vpop.permute.xlu0 %496
        %499 = vset.pattern.permute.xlu0 1
        %500 = vperm.xlu0 %499, %v340
        %v501 = vpop.permute.xlu0 %500
        %503 = vset.pattern.permute.xlu0 1
        %504 = vperm.xlu0 %503, %v341
        %v505 = vpop.permute.xlu0 %504
        %507 = vset.pattern.permute.xlu0 1
        %508 = vperm.xlu0 %507, %v342
        %v509 = vpop.permute.xlu0 %508
        %511 = vset.pattern.permute.xlu0 1
        %512 = vperm.xlu0 %511, %v343
        %v513 = vpop.permute.xlu0 %512
        %515 = vset.pattern.permute.xlu0 1
        %516 = vperm.xlu0 %515, %v344
        %v517 = vpop.permute.xlu0 %516
        %519 = vset.pattern.permute.xlu0 1
        %520 = vperm.xlu0 %519, %v345
        %v521 = vpop.permute.xlu0 %520
        %523 = vset.pattern.permute.xlu0 1
        %524 = vperm.xlu0 %523, %v346
        %v525 = vpop.permute.xlu0 %524
        %527 = vset.pattern.permute.xlu0 1
        %528 = vperm.xlu0 %527, %v347
        %v529 = vpop.permute.xlu0 %528
        %531 = vset.pattern.permute.xlu0 1
        %532 = vperm.xlu0 %531, %v348
        %v533 = vpop.permute.xlu0 %532
        %535 = vset.pattern.permute.xlu0 1
        %536 = vperm.xlu0 %535, %v349
        %v537 = vpop.permute.xlu0 %536
        %v539 = vlaneseq
        %v540 = vshrl.u32 %v539, 7
        %v541 = vsub.s32 0, %v540
        %v542 = vrot.slane %v474, %v541
        %v543 = vmul.f32 %v477, %v542
        %v544 = vmul.f32 %v481, %v542
        %v545 = vmul.f32 %v485, %v542
        %v546 = vmul.f32 %v489, %v542
        %v547 = vmul.f32 %v493, %v542
        %v548 = vmul.f32 %v497, %v542
        %v549 = vmul.f32 %v501, %v542
        %v550 = vmul.f32 %v505, %v542
        %v551 = vmul.f32 %v509, %v542
        %v552 = vmul.f32 %v513, %v542
        %v553 = vmul.f32 %v517, %v542
        %v554 = vmul.f32 %v521, %v542
        %v555 = vmul.f32 %v525, %v542
        %v556 = vmul.f32 %v529, %v542
        %v557 = vmul.f32 %v533, %v542
        %v558 = vmul.f32 %v537, %v542
        %v559 = vadd.f32 %v458, %v543
        %v560 = vadd.f32 %v459, %v544
        %v561 = vadd.f32 %v460, %v545
        %v562 = vadd.f32 %v461, %v546
        %v563 = vadd.f32 %v462, %v547
        %v564 = vadd.f32 %v463, %v548
        %v565 = vadd.f32 %v464, %v549
        %v566 = vadd.f32 %v465, %v550
        %v567 = vadd.f32 %v466, %v551
        %v568 = vadd.f32 %v467, %v552
        %v569 = vadd.f32 %v468, %v553
        %v570 = vadd.f32 %v469, %v554
        %v571 = vadd.f32 %v470, %v555
        %v572 = vadd.f32 %v471, %v556
        %v573 = vadd.f32 %v472, %v557
        %v574 = vadd.f32 %v473, %v558
        %v575 = vand.u32 2147483647, %v559
        %vm576 = vcmp.le.f32.partialorder %v575, 0.7853982
        %vm577 = vcmp.lt.s32.totalorder %v559, 0
        %v578 = vand.u32 %v559, 2139095040
        %v579 = vshrl.u32 %v578, 23
        %v580 = vsub.s32 %v579, 127
        %v581 = vand.u32 2147483647, %v559
        %v582 = vand.u32 %v581, 8388607
        %v583 = vor.u32 %v582, 8388608
        %v584 = vsub.s32 0, %v583
        %v585 = vadd.s32 %v580, 1
        %vm586 = vcmp.gt.s32.totalorder %v585, 0
        %v587 = vsel %vm586, %v585, 0
        %v588 = vshrl.u32 %v587, 5
        %v589 = vand.u32 %v587, 31
        %v590 = vsub.s32 32, %v589
        %v591 = vshrl.u32 683565275, %v590
        %v592 = vshll.u32 683565275, %v589
        %v593 = vshrl.u32 2475754826, %v590
        %v594 = vor.u32 %v592, %v593
        %v595 = vshll.u32 2475754826, %v589
        %v596 = vshrl.u32 2131351028, %v590
        %v597 = vor.u32 %v595, %v596
        %v598 = vshll.u32 2131351028, %v589
        %v599 = vshrl.u32 2102212464, %v590
        %v600 = vor.u32 %v598, %v599
        %v601 = vshll.u32 2102212464, %v589
        %v602 = vshrl.u32 920167782, %v590
        %v603 = vor.u32 %v601, %v602
        %v604 = vshll.u32 920167782, %v589
        %v605 = vshrl.u32 1326507024, %v590
        %v606 = vor.u32 %v604, %v605
        %vm607 = vcmp.lt.s32.totalorder %v588, 1
        %vm608 = vcmp.lt.s32.totalorder %v588, 2
        %vm609 = vcmp.lt.s32.totalorder %v588, 3
        %vm610 = vcmp.lt.s32.totalorder %v588, 4
        %v611 = vsel %vm607, %v591, %v594
        %v612 = vsel %vm610, %v600, 2102212464
        %v613 = vsel %vm609, %v597, %v612
        %v614 = vsel %vm608, %v611, %v613
        %v615 = vsel %vm607, %v594, %v597
        %v616 = vsel %vm610, %v603, 920167782
        %v617 = vsel %vm609, %v600, %v616
        %v618 = vsel %vm608, %v615, %v617
        %v619 = vsel %vm607, %v597, %v600
        %v620 = vsel %vm610, %v606, 1326507024
        %v621 = vsel %vm609, %v603, %v620
        %v622 = vsel %vm608, %v619, %v621
        %v623 = vshll.u32 %v583, 8
        %v624 = vmul.u32.u64.compose %v623, %v622
        %v625 = vextract.low.u32 %v624
        %v626 = vextract.high.u32 %v624
        %v627 = vmul.u32.u64.compose %v623, %v618
        %v628 = vextract.low.u32 %v627
        %v629 = vextract.high.u32 %v627
        %v630 = vmul.u32 %v623, %v614
        %v631 = vadd.s32 %v626, %v628
        %vm632 = vc.u32 %v626, %v628
        %v633 = vadd.s32 %v629, 1
        %v634 = vsel %vm632, %v633, %v629
        %v635 = vadd.s32 %v630, %v634
        %v636 = vadd.s32 %v635, 536870912
        %v637 = vshrl.u32 %v636, 30
        %v638 = vshll.u32 %v637, 30
        %v639 = vsub.s32 %v635, %v638
        %vm640 = vcmp.lt.s32.totalorder %v639, 0
        %v641 = vsub.s32 0, %v639
        %v642 = vsel %vm640, %v641, %v639
        %v643 = vclz %v642
        %v644 = vsub.s32 %v643, 2
        %vm645 = vcmp.gt.s32.totalorder 0, %v644
        %v646 = vsel %vm645, 0, %v644
        %v647 = vsub.s32 32, %v646
        %v648 = vshll.u32 %v639, %v646
        %v649 = vshrl.u32 %v631, %v647
        %v650 = vor.u32 %v648, %v649
        %v651 = vsub.s32 4294967266, %v646
        %v652 = vadd.s32 %v651, 127
        %v653 = vshll.u32 %v652, 23
        %v654 = vor.u32 4788187, %v653
        %v655 = vand.u32 2147483647, %v654
        %v657 = vcvt.s32.f32 %v650
        %v658 = vmul.f32 %v657, %v655
        %v659 = vxor.u32 %v658, 2147483648
        %v660 = vsel %vm577, %v659, %v658
        %v661 = vsub.s32 4, %v637
        %v662 = vsel %vm577, %v661, %v637
        %v663 = vsel %vm576, %v559, %v660
        %v664 = vsel %vm576, 0, %v662
        %v665 = vcosq.f32.pop %v663
        %v666 = vsinq.f32.pop %v663
        %vm667 = vweird.f32 %v559
        %v668 = vadd.s32 %v664, 3
        %v669 = vand.u32 %v668, 3
        %vm670 = vcmp.lt.s32.totalorder %v669, 2
        %vm671 = vcmp.eq.s32.totalorder %v669, 0
        %v672 = vxor.u32 %v666, 2147483648
        %v673 = vsel %vm671, %v665, %v672
        %vm674 = vcmp.eq.s32.totalorder %v669, 2
        %v675 = vxor.u32 %v665, 2147483648
        %v676 = vsel %vm674, %v675, %v666
        %v677 = vsel %vm670, %v673, %v676
        %v678 = vsel %vm667, nan, %v677
        %v679 = vand.u32 2147483647, %v560
        %vm680 = vcmp.le.f32.partialorder %v679, 0.7853982
        %vm681 = vcmp.lt.s32.totalorder %v560, 0
        %v682 = vand.u32 %v560, 2139095040
        %v683 = vshrl.u32 %v682, 23
        %v684 = vsub.s32 %v683, 127
        %v685 = vand.u32 2147483647, %v560
        %v686 = vand.u32 %v685, 8388607
        %v687 = vor.u32 %v686, 8388608
        %v688 = vsub.s32 0, %v687
        %v689 = vadd.s32 %v684, 1
        %vm690 = vcmp.gt.s32.totalorder %v689, 0
        %v691 = vsel %vm690, %v689, 0
        %v692 = vshrl.u32 %v691, 5
        %v693 = vand.u32 %v691, 31
        %v694 = vsub.s32 32, %v693
        %v695 = vshrl.u32 683565275, %v694
        %v696 = vshll.u32 683565275, %v693
        %v697 = vshrl.u32 2475754826, %v694
        %v698 = vor.u32 %v696, %v697
        %v699 = vshll.u32 2475754826, %v693
        %v700 = vshrl.u32 2131351028, %v694
        %v701 = vor.u32 %v699, %v700
        %v702 = vshll.u32 2131351028, %v693
        %v703 = vshrl.u32 2102212464, %v694
        %v704 = vor.u32 %v702, %v703
        %v705 = vshll.u32 2102212464, %v693
        %v706 = vshrl.u32 920167782, %v694
        %v707 = vor.u32 %v705, %v706
        %v708 = vshll.u32 920167782, %v693
        %v709 = vshrl.u32 1326507024, %v694
        %v710 = vor.u32 %v708, %v709
        %vm711 = vcmp.lt.s32.totalorder %v692, 1
        %vm712 = vcmp.lt.s32.totalorder %v692, 2
        %vm713 = vcmp.lt.s32.totalorder %v692, 3
        %vm714 = vcmp.lt.s32.totalorder %v692, 4
        %v715 = vsel %vm711, %v695, %v698
        %v716 = vsel %vm714, %v704, 2102212464
        %v717 = vsel %vm713, %v701, %v716
        %v718 = vsel %vm712, %v715, %v717
        %v719 = vsel %vm711, %v698, %v701
        %v720 = vsel %vm714, %v707, 920167782
        %v721 = vsel %vm713, %v704, %v720
        %v722 = vsel %vm712, %v719, %v721
        %v723 = vsel %vm711, %v701, %v704
        %v724 = vsel %vm714, %v710, 1326507024
        %v725 = vsel %vm713, %v707, %v724
        %v726 = vsel %vm712, %v723, %v725
        %v727 = vshll.u32 %v687, 8
        %v728 = vmul.u32.u64.compose %v727, %v726
        %v729 = vextract.low.u32 %v728
        %v730 = vextract.high.u32 %v728
        %v731 = vmul.u32.u64.compose %v727, %v722
        %v732 = vextract.low.u32 %v731
        %v733 = vextract.high.u32 %v731
        %v734 = vmul.u32 %v727, %v718
        %v735 = vadd.s32 %v730, %v732
        %vm736 = vc.u32 %v730, %v732
        %v737 = vadd.s32 %v733, 1
        %v738 = vsel %vm736, %v737, %v733
        %v739 = vadd.s32 %v734, %v738
        %v740 = vadd.s32 %v739, 536870912
        %v741 = vshrl.u32 %v740, 30
        %v742 = vshll.u32 %v741, 30
        %v743 = vsub.s32 %v739, %v742
        %vm744 = vcmp.lt.s32.totalorder %v743, 0
        %v745 = vsub.s32 0, %v743
        %v746 = vsel %vm744, %v745, %v743
        %v747 = vclz %v746
        %v748 = vsub.s32 %v747, 2
        %vm749 = vcmp.gt.s32.totalorder 0, %v748
        %v750 = vsel %vm749, 0, %v748
        %v751 = vsub.s32 32, %v750
        %v752 = vshll.u32 %v743, %v750
        %v753 = vshrl.u32 %v735, %v751
        %v754 = vor.u32 %v752, %v753
        %v755 = vsub.s32 4294967266, %v750
        %v756 = vadd.s32 %v755, 127
        %v757 = vshll.u32 %v756, 23
        %v758 = vor.u32 4788187, %v757
        %v759 = vand.u32 2147483647, %v758
        %v761 = vcvt.s32.f32 %v754
        %v762 = vmul.f32 %v761, %v759
        %v763 = vxor.u32 %v762, 2147483648
        %v764 = vsel %vm681, %v763, %v762
        %v765 = vsub.s32 4, %v741
        %v766 = vsel %vm681, %v765, %v741
        %v767 = vsel %vm680, %v560, %v764
        %v768 = vsel %vm680, 0, %v766
        %v769 = vcosq.f32.pop %v767
        %v770 = vsinq.f32.pop %v767
        %vm771 = vweird.f32 %v560
        %v772 = vadd.s32 %v768, 3
        %v773 = vand.u32 %v772, 3
        %vm774 = vcmp.lt.s32.totalorder %v773, 2
        %vm775 = vcmp.eq.s32.totalorder %v773, 0
        %v776 = vxor.u32 %v770, 2147483648
        %v777 = vsel %vm775, %v769, %v776
        %vm778 = vcmp.eq.s32.totalorder %v773, 2
        %v779 = vxor.u32 %v769, 2147483648
        %v780 = vsel %vm778, %v779, %v770
        %v781 = vsel %vm774, %v777, %v780
        %v782 = vsel %vm771, nan, %v781
        %v783 = vand.u32 2147483647, %v561
        %vm784 = vcmp.le.f32.partialorder %v783, 0.7853982
        %vm785 = vcmp.lt.s32.totalorder %v561, 0
        %v786 = vand.u32 %v561, 2139095040
        %v787 = vshrl.u32 %v786, 23
        %v788 = vsub.s32 %v787, 127
        %v789 = vand.u32 2147483647, %v561
        %v790 = vand.u32 %v789, 8388607
        %v791 = vor.u32 %v790, 8388608
        %v792 = vsub.s32 0, %v791
        %v793 = vadd.s32 %v788, 1
        %vm794 = vcmp.gt.s32.totalorder %v793, 0
        %v795 = vsel %vm794, %v793, 0
        %v796 = vshrl.u32 %v795, 5
        %v797 = vand.u32 %v795, 31
        %v798 = vsub.s32 32, %v797
        %v799 = vshrl.u32 683565275, %v798
        %v800 = vshll.u32 683565275, %v797
        %v801 = vshrl.u32 2475754826, %v798
        %v802 = vor.u32 %v800, %v801
        %v803 = vshll.u32 2475754826, %v797
        %v804 = vshrl.u32 2131351028, %v798
        %v805 = vor.u32 %v803, %v804
        %v806 = vshll.u32 2131351028, %v797
        %v807 = vshrl.u32 2102212464, %v798
        %v808 = vor.u32 %v806, %v807
        %v809 = vshll.u32 2102212464, %v797
        %v810 = vshrl.u32 920167782, %v798
        %v811 = vor.u32 %v809, %v810
        %v812 = vshll.u32 920167782, %v797
        %v813 = vshrl.u32 1326507024, %v798
        %v814 = vor.u32 %v812, %v813
        %vm815 = vcmp.lt.s32.totalorder %v796, 1
        %vm816 = vcmp.lt.s32.totalorder %v796, 2
        %vm817 = vcmp.lt.s32.totalorder %v796, 3
        %vm818 = vcmp.lt.s32.totalorder %v796, 4
        %v819 = vsel %vm815, %v799, %v802
        %v820 = vsel %vm818, %v808, 2102212464
        %v821 = vsel %vm817, %v805, %v820
        %v822 = vsel %vm816, %v819, %v821
        %v823 = vsel %vm815, %v802, %v805
        %v824 = vsel %vm818, %v811, 920167782
        %v825 = vsel %vm817, %v808, %v824
        %v826 = vsel %vm816, %v823, %v825
        %v827 = vsel %vm815, %v805, %v808
        %v828 = vsel %vm818, %v814, 1326507024
        %v829 = vsel %vm817, %v811, %v828
        %v830 = vsel %vm816, %v827, %v829
        %v831 = vshll.u32 %v791, 8
        %v832 = vmul.u32.u64.compose %v831, %v830
        %v833 = vextract.low.u32 %v832
        %v834 = vextract.high.u32 %v832
        %v835 = vmul.u32.u64.compose %v831, %v826
        %v836 = vextract.low.u32 %v835
        %v837 = vextract.high.u32 %v835
        %v838 = vmul.u32 %v831, %v822
        %v839 = vadd.s32 %v834, %v836
        %vm840 = vc.u32 %v834, %v836
        %v841 = vadd.s32 %v837, 1
        %v842 = vsel %vm840, %v841, %v837
        %v843 = vadd.s32 %v838, %v842
        %v844 = vadd.s32 %v843, 536870912
        %v845 = vshrl.u32 %v844, 30
        %v846 = vshll.u32 %v845, 30
        %v847 = vsub.s32 %v843, %v846
        %vm848 = vcmp.lt.s32.totalorder %v847, 0
        %v849 = vsub.s32 0, %v847
        %v850 = vsel %vm848, %v849, %v847
        %v851 = vclz %v850
        %v852 = vsub.s32 %v851, 2
        %vm853 = vcmp.gt.s32.totalorder 0, %v852
        %v854 = vsel %vm853, 0, %v852
        %v855 = vsub.s32 32, %v854
        %v856 = vshll.u32 %v847, %v854
        %v857 = vshrl.u32 %v839, %v855
        %v858 = vor.u32 %v856, %v857
        %v859 = vsub.s32 4294967266, %v854
        %v860 = vadd.s32 %v859, 127
        %v861 = vshll.u32 %v860, 23
        %v862 = vor.u32 4788187, %v861
        %v863 = vand.u32 2147483647, %v862
        %v865 = vcvt.s32.f32 %v858
        %v866 = vmul.f32 %v865, %v863
        %v867 = vxor.u32 %v866, 2147483648
        %v868 = vsel %vm785, %v867, %v866
        %v869 = vsub.s32 4, %v845
        %v870 = vsel %vm785, %v869, %v845
        %v871 = vsel %vm784, %v561, %v868
        %v872 = vsel %vm784, 0, %v870
        %v873 = vcosq.f32.pop %v871
        %v874 = vsinq.f32.pop %v871
        %vm875 = vweird.f32 %v561
        %v876 = vadd.s32 %v872, 3
        %v877 = vand.u32 %v876, 3
        %vm878 = vcmp.lt.s32.totalorder %v877, 2
        %vm879 = vcmp.eq.s32.totalorder %v877, 0
        %v880 = vxor.u32 %v874, 2147483648
        %v881 = vsel %vm879, %v873, %v880
        %vm882 = vcmp.eq.s32.totalorder %v877, 2
        %v883 = vxor.u32 %v873, 2147483648
        %v884 = vsel %vm882, %v883, %v874
        %v885 = vsel %vm878, %v881, %v884
        %v886 = vsel %vm875, nan, %v885
        %v887 = vand.u32 2147483647, %v562
        %vm888 = vcmp.le.f32.partialorder %v887, 0.7853982
        %vm889 = vcmp.lt.s32.totalorder %v562, 0
        %v890 = vand.u32 %v562, 2139095040
        %v891 = vshrl.u32 %v890, 23
        %v892 = vsub.s32 %v891, 127
        %v893 = vand.u32 2147483647, %v562
        %v894 = vand.u32 %v893, 8388607
        %v895 = vor.u32 %v894, 8388608
        %v896 = vsub.s32 0, %v895
        %v897 = vadd.s32 %v892, 1
        %vm898 = vcmp.gt.s32.totalorder %v897, 0
        %v899 = vsel %vm898, %v897, 0
        %v900 = vshrl.u32 %v899, 5
        %v901 = vand.u32 %v899, 31
        %v902 = vsub.s32 32, %v901
        %v903 = vshrl.u32 683565275, %v902
        %v904 = vshll.u32 683565275, %v901
        %v905 = vshrl.u32 2475754826, %v902
        %v906 = vor.u32 %v904, %v905
        %v907 = vshll.u32 2475754826, %v901
        %v908 = vshrl.u32 2131351028, %v902
        %v909 = vor.u32 %v907, %v908
        %v910 = vshll.u32 2131351028, %v901
        %v911 = vshrl.u32 2102212464, %v902
        %v912 = vor.u32 %v910, %v911
        %v913 = vshll.u32 2102212464, %v901
        %v914 = vshrl.u32 920167782, %v902
        %v915 = vor.u32 %v913, %v914
        %v916 = vshll.u32 920167782, %v901
        %v917 = vshrl.u32 1326507024, %v902
        %v918 = vor.u32 %v916, %v917
        %vm919 = vcmp.lt.s32.totalorder %v900, 1
        %vm920 = vcmp.lt.s32.totalorder %v900, 2
        %vm921 = vcmp.lt.s32.totalorder %v900, 3
        %vm922 = vcmp.lt.s32.totalorder %v900, 4
        %v923 = vsel %vm919, %v903, %v906
        %v924 = vsel %vm922, %v912, 2102212464
        %v925 = vsel %vm921, %v909, %v924
        %v926 = vsel %vm920, %v923, %v925
        %v927 = vsel %vm919, %v906, %v909
        %v928 = vsel %vm922, %v915, 920167782
        %v929 = vsel %vm921, %v912, %v928
        %v930 = vsel %vm920, %v927, %v929
        %v931 = vsel %vm919, %v909, %v912
        %v932 = vsel %vm922, %v918, 1326507024
        %v933 = vsel %vm921, %v915, %v932
        %v934 = vsel %vm920, %v931, %v933
        %v935 = vshll.u32 %v895, 8
        %v936 = vmul.u32.u64.compose %v935, %v934
        %v937 = vextract.low.u32 %v936
        %v938 = vextract.high.u32 %v936
        %v939 = vmul.u32.u64.compose %v935, %v930
        %v940 = vextract.low.u32 %v939
        %v941 = vextract.high.u32 %v939
        %v942 = vmul.u32 %v935, %v926
        %v943 = vadd.s32 %v938, %v940
        %vm944 = vc.u32 %v938, %v940
        %v945 = vadd.s32 %v941, 1
        %v946 = vsel %vm944, %v945, %v941
        %v947 = vadd.s32 %v942, %v946
        %v948 = vadd.s32 %v947, 536870912
        %v949 = vshrl.u32 %v948, 30
        %v950 = vshll.u32 %v949, 30
        %v951 = vsub.s32 %v947, %v950
        %vm952 = vcmp.lt.s32.totalorder %v951, 0
        %v953 = vsub.s32 0, %v951
        %v954 = vsel %vm952, %v953, %v951
        %v955 = vclz %v954
        %v956 = vsub.s32 %v955, 2
        %vm957 = vcmp.gt.s32.totalorder 0, %v956
        %v958 = vsel %vm957, 0, %v956
        %v959 = vsub.s32 32, %v958
        %v960 = vshll.u32 %v951, %v958
        %v961 = vshrl.u32 %v943, %v959
        %v962 = vor.u32 %v960, %v961
        %v963 = vsub.s32 4294967266, %v958
        %v964 = vadd.s32 %v963, 127
        %v965 = vshll.u32 %v964, 23
        %v966 = vor.u32 4788187, %v965
        %v967 = vand.u32 2147483647, %v966
        %v969 = vcvt.s32.f32 %v962
        %v970 = vmul.f32 %v969, %v967
        %v971 = vxor.u32 %v970, 2147483648
        %v972 = vsel %vm889, %v971, %v970
        %v973 = vsub.s32 4, %v949
        %v974 = vsel %vm889, %v973, %v949
        %v975 = vsel %vm888, %v562, %v972
        %v976 = vsel %vm888, 0, %v974
        %v977 = vcosq.f32.pop %v975
        %v978 = vsinq.f32.pop %v975
        %vm979 = vweird.f32 %v562
        %v980 = vadd.s32 %v976, 3
        %v981 = vand.u32 %v980, 3
        %vm982 = vcmp.lt.s32.totalorder %v981, 2
        %vm983 = vcmp.eq.s32.totalorder %v981, 0
        %v984 = vxor.u32 %v978, 2147483648
        %v985 = vsel %vm983, %v977, %v984
        %vm986 = vcmp.eq.s32.totalorder %v981, 2
        %v987 = vxor.u32 %v977, 2147483648
        %v988 = vsel %vm986, %v987, %v978
        %v989 = vsel %vm982, %v985, %v988
        %v990 = vsel %vm979, nan, %v989
        %v991 = vand.u32 2147483647, %v563
        %vm992 = vcmp.le.f32.partialorder %v991, 0.7853982
        %vm993 = vcmp.lt.s32.totalorder %v563, 0
        %v994 = vand.u32 %v563, 2139095040
        %v995 = vshrl.u32 %v994, 23
        %v996 = vsub.s32 %v995, 127
        %v997 = vand.u32 2147483647, %v563
        %v998 = vand.u32 %v997, 8388607
        %v999 = vor.u32 %v998, 8388608
        %v1000 = vsub.s32 0, %v999
        %v1001 = vadd.s32 %v996, 1
        %vm1002 = vcmp.gt.s32.totalorder %v1001, 0
        %v1003 = vsel %vm1002, %v1001, 0
        %v1004 = vshrl.u32 %v1003, 5
        %v1005 = vand.u32 %v1003, 31
        %v1006 = vsub.s32 32, %v1005
        %v1007 = vshrl.u32 683565275, %v1006
        %v1008 = vshll.u32 683565275, %v1005
        %v1009 = vshrl.u32 2475754826, %v1006
        %v1010 = vor.u32 %v1008, %v1009
        %v1011 = vshll.u32 2475754826, %v1005
        %v1012 = vshrl.u32 2131351028, %v1006
        %v1013 = vor.u32 %v1011, %v1012
        %v1014 = vshll.u32 2131351028, %v1005
        %v1015 = vshrl.u32 2102212464, %v1006
        %v1016 = vor.u32 %v1014, %v1015
        %v1017 = vshll.u32 2102212464, %v1005
        %v1018 = vshrl.u32 920167782, %v1006
        %v1019 = vor.u32 %v1017, %v1018
        %v1020 = vshll.u32 920167782, %v1005
        %v1021 = vshrl.u32 1326507024, %v1006
        %v1022 = vor.u32 %v1020, %v1021
        %vm1023 = vcmp.lt.s32.totalorder %v1004, 1
        %vm1024 = vcmp.lt.s32.totalorder %v1004, 2
        %vm1025 = vcmp.lt.s32.totalorder %v1004, 3
        %vm1026 = vcmp.lt.s32.totalorder %v1004, 4
        %v1027 = vsel %vm1023, %v1007, %v1010
        %v1028 = vsel %vm1026, %v1016, 2102212464
        %v1029 = vsel %vm1025, %v1013, %v1028
        %v1030 = vsel %vm1024, %v1027, %v1029
        %v1031 = vsel %vm1023, %v1010, %v1013
        %v1032 = vsel %vm1026, %v1019, 920167782
        %v1033 = vsel %vm1025, %v1016, %v1032
        %v1034 = vsel %vm1024, %v1031, %v1033
        %v1035 = vsel %vm1023, %v1013, %v1016
        %v1036 = vsel %vm1026, %v1022, 1326507024
        %v1037 = vsel %vm1025, %v1019, %v1036
        %v1038 = vsel %vm1024, %v1035, %v1037
        %v1039 = vshll.u32 %v999, 8
        %v1040 = vmul.u32.u64.compose %v1039, %v1038
        %v1041 = vextract.low.u32 %v1040
        %v1042 = vextract.high.u32 %v1040
        %v1043 = vmul.u32.u64.compose %v1039, %v1034
        %v1044 = vextract.low.u32 %v1043
        %v1045 = vextract.high.u32 %v1043
        %v1046 = vmul.u32 %v1039, %v1030
        %v1047 = vadd.s32 %v1042, %v1044
        %vm1048 = vc.u32 %v1042, %v1044
        %v1049 = vadd.s32 %v1045, 1
        %v1050 = vsel %vm1048, %v1049, %v1045
        %v1051 = vadd.s32 %v1046, %v1050
        %v1052 = vadd.s32 %v1051, 536870912
        %v1053 = vshrl.u32 %v1052, 30
        %v1054 = vshll.u32 %v1053, 30
        %v1055 = vsub.s32 %v1051, %v1054
        %vm1056 = vcmp.lt.s32.totalorder %v1055, 0
        %v1057 = vsub.s32 0, %v1055
        %v1058 = vsel %vm1056, %v1057, %v1055
        %v1059 = vclz %v1058
        %v1060 = vsub.s32 %v1059, 2
        %vm1061 = vcmp.gt.s32.totalorder 0, %v1060
        %v1062 = vsel %vm1061, 0, %v1060
        %v1063 = vsub.s32 32, %v1062
        %v1064 = vshll.u32 %v1055, %v1062
        %v1065 = vshrl.u32 %v1047, %v1063
        %v1066 = vor.u32 %v1064, %v1065
        %v1067 = vsub.s32 4294967266, %v1062
        %v1068 = vadd.s32 %v1067, 127
        %v1069 = vshll.u32 %v1068, 23
        %v1070 = vor.u32 4788187, %v1069
        %v1071 = vand.u32 2147483647, %v1070
        %v1073 = vcvt.s32.f32 %v1066
        %v1074 = vmul.f32 %v1073, %v1071
        %v1075 = vxor.u32 %v1074, 2147483648
        %v1076 = vsel %vm993, %v1075, %v1074
        %v1077 = vsub.s32 4, %v1053
        %v1078 = vsel %vm993, %v1077, %v1053
        %v1079 = vsel %vm992, %v563, %v1076
        %v1080 = vsel %vm992, 0, %v1078
        %v1081 = vcosq.f32.pop %v1079
        %v1082 = vsinq.f32.pop %v1079
        %vm1083 = vweird.f32 %v563
        %v1084 = vadd.s32 %v1080, 3
        %v1085 = vand.u32 %v1084, 3
        %vm1086 = vcmp.lt.s32.totalorder %v1085, 2
        %vm1087 = vcmp.eq.s32.totalorder %v1085, 0
        %v1088 = vxor.u32 %v1082, 2147483648
        %v1089 = vsel %vm1087, %v1081, %v1088
        %vm1090 = vcmp.eq.s32.totalorder %v1085, 2
        %v1091 = vxor.u32 %v1081, 2147483648
        %v1092 = vsel %vm1090, %v1091, %v1082
        %v1093 = vsel %vm1086, %v1089, %v1092
        %v1094 = vsel %vm1083, nan, %v1093
        %v1095 = vand.u32 2147483647, %v564
        %vm1096 = vcmp.le.f32.partialorder %v1095, 0.7853982
        %vm1097 = vcmp.lt.s32.totalorder %v564, 0
        %v1098 = vand.u32 %v564, 2139095040
        %v1099 = vshrl.u32 %v1098, 23
        %v1100 = vsub.s32 %v1099, 127
        %v1101 = vand.u32 2147483647, %v564
        %v1102 = vand.u32 %v1101, 8388607
        %v1103 = vor.u32 %v1102, 8388608
        %v1104 = vsub.s32 0, %v1103
        %v1105 = vadd.s32 %v1100, 1
        %vm1106 = vcmp.gt.s32.totalorder %v1105, 0
        %v1107 = vsel %vm1106, %v1105, 0
        %v1108 = vshrl.u32 %v1107, 5
        %v1109 = vand.u32 %v1107, 31
        %v1110 = vsub.s32 32, %v1109
        %v1111 = vshrl.u32 683565275, %v1110
        %v1112 = vshll.u32 683565275, %v1109
        %v1113 = vshrl.u32 2475754826, %v1110
        %v1114 = vor.u32 %v1112, %v1113
        %v1115 = vshll.u32 2475754826, %v1109
        %v1116 = vshrl.u32 2131351028, %v1110
        %v1117 = vor.u32 %v1115, %v1116
        %v1118 = vshll.u32 2131351028, %v1109
        %v1119 = vshrl.u32 2102212464, %v1110
        %v1120 = vor.u32 %v1118, %v1119
        %v1121 = vshll.u32 2102212464, %v1109
        %v1122 = vshrl.u32 920167782, %v1110
        %v1123 = vor.u32 %v1121, %v1122
        %v1124 = vshll.u32 920167782, %v1109
        %v1125 = vshrl.u32 1326507024, %v1110
        %v1126 = vor.u32 %v1124, %v1125
        %vm1127 = vcmp.lt.s32.totalorder %v1108, 1
        %vm1128 = vcmp.lt.s32.totalorder %v1108, 2
        %vm1129 = vcmp.lt.s32.totalorder %v1108, 3
        %vm1130 = vcmp.lt.s32.totalorder %v1108, 4
        %v1131 = vsel %vm1127, %v1111, %v1114
        %v1132 = vsel %vm1130, %v1120, 2102212464
        %v1133 = vsel %vm1129, %v1117, %v1132
        %v1134 = vsel %vm1128, %v1131, %v1133
        %v1135 = vsel %vm1127, %v1114, %v1117
        %v1136 = vsel %vm1130, %v1123, 920167782
        %v1137 = vsel %vm1129, %v1120, %v1136
        %v1138 = vsel %vm1128, %v1135, %v1137
        %v1139 = vsel %vm1127, %v1117, %v1120
        %v1140 = vsel %vm1130, %v1126, 1326507024
        %v1141 = vsel %vm1129, %v1123, %v1140
        %v1142 = vsel %vm1128, %v1139, %v1141
        %v1143 = vshll.u32 %v1103, 8
        %v1144 = vmul.u32.u64.compose %v1143, %v1142
        %v1145 = vextract.low.u32 %v1144
        %v1146 = vextract.high.u32 %v1144
        %v1147 = vmul.u32.u64.compose %v1143, %v1138
        %v1148 = vextract.low.u32 %v1147
        %v1149 = vextract.high.u32 %v1147
        %v1150 = vmul.u32 %v1143, %v1134
        %v1151 = vadd.s32 %v1146, %v1148
        %vm1152 = vc.u32 %v1146, %v1148
        %v1153 = vadd.s32 %v1149, 1
        %v1154 = vsel %vm1152, %v1153, %v1149
        %v1155 = vadd.s32 %v1150, %v1154
        %v1156 = vadd.s32 %v1155, 536870912
        %v1157 = vshrl.u32 %v1156, 30
        %v1158 = vshll.u32 %v1157, 30
        %v1159 = vsub.s32 %v1155, %v1158
        %vm1160 = vcmp.lt.s32.totalorder %v1159, 0
        %v1161 = vsub.s32 0, %v1159
        %v1162 = vsel %vm1160, %v1161, %v1159
        %v1163 = vclz %v1162
        %v1164 = vsub.s32 %v1163, 2
        %vm1165 = vcmp.gt.s32.totalorder 0, %v1164
        %v1166 = vsel %vm1165, 0, %v1164
        %v1167 = vsub.s32 32, %v1166
        %v1168 = vshll.u32 %v1159, %v1166
        %v1169 = vshrl.u32 %v1151, %v1167
        %v1170 = vor.u32 %v1168, %v1169
        %v1171 = vsub.s32 4294967266, %v1166
        %v1172 = vadd.s32 %v1171, 127
        %v1173 = vshll.u32 %v1172, 23
        %v1174 = vor.u32 4788187, %v1173
        %v1175 = vand.u32 2147483647, %v1174
        %v1177 = vcvt.s32.f32 %v1170
        %v1178 = vmul.f32 %v1177, %v1175
        %v1179 = vxor.u32 %v1178, 2147483648
        %v1180 = vsel %vm1097, %v1179, %v1178
        %v1181 = vsub.s32 4, %v1157
        %v1182 = vsel %vm1097, %v1181, %v1157
        %v1183 = vsel %vm1096, %v564, %v1180
        %v1184 = vsel %vm1096, 0, %v1182
        %v1185 = vcosq.f32.pop %v1183
        %v1186 = vsinq.f32.pop %v1183
        %vm1187 = vweird.f32 %v564
        %v1188 = vadd.s32 %v1184, 3
        %v1189 = vand.u32 %v1188, 3
        %vm1190 = vcmp.lt.s32.totalorder %v1189, 2
        %vm1191 = vcmp.eq.s32.totalorder %v1189, 0
        %v1192 = vxor.u32 %v1186, 2147483648
        %v1193 = vsel %vm1191, %v1185, %v1192
        %vm1194 = vcmp.eq.s32.totalorder %v1189, 2
        %v1195 = vxor.u32 %v1185, 2147483648
        %v1196 = vsel %vm1194, %v1195, %v1186
        %v1197 = vsel %vm1190, %v1193, %v1196
        %v1198 = vsel %vm1187, nan, %v1197
        %v1199 = vand.u32 2147483647, %v565
        %vm1200 = vcmp.le.f32.partialorder %v1199, 0.7853982
        %vm1201 = vcmp.lt.s32.totalorder %v565, 0
        %v1202 = vand.u32 %v565, 2139095040
        %v1203 = vshrl.u32 %v1202, 23
        %v1204 = vsub.s32 %v1203, 127
        %v1205 = vand.u32 2147483647, %v565
        %v1206 = vand.u32 %v1205, 8388607
        %v1207 = vor.u32 %v1206, 8388608
        %v1208 = vsub.s32 0, %v1207
        %v1209 = vadd.s32 %v1204, 1
        %vm1210 = vcmp.gt.s32.totalorder %v1209, 0
        %v1211 = vsel %vm1210, %v1209, 0
        %v1212 = vshrl.u32 %v1211, 5
        %v1213 = vand.u32 %v1211, 31
        %v1214 = vsub.s32 32, %v1213
        %v1215 = vshrl.u32 683565275, %v1214
        %v1216 = vshll.u32 683565275, %v1213
        %v1217 = vshrl.u32 2475754826, %v1214
        %v1218 = vor.u32 %v1216, %v1217
        %v1219 = vshll.u32 2475754826, %v1213
        %v1220 = vshrl.u32 2131351028, %v1214
        %v1221 = vor.u32 %v1219, %v1220
        %v1222 = vshll.u32 2131351028, %v1213
        %v1223 = vshrl.u32 2102212464, %v1214
        %v1224 = vor.u32 %v1222, %v1223
        %v1225 = vshll.u32 2102212464, %v1213
        %v1226 = vshrl.u32 920167782, %v1214
        %v1227 = vor.u32 %v1225, %v1226
        %v1228 = vshll.u32 920167782, %v1213
        %v1229 = vshrl.u32 1326507024, %v1214
        %v1230 = vor.u32 %v1228, %v1229
        %vm1231 = vcmp.lt.s32.totalorder %v1212, 1
        %vm1232 = vcmp.lt.s32.totalorder %v1212, 2
        %vm1233 = vcmp.lt.s32.totalorder %v1212, 3
        %vm1234 = vcmp.lt.s32.totalorder %v1212, 4
        %v1235 = vsel %vm1231, %v1215, %v1218
        %v1236 = vsel %vm1234, %v1224, 2102212464
        %v1237 = vsel %vm1233, %v1221, %v1236
        %v1238 = vsel %vm1232, %v1235, %v1237
        %v1239 = vsel %vm1231, %v1218, %v1221
        %v1240 = vsel %vm1234, %v1227, 920167782
        %v1241 = vsel %vm1233, %v1224, %v1240
        %v1242 = vsel %vm1232, %v1239, %v1241
        %v1243 = vsel %vm1231, %v1221, %v1224
        %v1244 = vsel %vm1234, %v1230, 1326507024
        %v1245 = vsel %vm1233, %v1227, %v1244
        %v1246 = vsel %vm1232, %v1243, %v1245
        %v1247 = vshll.u32 %v1207, 8
        %v1248 = vmul.u32.u64.compose %v1247, %v1246
        %v1249 = vextract.low.u32 %v1248
        %v1250 = vextract.high.u32 %v1248
        %v1251 = vmul.u32.u64.compose %v1247, %v1242
        %v1252 = vextract.low.u32 %v1251
        %v1253 = vextract.high.u32 %v1251
        %v1254 = vmul.u32 %v1247, %v1238
        %v1255 = vadd.s32 %v1250, %v1252
        %vm1256 = vc.u32 %v1250, %v1252
        %v1257 = vadd.s32 %v1253, 1
        %v1258 = vsel %vm1256, %v1257, %v1253
        %v1259 = vadd.s32 %v1254, %v1258
        %v1260 = vadd.s32 %v1259, 536870912
        %v1261 = vshrl.u32 %v1260, 30
        %v1262 = vshll.u32 %v1261, 30
        %v1263 = vsub.s32 %v1259, %v1262
        %vm1264 = vcmp.lt.s32.totalorder %v1263, 0
        %v1265 = vsub.s32 0, %v1263
        %v1266 = vsel %vm1264, %v1265, %v1263
        %v1267 = vclz %v1266
        %v1268 = vsub.s32 %v1267, 2
        %vm1269 = vcmp.gt.s32.totalorder 0, %v1268
        %v1270 = vsel %vm1269, 0, %v1268
        %v1271 = vsub.s32 32, %v1270
        %v1272 = vshll.u32 %v1263, %v1270
        %v1273 = vshrl.u32 %v1255, %v1271
        %v1274 = vor.u32 %v1272, %v1273
        %v1275 = vsub.s32 4294967266, %v1270
        %v1276 = vadd.s32 %v1275, 127
        %v1277 = vshll.u32 %v1276, 23
        %v1278 = vor.u32 4788187, %v1277
        %v1279 = vand.u32 2147483647, %v1278
        %v1281 = vcvt.s32.f32 %v1274
        %v1282 = vmul.f32 %v1281, %v1279
        %v1283 = vxor.u32 %v1282, 2147483648
        %v1284 = vsel %vm1201, %v1283, %v1282
        %v1285 = vsub.s32 4, %v1261
        %v1286 = vsel %vm1201, %v1285, %v1261
        %v1287 = vsel %vm1200, %v565, %v1284
        %v1288 = vsel %vm1200, 0, %v1286
        %v1289 = vcosq.f32.pop %v1287
        %v1290 = vsinq.f32.pop %v1287
        %vm1291 = vweird.f32 %v565
        %v1292 = vadd.s32 %v1288, 3
        %v1293 = vand.u32 %v1292, 3
        %vm1294 = vcmp.lt.s32.totalorder %v1293, 2
        %vm1295 = vcmp.eq.s32.totalorder %v1293, 0
        %v1296 = vxor.u32 %v1290, 2147483648
        %v1297 = vsel %vm1295, %v1289, %v1296
        %vm1298 = vcmp.eq.s32.totalorder %v1293, 2
        %v1299 = vxor.u32 %v1289, 2147483648
        %v1300 = vsel %vm1298, %v1299, %v1290
        %v1301 = vsel %vm1294, %v1297, %v1300
        %v1302 = vsel %vm1291, nan, %v1301
        %v1303 = vand.u32 2147483647, %v566
        %vm1304 = vcmp.le.f32.partialorder %v1303, 0.7853982
        %vm1305 = vcmp.lt.s32.totalorder %v566, 0
        %v1306 = vand.u32 %v566, 2139095040
        %v1307 = vshrl.u32 %v1306, 23
        %v1308 = vsub.s32 %v1307, 127
        %v1309 = vand.u32 2147483647, %v566
        %v1310 = vand.u32 %v1309, 8388607
        %v1311 = vor.u32 %v1310, 8388608
        %v1312 = vsub.s32 0, %v1311
        %v1313 = vadd.s32 %v1308, 1
        %vm1314 = vcmp.gt.s32.totalorder %v1313, 0
        %v1315 = vsel %vm1314, %v1313, 0
        %v1316 = vshrl.u32 %v1315, 5
        %v1317 = vand.u32 %v1315, 31
        %v1318 = vsub.s32 32, %v1317
        %v1319 = vshrl.u32 683565275, %v1318
        %v1320 = vshll.u32 683565275, %v1317
        %v1321 = vshrl.u32 2475754826, %v1318
        %v1322 = vor.u32 %v1320, %v1321
        %v1323 = vshll.u32 2475754826, %v1317
        %v1324 = vshrl.u32 2131351028, %v1318
        %v1325 = vor.u32 %v1323, %v1324
        %v1326 = vshll.u32 2131351028, %v1317
        %v1327 = vshrl.u32 2102212464, %v1318
        %v1328 = vor.u32 %v1326, %v1327
        %v1329 = vshll.u32 2102212464, %v1317
        %v1330 = vshrl.u32 920167782, %v1318
        %v1331 = vor.u32 %v1329, %v1330
        %v1332 = vshll.u32 920167782, %v1317
        %v1333 = vshrl.u32 1326507024, %v1318
        %v1334 = vor.u32 %v1332, %v1333
        %vm1335 = vcmp.lt.s32.totalorder %v1316, 1
        %vm1336 = vcmp.lt.s32.totalorder %v1316, 2
        %vm1337 = vcmp.lt.s32.totalorder %v1316, 3
        %vm1338 = vcmp.lt.s32.totalorder %v1316, 4
        %v1339 = vsel %vm1335, %v1319, %v1322
        %v1340 = vsel %vm1338, %v1328, 2102212464
        %v1341 = vsel %vm1337, %v1325, %v1340
        %v1342 = vsel %vm1336, %v1339, %v1341
        %v1343 = vsel %vm1335, %v1322, %v1325
        %v1344 = vsel %vm1338, %v1331, 920167782
        %v1345 = vsel %vm1337, %v1328, %v1344
        %v1346 = vsel %vm1336, %v1343, %v1345
        %v1347 = vsel %vm1335, %v1325, %v1328
        %v1348 = vsel %vm1338, %v1334, 1326507024
        %v1349 = vsel %vm1337, %v1331, %v1348
        %v1350 = vsel %vm1336, %v1347, %v1349
        %v1351 = vshll.u32 %v1311, 8
        %v1352 = vmul.u32.u64.compose %v1351, %v1350
        %v1353 = vextract.low.u32 %v1352
        %v1354 = vextract.high.u32 %v1352
        %v1355 = vmul.u32.u64.compose %v1351, %v1346
        %v1356 = vextract.low.u32 %v1355
        %v1357 = vextract.high.u32 %v1355
        %v1358 = vmul.u32 %v1351, %v1342
        %v1359 = vadd.s32 %v1354, %v1356
        %vm1360 = vc.u32 %v1354, %v1356
        %v1361 = vadd.s32 %v1357, 1
        %v1362 = vsel %vm1360, %v1361, %v1357
        %v1363 = vadd.s32 %v1358, %v1362
        %v1364 = vadd.s32 %v1363, 536870912
        %v1365 = vshrl.u32 %v1364, 30
        %v1366 = vshll.u32 %v1365, 30
        %v1367 = vsub.s32 %v1363, %v1366
        %vm1368 = vcmp.lt.s32.totalorder %v1367, 0
        %v1369 = vsub.s32 0, %v1367
        %v1370 = vsel %vm1368, %v1369, %v1367
        %v1371 = vclz %v1370
        %v1372 = vsub.s32 %v1371, 2
        %vm1373 = vcmp.gt.s32.totalorder 0, %v1372
        %v1374 = vsel %vm1373, 0, %v1372
        %v1375 = vsub.s32 32, %v1374
        %v1376 = vshll.u32 %v1367, %v1374
        %v1377 = vshrl.u32 %v1359, %v1375
        %v1378 = vor.u32 %v1376, %v1377
        %v1379 = vsub.s32 4294967266, %v1374
        %v1380 = vadd.s32 %v1379, 127
        %v1381 = vshll.u32 %v1380, 23
        %v1382 = vor.u32 4788187, %v1381
        %v1383 = vand.u32 2147483647, %v1382
        %v1385 = vcvt.s32.f32 %v1378
        %v1386 = vmul.f32 %v1385, %v1383
        %v1387 = vxor.u32 %v1386, 2147483648
        %v1388 = vsel %vm1305, %v1387, %v1386
        %v1389 = vsub.s32 4, %v1365
        %v1390 = vsel %vm1305, %v1389, %v1365
        %v1391 = vsel %vm1304, %v566, %v1388
        %v1392 = vsel %vm1304, 0, %v1390
        %v1393 = vcosq.f32.pop %v1391
        %v1394 = vsinq.f32.pop %v1391
        %vm1395 = vweird.f32 %v566
        %v1396 = vadd.s32 %v1392, 3
        %v1397 = vand.u32 %v1396, 3
        %vm1398 = vcmp.lt.s32.totalorder %v1397, 2
        %vm1399 = vcmp.eq.s32.totalorder %v1397, 0
        %v1400 = vxor.u32 %v1394, 2147483648
        %v1401 = vsel %vm1399, %v1393, %v1400
        %vm1402 = vcmp.eq.s32.totalorder %v1397, 2
        %v1403 = vxor.u32 %v1393, 2147483648
        %v1404 = vsel %vm1402, %v1403, %v1394
        %v1405 = vsel %vm1398, %v1401, %v1404
        %v1406 = vsel %vm1395, nan, %v1405
        %v1407 = vand.u32 2147483647, %v567
        %vm1408 = vcmp.le.f32.partialorder %v1407, 0.7853982
        %vm1409 = vcmp.lt.s32.totalorder %v567, 0
        %v1410 = vand.u32 %v567, 2139095040
        %v1411 = vshrl.u32 %v1410, 23
        %v1412 = vsub.s32 %v1411, 127
        %v1413 = vand.u32 2147483647, %v567
        %v1414 = vand.u32 %v1413, 8388607
        %v1415 = vor.u32 %v1414, 8388608
        %v1416 = vsub.s32 0, %v1415
        %v1417 = vadd.s32 %v1412, 1
        %vm1418 = vcmp.gt.s32.totalorder %v1417, 0
        %v1419 = vsel %vm1418, %v1417, 0
        %v1420 = vshrl.u32 %v1419, 5
        %v1421 = vand.u32 %v1419, 31
        %v1422 = vsub.s32 32, %v1421
        %v1423 = vshrl.u32 683565275, %v1422
        %v1424 = vshll.u32 683565275, %v1421
        %v1425 = vshrl.u32 2475754826, %v1422
        %v1426 = vor.u32 %v1424, %v1425
        %v1427 = vshll.u32 2475754826, %v1421
        %v1428 = vshrl.u32 2131351028, %v1422
        %v1429 = vor.u32 %v1427, %v1428
        %v1430 = vshll.u32 2131351028, %v1421
        %v1431 = vshrl.u32 2102212464, %v1422
        %v1432 = vor.u32 %v1430, %v1431
        %v1433 = vshll.u32 2102212464, %v1421
        %v1434 = vshrl.u32 920167782, %v1422
        %v1435 = vor.u32 %v1433, %v1434
        %v1436 = vshll.u32 920167782, %v1421
        %v1437 = vshrl.u32 1326507024, %v1422
        %v1438 = vor.u32 %v1436, %v1437
        %vm1439 = vcmp.lt.s32.totalorder %v1420, 1
        %vm1440 = vcmp.lt.s32.totalorder %v1420, 2
        %vm1441 = vcmp.lt.s32.totalorder %v1420, 3
        %vm1442 = vcmp.lt.s32.totalorder %v1420, 4
        %v1443 = vsel %vm1439, %v1423, %v1426
        %v1444 = vsel %vm1442, %v1432, 2102212464
        %v1445 = vsel %vm1441, %v1429, %v1444
        %v1446 = vsel %vm1440, %v1443, %v1445
        %v1447 = vsel %vm1439, %v1426, %v1429
        %v1448 = vsel %vm1442, %v1435, 920167782
        %v1449 = vsel %vm1441, %v1432, %v1448
        %v1450 = vsel %vm1440, %v1447, %v1449
        %v1451 = vsel %vm1439, %v1429, %v1432
        %v1452 = vsel %vm1442, %v1438, 1326507024
        %v1453 = vsel %vm1441, %v1435, %v1452
        %v1454 = vsel %vm1440, %v1451, %v1453
        %v1455 = vshll.u32 %v1415, 8
        %v1456 = vmul.u32.u64.compose %v1455, %v1454
        %v1457 = vextract.low.u32 %v1456
        %v1458 = vextract.high.u32 %v1456
        %v1459 = vmul.u32.u64.compose %v1455, %v1450
        %v1460 = vextract.low.u32 %v1459
        %v1461 = vextract.high.u32 %v1459
        %v1462 = vmul.u32 %v1455, %v1446
        %v1463 = vadd.s32 %v1458, %v1460
        %vm1464 = vc.u32 %v1458, %v1460
        %v1465 = vadd.s32 %v1461, 1
        %v1466 = vsel %vm1464, %v1465, %v1461
        %v1467 = vadd.s32 %v1462, %v1466
        %v1468 = vadd.s32 %v1467, 536870912
        %v1469 = vshrl.u32 %v1468, 30
        %v1470 = vshll.u32 %v1469, 30
        %v1471 = vsub.s32 %v1467, %v1470
        %vm1472 = vcmp.lt.s32.totalorder %v1471, 0
        %v1473 = vsub.s32 0, %v1471
        %v1474 = vsel %vm1472, %v1473, %v1471
        %v1475 = vclz %v1474
        %v1476 = vsub.s32 %v1475, 2
        %vm1477 = vcmp.gt.s32.totalorder 0, %v1476
        %v1478 = vsel %vm1477, 0, %v1476
        %v1479 = vsub.s32 32, %v1478
        %v1480 = vshll.u32 %v1471, %v1478
        %v1481 = vshrl.u32 %v1463, %v1479
        %v1482 = vor.u32 %v1480, %v1481
        %v1483 = vsub.s32 4294967266, %v1478
        %v1484 = vadd.s32 %v1483, 127
        %v1485 = vshll.u32 %v1484, 23
        %v1486 = vor.u32 4788187, %v1485
        %v1487 = vand.u32 2147483647, %v1486
        %v1489 = vcvt.s32.f32 %v1482
        %v1490 = vmul.f32 %v1489, %v1487
        %v1491 = vxor.u32 %v1490, 2147483648
        %v1492 = vsel %vm1409, %v1491, %v1490
        %v1493 = vsub.s32 4, %v1469
        %v1494 = vsel %vm1409, %v1493, %v1469
        %v1495 = vsel %vm1408, %v567, %v1492
        %v1496 = vsel %vm1408, 0, %v1494
        %v1497 = vcosq.f32.pop %v1495
        %v1498 = vsinq.f32.pop %v1495
        %vm1499 = vweird.f32 %v567
        %v1500 = vadd.s32 %v1496, 3
        %v1501 = vand.u32 %v1500, 3
        %vm1502 = vcmp.lt.s32.totalorder %v1501, 2
        %vm1503 = vcmp.eq.s32.totalorder %v1501, 0
        %v1504 = vxor.u32 %v1498, 2147483648
        %v1505 = vsel %vm1503, %v1497, %v1504
        %vm1506 = vcmp.eq.s32.totalorder %v1501, 2
        %v1507 = vxor.u32 %v1497, 2147483648
        %v1508 = vsel %vm1506, %v1507, %v1498
        %v1509 = vsel %vm1502, %v1505, %v1508
        %v1510 = vsel %vm1499, nan, %v1509
        %v1511 = vand.u32 2147483647, %v568
        %vm1512 = vcmp.le.f32.partialorder %v1511, 0.7853982
        %vm1513 = vcmp.lt.s32.totalorder %v568, 0
        %v1514 = vand.u32 %v568, 2139095040
        %v1515 = vshrl.u32 %v1514, 23
        %v1516 = vsub.s32 %v1515, 127
        %v1517 = vand.u32 2147483647, %v568
        %v1518 = vand.u32 %v1517, 8388607
        %v1519 = vor.u32 %v1518, 8388608
        %v1520 = vsub.s32 0, %v1519
        %v1521 = vadd.s32 %v1516, 1
        %vm1522 = vcmp.gt.s32.totalorder %v1521, 0
        %v1523 = vsel %vm1522, %v1521, 0
        %v1524 = vshrl.u32 %v1523, 5
        %v1525 = vand.u32 %v1523, 31
        %v1526 = vsub.s32 32, %v1525
        %v1527 = vshrl.u32 683565275, %v1526
        %v1528 = vshll.u32 683565275, %v1525
        %v1529 = vshrl.u32 2475754826, %v1526
        %v1530 = vor.u32 %v1528, %v1529
        %v1531 = vshll.u32 2475754826, %v1525
        %v1532 = vshrl.u32 2131351028, %v1526
        %v1533 = vor.u32 %v1531, %v1532
        %v1534 = vshll.u32 2131351028, %v1525
        %v1535 = vshrl.u32 2102212464, %v1526
        %v1536 = vor.u32 %v1534, %v1535
        %v1537 = vshll.u32 2102212464, %v1525
        %v1538 = vshrl.u32 920167782, %v1526
        %v1539 = vor.u32 %v1537, %v1538
        %v1540 = vshll.u32 920167782, %v1525
        %v1541 = vshrl.u32 1326507024, %v1526
        %v1542 = vor.u32 %v1540, %v1541
        %vm1543 = vcmp.lt.s32.totalorder %v1524, 1
        %vm1544 = vcmp.lt.s32.totalorder %v1524, 2
        %vm1545 = vcmp.lt.s32.totalorder %v1524, 3
        %vm1546 = vcmp.lt.s32.totalorder %v1524, 4
        %v1547 = vsel %vm1543, %v1527, %v1530
        %v1548 = vsel %vm1546, %v1536, 2102212464
        %v1549 = vsel %vm1545, %v1533, %v1548
        %v1550 = vsel %vm1544, %v1547, %v1549
        %v1551 = vsel %vm1543, %v1530, %v1533
        %v1552 = vsel %vm1546, %v1539, 920167782
        %v1553 = vsel %vm1545, %v1536, %v1552
        %v1554 = vsel %vm1544, %v1551, %v1553
        %v1555 = vsel %vm1543, %v1533, %v1536
        %v1556 = vsel %vm1546, %v1542, 1326507024
        %v1557 = vsel %vm1545, %v1539, %v1556
        %v1558 = vsel %vm1544, %v1555, %v1557
        %v1559 = vshll.u32 %v1519, 8
        %v1560 = vmul.u32.u64.compose %v1559, %v1558
        %v1561 = vextract.low.u32 %v1560
        %v1562 = vextract.high.u32 %v1560
        %v1563 = vmul.u32.u64.compose %v1559, %v1554
        %v1564 = vextract.low.u32 %v1563
        %v1565 = vextract.high.u32 %v1563
        %v1566 = vmul.u32 %v1559, %v1550
        %v1567 = vadd.s32 %v1562, %v1564
        %vm1568 = vc.u32 %v1562, %v1564
        %v1569 = vadd.s32 %v1565, 1
        %v1570 = vsel %vm1568, %v1569, %v1565
        %v1571 = vadd.s32 %v1566, %v1570
        %v1572 = vadd.s32 %v1571, 536870912
        %v1573 = vshrl.u32 %v1572, 30
        %v1574 = vshll.u32 %v1573, 30
        %v1575 = vsub.s32 %v1571, %v1574
        %vm1576 = vcmp.lt.s32.totalorder %v1575, 0
        %v1577 = vsub.s32 0, %v1575
        %v1578 = vsel %vm1576, %v1577, %v1575
        %v1579 = vclz %v1578
        %v1580 = vsub.s32 %v1579, 2
        %vm1581 = vcmp.gt.s32.totalorder 0, %v1580
        %v1582 = vsel %vm1581, 0, %v1580
        %v1583 = vsub.s32 32, %v1582
        %v1584 = vshll.u32 %v1575, %v1582
        %v1585 = vshrl.u32 %v1567, %v1583
        %v1586 = vor.u32 %v1584, %v1585
        %v1587 = vsub.s32 4294967266, %v1582
        %v1588 = vadd.s32 %v1587, 127
        %v1589 = vshll.u32 %v1588, 23
        %v1590 = vor.u32 4788187, %v1589
        %v1591 = vand.u32 2147483647, %v1590
        %v1593 = vcvt.s32.f32 %v1586
        %v1594 = vmul.f32 %v1593, %v1591
        %v1595 = vxor.u32 %v1594, 2147483648
        %v1596 = vsel %vm1513, %v1595, %v1594
        %v1597 = vsub.s32 4, %v1573
        %v1598 = vsel %vm1513, %v1597, %v1573
        %v1599 = vsel %vm1512, %v568, %v1596
        %v1600 = vsel %vm1512, 0, %v1598
        %v1601 = vcosq.f32.pop %v1599
        %v1602 = vsinq.f32.pop %v1599
        %vm1603 = vweird.f32 %v568
        %v1604 = vadd.s32 %v1600, 3
        %v1605 = vand.u32 %v1604, 3
        %vm1606 = vcmp.lt.s32.totalorder %v1605, 2
        %vm1607 = vcmp.eq.s32.totalorder %v1605, 0
        %v1608 = vxor.u32 %v1602, 2147483648
        %v1609 = vsel %vm1607, %v1601, %v1608
        %vm1610 = vcmp.eq.s32.totalorder %v1605, 2
        %v1611 = vxor.u32 %v1601, 2147483648
        %v1612 = vsel %vm1610, %v1611, %v1602
        %v1613 = vsel %vm1606, %v1609, %v1612
        %v1614 = vsel %vm1603, nan, %v1613
        %v1615 = vand.u32 2147483647, %v569
        %vm1616 = vcmp.le.f32.partialorder %v1615, 0.7853982
        %vm1617 = vcmp.lt.s32.totalorder %v569, 0
        %v1618 = vand.u32 %v569, 2139095040
        %v1619 = vshrl.u32 %v1618, 23
        %v1620 = vsub.s32 %v1619, 127
        %v1621 = vand.u32 2147483647, %v569
        %v1622 = vand.u32 %v1621, 8388607
        %v1623 = vor.u32 %v1622, 8388608
        %v1624 = vsub.s32 0, %v1623
        %v1625 = vadd.s32 %v1620, 1
        %vm1626 = vcmp.gt.s32.totalorder %v1625, 0
        %v1627 = vsel %vm1626, %v1625, 0
        %v1628 = vshrl.u32 %v1627, 5
        %v1629 = vand.u32 %v1627, 31
        %v1630 = vsub.s32 32, %v1629
        %v1631 = vshrl.u32 683565275, %v1630
        %v1632 = vshll.u32 683565275, %v1629
        %v1633 = vshrl.u32 2475754826, %v1630
        %v1634 = vor.u32 %v1632, %v1633
        %v1635 = vshll.u32 2475754826, %v1629
        %v1636 = vshrl.u32 2131351028, %v1630
        %v1637 = vor.u32 %v1635, %v1636
        %v1638 = vshll.u32 2131351028, %v1629
        %v1639 = vshrl.u32 2102212464, %v1630
        %v1640 = vor.u32 %v1638, %v1639
        %v1641 = vshll.u32 2102212464, %v1629
        %v1642 = vshrl.u32 920167782, %v1630
        %v1643 = vor.u32 %v1641, %v1642
        %v1644 = vshll.u32 920167782, %v1629
        %v1645 = vshrl.u32 1326507024, %v1630
        %v1646 = vor.u32 %v1644, %v1645
        %vm1647 = vcmp.lt.s32.totalorder %v1628, 1
        %vm1648 = vcmp.lt.s32.totalorder %v1628, 2
        %vm1649 = vcmp.lt.s32.totalorder %v1628, 3
        %vm1650 = vcmp.lt.s32.totalorder %v1628, 4
        %v1651 = vsel %vm1647, %v1631, %v1634
        %v1652 = vsel %vm1650, %v1640, 2102212464
        %v1653 = vsel %vm1649, %v1637, %v1652
        %v1654 = vsel %vm1648, %v1651, %v1653
        %v1655 = vsel %vm1647, %v1634, %v1637
        %v1656 = vsel %vm1650, %v1643, 920167782
        %v1657 = vsel %vm1649, %v1640, %v1656
        %v1658 = vsel %vm1648, %v1655, %v1657
        %v1659 = vsel %vm1647, %v1637, %v1640
        %v1660 = vsel %vm1650, %v1646, 1326507024
        %v1661 = vsel %vm1649, %v1643, %v1660
        %v1662 = vsel %vm1648, %v1659, %v1661
        %v1663 = vshll.u32 %v1623, 8
        %v1664 = vmul.u32.u64.compose %v1663, %v1662
        %v1665 = vextract.low.u32 %v1664
        %v1666 = vextract.high.u32 %v1664
        %v1667 = vmul.u32.u64.compose %v1663, %v1658
        %v1668 = vextract.low.u32 %v1667
        %v1669 = vextract.high.u32 %v1667
        %v1670 = vmul.u32 %v1663, %v1654
        %v1671 = vadd.s32 %v1666, %v1668
        %vm1672 = vc.u32 %v1666, %v1668
        %v1673 = vadd.s32 %v1669, 1
        %v1674 = vsel %vm1672, %v1673, %v1669
        %v1675 = vadd.s32 %v1670, %v1674
        %v1676 = vadd.s32 %v1675, 536870912
        %v1677 = vshrl.u32 %v1676, 30
        %v1678 = vshll.u32 %v1677, 30
        %v1679 = vsub.s32 %v1675, %v1678
        %vm1680 = vcmp.lt.s32.totalorder %v1679, 0
        %v1681 = vsub.s32 0, %v1679
        %v1682 = vsel %vm1680, %v1681, %v1679
        %v1683 = vclz %v1682
        %v1684 = vsub.s32 %v1683, 2
        %vm1685 = vcmp.gt.s32.totalorder 0, %v1684
        %v1686 = vsel %vm1685, 0, %v1684
        %v1687 = vsub.s32 32, %v1686
        %v1688 = vshll.u32 %v1679, %v1686
        %v1689 = vshrl.u32 %v1671, %v1687
        %v1690 = vor.u32 %v1688, %v1689
        %v1691 = vsub.s32 4294967266, %v1686
        %v1692 = vadd.s32 %v1691, 127
        %v1693 = vshll.u32 %v1692, 23
        %v1694 = vor.u32 4788187, %v1693
        %v1695 = vand.u32 2147483647, %v1694
        %v1697 = vcvt.s32.f32 %v1690
        %v1698 = vmul.f32 %v1697, %v1695
        %v1699 = vxor.u32 %v1698, 2147483648
        %v1700 = vsel %vm1617, %v1699, %v1698
        %v1701 = vsub.s32 4, %v1677
        %v1702 = vsel %vm1617, %v1701, %v1677
        %v1703 = vsel %vm1616, %v569, %v1700
        %v1704 = vsel %vm1616, 0, %v1702
        %v1705 = vcosq.f32.pop %v1703
        %v1706 = vsinq.f32.pop %v1703
        %vm1707 = vweird.f32 %v569
        %v1708 = vadd.s32 %v1704, 3
        %v1709 = vand.u32 %v1708, 3
        %vm1710 = vcmp.lt.s32.totalorder %v1709, 2
        %vm1711 = vcmp.eq.s32.totalorder %v1709, 0
        %v1712 = vxor.u32 %v1706, 2147483648
        %v1713 = vsel %vm1711, %v1705, %v1712
        %vm1714 = vcmp.eq.s32.totalorder %v1709, 2
        %v1715 = vxor.u32 %v1705, 2147483648
        %v1716 = vsel %vm1714, %v1715, %v1706
        %v1717 = vsel %vm1710, %v1713, %v1716
        %v1718 = vsel %vm1707, nan, %v1717
        %v1719 = vand.u32 2147483647, %v570
        %vm1720 = vcmp.le.f32.partialorder %v1719, 0.7853982
        %vm1721 = vcmp.lt.s32.totalorder %v570, 0
        %v1722 = vand.u32 %v570, 2139095040
        %v1723 = vshrl.u32 %v1722, 23
        %v1724 = vsub.s32 %v1723, 127
        %v1725 = vand.u32 2147483647, %v570
        %v1726 = vand.u32 %v1725, 8388607
        %v1727 = vor.u32 %v1726, 8388608
        %v1728 = vsub.s32 0, %v1727
        %v1729 = vadd.s32 %v1724, 1
        %vm1730 = vcmp.gt.s32.totalorder %v1729, 0
        %v1731 = vsel %vm1730, %v1729, 0
        %v1732 = vshrl.u32 %v1731, 5
        %v1733 = vand.u32 %v1731, 31
        %v1734 = vsub.s32 32, %v1733
        %v1735 = vshrl.u32 683565275, %v1734
        %v1736 = vshll.u32 683565275, %v1733
        %v1737 = vshrl.u32 2475754826, %v1734
        %v1738 = vor.u32 %v1736, %v1737
        %v1739 = vshll.u32 2475754826, %v1733
        %v1740 = vshrl.u32 2131351028, %v1734
        %v1741 = vor.u32 %v1739, %v1740
        %v1742 = vshll.u32 2131351028, %v1733
        %v1743 = vshrl.u32 2102212464, %v1734
        %v1744 = vor.u32 %v1742, %v1743
        %v1745 = vshll.u32 2102212464, %v1733
        %v1746 = vshrl.u32 920167782, %v1734
        %v1747 = vor.u32 %v1745, %v1746
        %v1748 = vshll.u32 920167782, %v1733
        %v1749 = vshrl.u32 1326507024, %v1734
        %v1750 = vor.u32 %v1748, %v1749
        %vm1751 = vcmp.lt.s32.totalorder %v1732, 1
        %vm1752 = vcmp.lt.s32.totalorder %v1732, 2
        %vm1753 = vcmp.lt.s32.totalorder %v1732, 3
        %vm1754 = vcmp.lt.s32.totalorder %v1732, 4
        %v1755 = vsel %vm1751, %v1735, %v1738
        %v1756 = vsel %vm1754, %v1744, 2102212464
        %v1757 = vsel %vm1753, %v1741, %v1756
        %v1758 = vsel %vm1752, %v1755, %v1757
        %v1759 = vsel %vm1751, %v1738, %v1741
        %v1760 = vsel %vm1754, %v1747, 920167782
        %v1761 = vsel %vm1753, %v1744, %v1760
        %v1762 = vsel %vm1752, %v1759, %v1761
        %v1763 = vsel %vm1751, %v1741, %v1744
        %v1764 = vsel %vm1754, %v1750, 1326507024
        %v1765 = vsel %vm1753, %v1747, %v1764
        %v1766 = vsel %vm1752, %v1763, %v1765
        %v1767 = vshll.u32 %v1727, 8
        %v1768 = vmul.u32.u64.compose %v1767, %v1766
        %v1769 = vextract.low.u32 %v1768
        %v1770 = vextract.high.u32 %v1768
        %v1771 = vmul.u32.u64.compose %v1767, %v1762
        %v1772 = vextract.low.u32 %v1771
        %v1773 = vextract.high.u32 %v1771
        %v1774 = vmul.u32 %v1767, %v1758
        %v1775 = vadd.s32 %v1770, %v1772
        %vm1776 = vc.u32 %v1770, %v1772
        %v1777 = vadd.s32 %v1773, 1
        %v1778 = vsel %vm1776, %v1777, %v1773
        %v1779 = vadd.s32 %v1774, %v1778
        %v1780 = vadd.s32 %v1779, 536870912
        %v1781 = vshrl.u32 %v1780, 30
        %v1782 = vshll.u32 %v1781, 30
        %v1783 = vsub.s32 %v1779, %v1782
        %vm1784 = vcmp.lt.s32.totalorder %v1783, 0
        %v1785 = vsub.s32 0, %v1783
        %v1786 = vsel %vm1784, %v1785, %v1783
        %v1787 = vclz %v1786
        %v1788 = vsub.s32 %v1787, 2
        %vm1789 = vcmp.gt.s32.totalorder 0, %v1788
        %v1790 = vsel %vm1789, 0, %v1788
        %v1791 = vsub.s32 32, %v1790
        %v1792 = vshll.u32 %v1783, %v1790
        %v1793 = vshrl.u32 %v1775, %v1791
        %v1794 = vor.u32 %v1792, %v1793
        %v1795 = vsub.s32 4294967266, %v1790
        %v1796 = vadd.s32 %v1795, 127
        %v1797 = vshll.u32 %v1796, 23
        %v1798 = vor.u32 4788187, %v1797
        %v1799 = vand.u32 2147483647, %v1798
        %v1801 = vcvt.s32.f32 %v1794
        %v1802 = vmul.f32 %v1801, %v1799
        %v1803 = vxor.u32 %v1802, 2147483648
        %v1804 = vsel %vm1721, %v1803, %v1802
        %v1805 = vsub.s32 4, %v1781
        %v1806 = vsel %vm1721, %v1805, %v1781
        %v1807 = vsel %vm1720, %v570, %v1804
        %v1808 = vsel %vm1720, 0, %v1806
        %v1809 = vcosq.f32.pop %v1807
        %v1810 = vsinq.f32.pop %v1807
        %vm1811 = vweird.f32 %v570
        %v1812 = vadd.s32 %v1808, 3
        %v1813 = vand.u32 %v1812, 3
        %vm1814 = vcmp.lt.s32.totalorder %v1813, 2
        %vm1815 = vcmp.eq.s32.totalorder %v1813, 0
        %v1816 = vxor.u32 %v1810, 2147483648
        %v1817 = vsel %vm1815, %v1809, %v1816
        %vm1818 = vcmp.eq.s32.totalorder %v1813, 2
        %v1819 = vxor.u32 %v1809, 2147483648
        %v1820 = vsel %vm1818, %v1819, %v1810
        %v1821 = vsel %vm1814, %v1817, %v1820
        %v1822 = vsel %vm1811, nan, %v1821
        %v1823 = vand.u32 2147483647, %v571
        %vm1824 = vcmp.le.f32.partialorder %v1823, 0.7853982
        %vm1825 = vcmp.lt.s32.totalorder %v571, 0
        %v1826 = vand.u32 %v571, 2139095040
        %v1827 = vshrl.u32 %v1826, 23
        %v1828 = vsub.s32 %v1827, 127
        %v1829 = vand.u32 2147483647, %v571
        %v1830 = vand.u32 %v1829, 8388607
        %v1831 = vor.u32 %v1830, 8388608
        %v1832 = vsub.s32 0, %v1831
        %v1833 = vadd.s32 %v1828, 1
        %vm1834 = vcmp.gt.s32.totalorder %v1833, 0
        %v1835 = vsel %vm1834, %v1833, 0
        %v1836 = vshrl.u32 %v1835, 5
        %v1837 = vand.u32 %v1835, 31
        %v1838 = vsub.s32 32, %v1837
        %v1839 = vshrl.u32 683565275, %v1838
        %v1840 = vshll.u32 683565275, %v1837
        %v1841 = vshrl.u32 2475754826, %v1838
        %v1842 = vor.u32 %v1840, %v1841
        %v1843 = vshll.u32 2475754826, %v1837
        %v1844 = vshrl.u32 2131351028, %v1838
        %v1845 = vor.u32 %v1843, %v1844
        %v1846 = vshll.u32 2131351028, %v1837
        %v1847 = vshrl.u32 2102212464, %v1838
        %v1848 = vor.u32 %v1846, %v1847
        %v1849 = vshll.u32 2102212464, %v1837
        %v1850 = vshrl.u32 920167782, %v1838
        %v1851 = vor.u32 %v1849, %v1850
        %v1852 = vshll.u32 920167782, %v1837
        %v1853 = vshrl.u32 1326507024, %v1838
        %v1854 = vor.u32 %v1852, %v1853
        %vm1855 = vcmp.lt.s32.totalorder %v1836, 1
        %vm1856 = vcmp.lt.s32.totalorder %v1836, 2
        %vm1857 = vcmp.lt.s32.totalorder %v1836, 3
        %vm1858 = vcmp.lt.s32.totalorder %v1836, 4
        %v1859 = vsel %vm1855, %v1839, %v1842
        %v1860 = vsel %vm1858, %v1848, 2102212464
        %v1861 = vsel %vm1857, %v1845, %v1860
        %v1862 = vsel %vm1856, %v1859, %v1861
        %v1863 = vsel %vm1855, %v1842, %v1845
        %v1864 = vsel %vm1858, %v1851, 920167782
        %v1865 = vsel %vm1857, %v1848, %v1864
        %v1866 = vsel %vm1856, %v1863, %v1865
        %v1867 = vsel %vm1855, %v1845, %v1848
        %v1868 = vsel %vm1858, %v1854, 1326507024
        %v1869 = vsel %vm1857, %v1851, %v1868
        %v1870 = vsel %vm1856, %v1867, %v1869
        %v1871 = vshll.u32 %v1831, 8
        %v1872 = vmul.u32.u64.compose %v1871, %v1870
        %v1873 = vextract.low.u32 %v1872
        %v1874 = vextract.high.u32 %v1872
        %v1875 = vmul.u32.u64.compose %v1871, %v1866
        %v1876 = vextract.low.u32 %v1875
        %v1877 = vextract.high.u32 %v1875
        %v1878 = vmul.u32 %v1871, %v1862
        %v1879 = vadd.s32 %v1874, %v1876
        %vm1880 = vc.u32 %v1874, %v1876
        %v1881 = vadd.s32 %v1877, 1
        %v1882 = vsel %vm1880, %v1881, %v1877
        %v1883 = vadd.s32 %v1878, %v1882
        %v1884 = vadd.s32 %v1883, 536870912
        %v1885 = vshrl.u32 %v1884, 30
        %v1886 = vshll.u32 %v1885, 30
        %v1887 = vsub.s32 %v1883, %v1886
        %vm1888 = vcmp.lt.s32.totalorder %v1887, 0
        %v1889 = vsub.s32 0, %v1887
        %v1890 = vsel %vm1888, %v1889, %v1887
        %v1891 = vclz %v1890
        %v1892 = vsub.s32 %v1891, 2
        %vm1893 = vcmp.gt.s32.totalorder 0, %v1892
        %v1894 = vsel %vm1893, 0, %v1892
        %v1895 = vsub.s32 32, %v1894
        %v1896 = vshll.u32 %v1887, %v1894
        %v1897 = vshrl.u32 %v1879, %v1895
        %v1898 = vor.u32 %v1896, %v1897
        %v1899 = vsub.s32 4294967266, %v1894
        %v1900 = vadd.s32 %v1899, 127
        %v1901 = vshll.u32 %v1900, 23
        %v1902 = vor.u32 4788187, %v1901
        %v1903 = vand.u32 2147483647, %v1902
        %v1905 = vcvt.s32.f32 %v1898
        %v1906 = vmul.f32 %v1905, %v1903
        %v1907 = vxor.u32 %v1906, 2147483648
        %v1908 = vsel %vm1825, %v1907, %v1906
        %v1909 = vsub.s32 4, %v1885
        %v1910 = vsel %vm1825, %v1909, %v1885
        %v1911 = vsel %vm1824, %v571, %v1908
        %v1912 = vsel %vm1824, 0, %v1910
        %v1913 = vcosq.f32.pop %v1911
        %v1914 = vsinq.f32.pop %v1911
        %vm1915 = vweird.f32 %v571
        %v1916 = vadd.s32 %v1912, 3
        %v1917 = vand.u32 %v1916, 3
        %vm1918 = vcmp.lt.s32.totalorder %v1917, 2
        %vm1919 = vcmp.eq.s32.totalorder %v1917, 0
        %v1920 = vxor.u32 %v1914, 2147483648
        %v1921 = vsel %vm1919, %v1913, %v1920
        %vm1922 = vcmp.eq.s32.totalorder %v1917, 2
        %v1923 = vxor.u32 %v1913, 2147483648
        %v1924 = vsel %vm1922, %v1923, %v1914
        %v1925 = vsel %vm1918, %v1921, %v1924
        %v1926 = vsel %vm1915, nan, %v1925
        %v1927 = vand.u32 2147483647, %v572
        %vm1928 = vcmp.le.f32.partialorder %v1927, 0.7853982
        %vm1929 = vcmp.lt.s32.totalorder %v572, 0
        %v1930 = vand.u32 %v572, 2139095040
        %v1931 = vshrl.u32 %v1930, 23
        %v1932 = vsub.s32 %v1931, 127
        %v1933 = vand.u32 2147483647, %v572
        %v1934 = vand.u32 %v1933, 8388607
        %v1935 = vor.u32 %v1934, 8388608
        %v1936 = vsub.s32 0, %v1935
        %v1937 = vadd.s32 %v1932, 1
        %vm1938 = vcmp.gt.s32.totalorder %v1937, 0
        %v1939 = vsel %vm1938, %v1937, 0
        %v1940 = vshrl.u32 %v1939, 5
        %v1941 = vand.u32 %v1939, 31
        %v1942 = vsub.s32 32, %v1941
        %v1943 = vshrl.u32 683565275, %v1942
        %v1944 = vshll.u32 683565275, %v1941
        %v1945 = vshrl.u32 2475754826, %v1942
        %v1946 = vor.u32 %v1944, %v1945
        %v1947 = vshll.u32 2475754826, %v1941
        %v1948 = vshrl.u32 2131351028, %v1942
        %v1949 = vor.u32 %v1947, %v1948
        %v1950 = vshll.u32 2131351028, %v1941
        %v1951 = vshrl.u32 2102212464, %v1942
        %v1952 = vor.u32 %v1950, %v1951
        %v1953 = vshll.u32 2102212464, %v1941
        %v1954 = vshrl.u32 920167782, %v1942
        %v1955 = vor.u32 %v1953, %v1954
        %v1956 = vshll.u32 920167782, %v1941
        %v1957 = vshrl.u32 1326507024, %v1942
        %v1958 = vor.u32 %v1956, %v1957
        %vm1959 = vcmp.lt.s32.totalorder %v1940, 1
        %vm1960 = vcmp.lt.s32.totalorder %v1940, 2
        %vm1961 = vcmp.lt.s32.totalorder %v1940, 3
        %vm1962 = vcmp.lt.s32.totalorder %v1940, 4
        %v1963 = vsel %vm1959, %v1943, %v1946
        %v1964 = vsel %vm1962, %v1952, 2102212464
        %v1965 = vsel %vm1961, %v1949, %v1964
        %v1966 = vsel %vm1960, %v1963, %v1965
        %v1967 = vsel %vm1959, %v1946, %v1949
        %v1968 = vsel %vm1962, %v1955, 920167782
        %v1969 = vsel %vm1961, %v1952, %v1968
        %v1970 = vsel %vm1960, %v1967, %v1969
        %v1971 = vsel %vm1959, %v1949, %v1952
        %v1972 = vsel %vm1962, %v1958, 1326507024
        %v1973 = vsel %vm1961, %v1955, %v1972
        %v1974 = vsel %vm1960, %v1971, %v1973
        %v1975 = vshll.u32 %v1935, 8
        %v1976 = vmul.u32.u64.compose %v1975, %v1974
        %v1977 = vextract.low.u32 %v1976
        %v1978 = vextract.high.u32 %v1976
        %v1979 = vmul.u32.u64.compose %v1975, %v1970
        %v1980 = vextract.low.u32 %v1979
        %v1981 = vextract.high.u32 %v1979
        %v1982 = vmul.u32 %v1975, %v1966
        %v1983 = vadd.s32 %v1978, %v1980
        %vm1984 = vc.u32 %v1978, %v1980
        %v1985 = vadd.s32 %v1981, 1
        %v1986 = vsel %vm1984, %v1985, %v1981
        %v1987 = vadd.s32 %v1982, %v1986
        %v1988 = vadd.s32 %v1987, 536870912
        %v1989 = vshrl.u32 %v1988, 30
        %v1990 = vshll.u32 %v1989, 30
        %v1991 = vsub.s32 %v1987, %v1990
        %vm1992 = vcmp.lt.s32.totalorder %v1991, 0
        %v1993 = vsub.s32 0, %v1991
        %v1994 = vsel %vm1992, %v1993, %v1991
        %v1995 = vclz %v1994
        %v1996 = vsub.s32 %v1995, 2
        %vm1997 = vcmp.gt.s32.totalorder 0, %v1996
        %v1998 = vsel %vm1997, 0, %v1996
        %v1999 = vsub.s32 32, %v1998
        %v2000 = vshll.u32 %v1991, %v1998
        %v2001 = vshrl.u32 %v1983, %v1999
        %v2002 = vor.u32 %v2000, %v2001
        %v2003 = vsub.s32 4294967266, %v1998
        %v2004 = vadd.s32 %v2003, 127
        %v2005 = vshll.u32 %v2004, 23
        %v2006 = vor.u32 4788187, %v2005
        %v2007 = vand.u32 2147483647, %v2006
        %v2009 = vcvt.s32.f32 %v2002
        %v2010 = vmul.f32 %v2009, %v2007
        %v2011 = vxor.u32 %v2010, 2147483648
        %v2012 = vsel %vm1929, %v2011, %v2010
        %v2013 = vsub.s32 4, %v1989
        %v2014 = vsel %vm1929, %v2013, %v1989
        %v2015 = vsel %vm1928, %v572, %v2012
        %v2016 = vsel %vm1928, 0, %v2014
        %v2017 = vcosq.f32.pop %v2015
        %v2018 = vsinq.f32.pop %v2015
        %vm2019 = vweird.f32 %v572
        %v2020 = vadd.s32 %v2016, 3
        %v2021 = vand.u32 %v2020, 3
        %vm2022 = vcmp.lt.s32.totalorder %v2021, 2
        %vm2023 = vcmp.eq.s32.totalorder %v2021, 0
        %v2024 = vxor.u32 %v2018, 2147483648
        %v2025 = vsel %vm2023, %v2017, %v2024
        %vm2026 = vcmp.eq.s32.totalorder %v2021, 2
        %v2027 = vxor.u32 %v2017, 2147483648
        %v2028 = vsel %vm2026, %v2027, %v2018
        %v2029 = vsel %vm2022, %v2025, %v2028
        %v2030 = vsel %vm2019, nan, %v2029
        %v2031 = vand.u32 2147483647, %v573
        %vm2032 = vcmp.le.f32.partialorder %v2031, 0.7853982
        %vm2033 = vcmp.lt.s32.totalorder %v573, 0
        %v2034 = vand.u32 %v573, 2139095040
        %v2035 = vshrl.u32 %v2034, 23
        %v2036 = vsub.s32 %v2035, 127
        %v2037 = vand.u32 2147483647, %v573
        %v2038 = vand.u32 %v2037, 8388607
        %v2039 = vor.u32 %v2038, 8388608
        %v2040 = vsub.s32 0, %v2039
        %v2041 = vadd.s32 %v2036, 1
        %vm2042 = vcmp.gt.s32.totalorder %v2041, 0
        %v2043 = vsel %vm2042, %v2041, 0
        %v2044 = vshrl.u32 %v2043, 5
        %v2045 = vand.u32 %v2043, 31
        %v2046 = vsub.s32 32, %v2045
        %v2047 = vshrl.u32 683565275, %v2046
        %v2048 = vshll.u32 683565275, %v2045
        %v2049 = vshrl.u32 2475754826, %v2046
        %v2050 = vor.u32 %v2048, %v2049
        %v2051 = vshll.u32 2475754826, %v2045
        %v2052 = vshrl.u32 2131351028, %v2046
        %v2053 = vor.u32 %v2051, %v2052
        %v2054 = vshll.u32 2131351028, %v2045
        %v2055 = vshrl.u32 2102212464, %v2046
        %v2056 = vor.u32 %v2054, %v2055
        %v2057 = vshll.u32 2102212464, %v2045
        %v2058 = vshrl.u32 920167782, %v2046
        %v2059 = vor.u32 %v2057, %v2058
        %v2060 = vshll.u32 920167782, %v2045
        %v2061 = vshrl.u32 1326507024, %v2046
        %v2062 = vor.u32 %v2060, %v2061
        %vm2063 = vcmp.lt.s32.totalorder %v2044, 1
        %vm2064 = vcmp.lt.s32.totalorder %v2044, 2
        %vm2065 = vcmp.lt.s32.totalorder %v2044, 3
        %vm2066 = vcmp.lt.s32.totalorder %v2044, 4
        %v2067 = vsel %vm2063, %v2047, %v2050
        %v2068 = vsel %vm2066, %v2056, 2102212464
        %v2069 = vsel %vm2065, %v2053, %v2068
        %v2070 = vsel %vm2064, %v2067, %v2069
        %v2071 = vsel %vm2063, %v2050, %v2053
        %v2072 = vsel %vm2066, %v2059, 920167782
        %v2073 = vsel %vm2065, %v2056, %v2072
        %v2074 = vsel %vm2064, %v2071, %v2073
        %v2075 = vsel %vm2063, %v2053, %v2056
        %v2076 = vsel %vm2066, %v2062, 1326507024
        %v2077 = vsel %vm2065, %v2059, %v2076
        %v2078 = vsel %vm2064, %v2075, %v2077
        %v2079 = vshll.u32 %v2039, 8
        %v2080 = vmul.u32.u64.compose %v2079, %v2078
        %v2081 = vextract.low.u32 %v2080
        %v2082 = vextract.high.u32 %v2080
        %v2083 = vmul.u32.u64.compose %v2079, %v2074
        %v2084 = vextract.low.u32 %v2083
        %v2085 = vextract.high.u32 %v2083
        %v2086 = vmul.u32 %v2079, %v2070
        %v2087 = vadd.s32 %v2082, %v2084
        %vm2088 = vc.u32 %v2082, %v2084
        %v2089 = vadd.s32 %v2085, 1
        %v2090 = vsel %vm2088, %v2089, %v2085
        %v2091 = vadd.s32 %v2086, %v2090
        %v2092 = vadd.s32 %v2091, 536870912
        %v2093 = vshrl.u32 %v2092, 30
        %v2094 = vshll.u32 %v2093, 30
        %v2095 = vsub.s32 %v2091, %v2094
        %vm2096 = vcmp.lt.s32.totalorder %v2095, 0
        %v2097 = vsub.s32 0, %v2095
        %v2098 = vsel %vm2096, %v2097, %v2095
        %v2099 = vclz %v2098
        %v2100 = vsub.s32 %v2099, 2
        %vm2101 = vcmp.gt.s32.totalorder 0, %v2100
        %v2102 = vsel %vm2101, 0, %v2100
        %v2103 = vsub.s32 32, %v2102
        %v2104 = vshll.u32 %v2095, %v2102
        %v2105 = vshrl.u32 %v2087, %v2103
        %v2106 = vor.u32 %v2104, %v2105
        %v2107 = vsub.s32 4294967266, %v2102
        %v2108 = vadd.s32 %v2107, 127
        %v2109 = vshll.u32 %v2108, 23
        %v2110 = vor.u32 4788187, %v2109
        %v2111 = vand.u32 2147483647, %v2110
        %v2113 = vcvt.s32.f32 %v2106
        %v2114 = vmul.f32 %v2113, %v2111
        %v2115 = vxor.u32 %v2114, 2147483648
        %v2116 = vsel %vm2033, %v2115, %v2114
        %v2117 = vsub.s32 4, %v2093
        %v2118 = vsel %vm2033, %v2117, %v2093
        %v2119 = vsel %vm2032, %v573, %v2116
        %v2120 = vsel %vm2032, 0, %v2118
        %v2121 = vcosq.f32.pop %v2119
        %v2122 = vsinq.f32.pop %v2119
        %vm2123 = vweird.f32 %v573
        %v2124 = vadd.s32 %v2120, 3
        %v2125 = vand.u32 %v2124, 3
        %vm2126 = vcmp.lt.s32.totalorder %v2125, 2
        %vm2127 = vcmp.eq.s32.totalorder %v2125, 0
        %v2128 = vxor.u32 %v2122, 2147483648
        %v2129 = vsel %vm2127, %v2121, %v2128
        %vm2130 = vcmp.eq.s32.totalorder %v2125, 2
        %v2131 = vxor.u32 %v2121, 2147483648
        %v2132 = vsel %vm2130, %v2131, %v2122
        %v2133 = vsel %vm2126, %v2129, %v2132
        %v2134 = vsel %vm2123, nan, %v2133
        %v2135 = vand.u32 2147483647, %v574
        %vm2136 = vcmp.le.f32.partialorder %v2135, 0.7853982
        %vm2137 = vcmp.lt.s32.totalorder %v574, 0
        %v2138 = vand.u32 %v574, 2139095040
        %v2139 = vshrl.u32 %v2138, 23
        %v2140 = vsub.s32 %v2139, 127
        %v2141 = vand.u32 2147483647, %v574
        %v2142 = vand.u32 %v2141, 8388607
        %v2143 = vor.u32 %v2142, 8388608
        %v2144 = vsub.s32 0, %v2143
        %v2145 = vadd.s32 %v2140, 1
        %vm2146 = vcmp.gt.s32.totalorder %v2145, 0
        %v2147 = vsel %vm2146, %v2145, 0
        %v2148 = vshrl.u32 %v2147, 5
        %v2149 = vand.u32 %v2147, 31
        %v2150 = vsub.s32 32, %v2149
        %v2151 = vshrl.u32 683565275, %v2150
        %v2152 = vshll.u32 683565275, %v2149
        %v2153 = vshrl.u32 2475754826, %v2150
        %v2154 = vor.u32 %v2152, %v2153
        %v2155 = vshll.u32 2475754826, %v2149
        %v2156 = vshrl.u32 2131351028, %v2150
        %v2157 = vor.u32 %v2155, %v2156
        %v2158 = vshll.u32 2131351028, %v2149
        %v2159 = vshrl.u32 2102212464, %v2150
        %v2160 = vor.u32 %v2158, %v2159
        %v2161 = vshll.u32 2102212464, %v2149
        %v2162 = vshrl.u32 920167782, %v2150
        %v2163 = vor.u32 %v2161, %v2162
        %v2164 = vshll.u32 920167782, %v2149
        %v2165 = vshrl.u32 1326507024, %v2150
        %v2166 = vor.u32 %v2164, %v2165
        %vm2167 = vcmp.lt.s32.totalorder %v2148, 1
        %vm2168 = vcmp.lt.s32.totalorder %v2148, 2
        %vm2169 = vcmp.lt.s32.totalorder %v2148, 3
        %vm2170 = vcmp.lt.s32.totalorder %v2148, 4
        %v2171 = vsel %vm2167, %v2151, %v2154
        %v2172 = vsel %vm2170, %v2160, 2102212464
        %v2173 = vsel %vm2169, %v2157, %v2172
        %v2174 = vsel %vm2168, %v2171, %v2173
        %v2175 = vsel %vm2167, %v2154, %v2157
        %v2176 = vsel %vm2170, %v2163, 920167782
        %v2177 = vsel %vm2169, %v2160, %v2176
        %v2178 = vsel %vm2168, %v2175, %v2177
        %v2179 = vsel %vm2167, %v2157, %v2160
        %v2180 = vsel %vm2170, %v2166, 1326507024
        %v2181 = vsel %vm2169, %v2163, %v2180
        %v2182 = vsel %vm2168, %v2179, %v2181
        %v2183 = vshll.u32 %v2143, 8
        %v2184 = vmul.u32.u64.compose %v2183, %v2182
        %v2185 = vextract.low.u32 %v2184
        %v2186 = vextract.high.u32 %v2184
        %v2187 = vmul.u32.u64.compose %v2183, %v2178
        %v2188 = vextract.low.u32 %v2187
        %v2189 = vextract.high.u32 %v2187
        %v2190 = vmul.u32 %v2183, %v2174
        %v2191 = vadd.s32 %v2186, %v2188
        %vm2192 = vc.u32 %v2186, %v2188
        %v2193 = vadd.s32 %v2189, 1
        %v2194 = vsel %vm2192, %v2193, %v2189
        %v2195 = vadd.s32 %v2190, %v2194
        %v2196 = vadd.s32 %v2195, 536870912
        %v2197 = vshrl.u32 %v2196, 30
        %v2198 = vshll.u32 %v2197, 30
        %v2199 = vsub.s32 %v2195, %v2198
        %vm2200 = vcmp.lt.s32.totalorder %v2199, 0
        %v2201 = vsub.s32 0, %v2199
        %v2202 = vsel %vm2200, %v2201, %v2199
        %v2203 = vclz %v2202
        %v2204 = vsub.s32 %v2203, 2
        %vm2205 = vcmp.gt.s32.totalorder 0, %v2204
        %v2206 = vsel %vm2205, 0, %v2204
        %v2207 = vsub.s32 32, %v2206
        %v2208 = vshll.u32 %v2199, %v2206
        %v2209 = vshrl.u32 %v2191, %v2207
        %v2210 = vor.u32 %v2208, %v2209
        %v2211 = vsub.s32 4294967266, %v2206
        %v2212 = vadd.s32 %v2211, 127
        %v2213 = vshll.u32 %v2212, 23
        %v2214 = vor.u32 4788187, %v2213
        %v2215 = vand.u32 2147483647, %v2214
        %v2217 = vcvt.s32.f32 %v2210
        %v2218 = vmul.f32 %v2217, %v2215
        %v2219 = vxor.u32 %v2218, 2147483648
        %v2220 = vsel %vm2137, %v2219, %v2218
        %v2221 = vsub.s32 4, %v2197
        %v2222 = vsel %vm2137, %v2221, %v2197
        %v2223 = vsel %vm2136, %v574, %v2220
        %v2224 = vsel %vm2136, 0, %v2222
        %v2225 = vcosq.f32.pop %v2223
        %v2226 = vsinq.f32.pop %v2223
        %vm2227 = vweird.f32 %v574
        %v2228 = vadd.s32 %v2224, 3
        %v2229 = vand.u32 %v2228, 3
        %vm2230 = vcmp.lt.s32.totalorder %v2229, 2
        %vm2231 = vcmp.eq.s32.totalorder %v2229, 0
        %v2232 = vxor.u32 %v2226, 2147483648
        %v2233 = vsel %vm2231, %v2225, %v2232
        %vm2234 = vcmp.eq.s32.totalorder %v2229, 2
        %v2235 = vxor.u32 %v2225, 2147483648
        %v2236 = vsel %vm2234, %v2235, %v2226
        %v2237 = vsel %vm2230, %v2233, %v2236
        %v2238 = vsel %vm2227, nan, %v2237
        %v2239 = vld [vmem:[%s3] sm:$0xff]
        %v2240 = vld [vmem:[%s3 + $0x8] sm:$0xff]
        %v2241 = vld [vmem:[%s3 + $0x10] sm:$0xff]
        %v2242 = vld [vmem:[%s3 + $0x18] sm:$0xff]
        %v2243 = vld [vmem:[%s3 + $0x20] sm:$0xff]
        %v2244 = vld [vmem:[%s3 + $0x28] sm:$0xff]
        %v2245 = vld [vmem:[%s3 + $0x30] sm:$0xff]
        %v2246 = vld [vmem:[%s3 + $0x38] sm:$0xff]
        %v2247 = vld [vmem:[%s3 + $0x40] sm:$0xff]
        %v2248 = vld [vmem:[%s3 + $0x48] sm:$0xff]
        %v2249 = vld [vmem:[%s3 + $0x50] sm:$0xff]
        %v2250 = vld [vmem:[%s3 + $0x58] sm:$0xff]
        %v2251 = vld [vmem:[%s3 + $0x60] sm:$0xff]
        %v2252 = vld [vmem:[%s3 + $0x68] sm:$0xff]
        %v2253 = vld [vmem:[%s3 + $0x70] sm:$0xff]
        %v2254 = vld [vmem:[%s3 + $0x78] sm:$0xff]
        %v2255 = vld [vmem:[%s4] sm:$0x1]
        %v2257 = vlaneseq
        %v2258 = vshrl.u32 %v2257, 7
        %v2259 = vsub.s32 0, %v2258
        %v2260 = vrot.slane %v2255, %v2259
        %2262 = vmatprep.subr.mxu0 0.0
        %2263 = vmatpush1.msra.mxu0 %v2254
        %2264 = vmatprep.subr.mxu0 0.0
        %2265 = vmatpush1.msra.mxu0 %v2253
        %2266 = vmatprep.subr.mxu0 0.0
        %2267 = vmatpush1.msra.mxu0 %v2252
        %2268 = vmatprep.subr.mxu0 0.0
        %2269 = vmatpush1.msra.mxu0 %v2251
        %2270 = vmatprep.subr.mxu0 0.0
        %2271 = vmatpush1.msra.mxu0 %v2250
        %2272 = vmatprep.subr.mxu0 0.0
        %2273 = vmatpush1.msra.mxu0 %v2249
        %2274 = vmatprep.subr.mxu0 0.0
        %2275 = vmatpush1.msra.mxu0 %v2248
        %2276 = vmatprep.subr.mxu0 0.0
        %2277 = vmatpush1.msra.mxu0 %v2247
        %2278 = vmatprep.subr.mxu0 0.0
        %2279 = vmatpush1.msra.mxu0 %v2246
        %2280 = vmatprep.subr.mxu0 0.0
        %2281 = vmatpush1.msra.mxu0 %v2245
        %2282 = vmatprep.subr.mxu0 0.0
        %2283 = vmatpush1.msra.mxu0 %v2244
        %2284 = vmatprep.subr.mxu0 0.0
        %2285 = vmatpush1.msra.mxu0 %v2243
        %2286 = vmatprep.subr.mxu0 0.0
        %2287 = vmatpush1.msra.mxu0 %v2242
        %2288 = vmatprep.subr.mxu0 0.0
        %2289 = vmatpush1.msra.mxu0 %v2241
        %2290 = vmatprep.subr.mxu0 0.0
        %2291 = vmatpush1.msra.mxu0 %v2240
        %2292 = vmatprep.subr.mxu0 0.0
        %2293 = vmatpush1.msra.mxu0 %v2239
        %2294 = vmatprep.subr.mxu0 0.0
        %2295 = vmatpush2.msra.mxu0 0.0
        %2296 = vmatprep.subr.mxu0 0.0
        %2297 = vmatpush2.msra.mxu0 0.0
        %2298 = vmatprep.subr.mxu0 0.0
        %2299 = vmatpush2.msra.mxu0 0.0
        %2300 = vmatprep.subr.mxu0 0.0
        %2301 = vmatpush2.msra.mxu0 0.0
        %2302 = vmatprep.subr.mxu0 0.0
        %2303 = vmatpush2.msra.mxu0 0.0
        %2304 = vmatprep.subr.mxu0 0.0
        %2305 = vmatpush2.msra.mxu0 0.0
        %2306 = vmatprep.subr.mxu0 0.0
        %2307 = vmatpush2.msra.mxu0 0.0
        %2308 = vmatprep.subr.mxu0 0.0
        %2309 = vmatpush2.msra.mxu0 0.0
        %2310 = vmatprep.subr.mxu0 0.0
        %2311 = vmatpush2.msra.mxu0 0.0
        %2312 = vmatprep.subr.mxu0 0.0
        %2313 = vmatpush2.msra.mxu0 0.0
        %2314 = vmatprep.subr.mxu0 0.0
        %2315 = vmatpush2.msra.mxu0 0.0
        %2316 = vmatprep.subr.mxu0 0.0
        %2317 = vmatpush2.msra.mxu0 0.0
        %2318 = vmatprep.subr.mxu0 0.0
        %2319 = vmatpush2.msra.mxu0 0.0
        %2320 = vmatprep.subr.mxu0 0.0
        %2321 = vmatpush2.msra.mxu0 0.0
        %2322 = vmatprep.subr.mxu0 0.0
        %2323 = vmatpush2.msra.mxu0 0.0
        %2324 = vmatprep.subr.mxu0 0.0
        %2325 = vmatpush2.msra.mxu0 0.0
        %2326 = vmatprep.mubr.f32.mxu0 0.0
        %2327 = vmatmul.mubr.f32.gmra.mxu0 %v678
        %v2328 = vpop.f32.mrf.mxu0
        %v2329 = vadd.f32 %v2260, %v2328
        %v2330 = vpop.f32.mrf.mxu0
        %2331 = vmatprep.mubr.f32.mxu0 0.0
        %2332 = vmatmul.mubr.f32.gmra.mxu0 %v782
        %v2333 = vpop.f32.mrf.mxu0
        %v2334 = vadd.f32 %v2260, %v2333
        %v2335 = vpop.f32.mrf.mxu0
        %2336 = vmatprep.mubr.f32.mxu0 0.0
        %2337 = vmatmul.mubr.f32.gmra.mxu0 %v886
        %v2338 = vpop.f32.mrf.mxu0
        %v2339 = vadd.f32 %v2260, %v2338
        %v2340 = vpop.f32.mrf.mxu0
        %2341 = vmatprep.mubr.f32.mxu0 0.0
        %2342 = vmatmul.mubr.f32.gmra.mxu0 %v990
        %v2343 = vpop.f32.mrf.mxu0
        %v2344 = vadd.f32 %v2260, %v2343
        %v2345 = vpop.f32.mrf.mxu0
        %2346 = vmatprep.mubr.f32.mxu0 0.0
        %2347 = vmatmul.mubr.f32.gmra.mxu0 %v1094
        %v2348 = vpop.f32.mrf.mxu0
        %v2349 = vadd.f32 %v2260, %v2348
        %v2350 = vpop.f32.mrf.mxu0
        %2351 = vmatprep.mubr.f32.mxu0 0.0
        %2352 = vmatmul.mubr.f32.gmra.mxu0 %v1198
        %v2353 = vpop.f32.mrf.mxu0
        %v2354 = vadd.f32 %v2260, %v2353
        %v2355 = vpop.f32.mrf.mxu0
        %2356 = vmatprep.mubr.f32.mxu0 0.0
        %2357 = vmatmul.mubr.f32.gmra.mxu0 %v1302
        %v2358 = vpop.f32.mrf.mxu0
        %v2359 = vadd.f32 %v2260, %v2358
        %v2360 = vpop.f32.mrf.mxu0
        %2361 = vmatprep.mubr.f32.mxu0 0.0
        %2362 = vmatmul.mubr.f32.gmra.mxu0 %v1406
        %v2363 = vpop.f32.mrf.mxu0
        %v2364 = vadd.f32 %v2260, %v2363
        %v2365 = vpop.f32.mrf.mxu0
        %2366 = vmatprep.mubr.f32.mxu0 0.0
        %2367 = vmatmul.mubr.f32.gmra.mxu0 %v1510
        %v2368 = vpop.f32.mrf.mxu0
        %v2369 = vadd.f32 %v2260, %v2368
        %v2370 = vpop.f32.mrf.mxu0
        %2371 = vmatprep.mubr.f32.mxu0 0.0
        %2372 = vmatmul.mubr.f32.gmra.mxu0 %v1614
        %v2373 = vpop.f32.mrf.mxu0
        %v2374 = vadd.f32 %v2260, %v2373
        %v2375 = vpop.f32.mrf.mxu0
        %2376 = vmatprep.mubr.f32.mxu0 0.0
        %2377 = vmatmul.mubr.f32.gmra.mxu0 %v1718
        %v2378 = vpop.f32.mrf.mxu0
        %v2379 = vadd.f32 %v2260, %v2378
        %v2380 = vpop.f32.mrf.mxu0
        %2381 = vmatprep.mubr.f32.mxu0 0.0
        %2382 = vmatmul.mubr.f32.gmra.mxu0 %v1822
        %v2383 = vpop.f32.mrf.mxu0
        %v2384 = vadd.f32 %v2260, %v2383
        %v2385 = vpop.f32.mrf.mxu0
        %2386 = vmatprep.mubr.f32.mxu0 0.0
        %2387 = vmatmul.mubr.f32.gmra.mxu0 %v1926
        %v2388 = vpop.f32.mrf.mxu0
        %v2389 = vadd.f32 %v2260, %v2388
        %v2390 = vpop.f32.mrf.mxu0
        %2391 = vmatprep.mubr.f32.mxu0 0.0
        %2392 = vmatmul.mubr.f32.gmra.mxu0 %v2030
        %v2393 = vpop.f32.mrf.mxu0
        %v2394 = vadd.f32 %v2260, %v2393
        %v2395 = vpop.f32.mrf.mxu0
        %2396 = vmatprep.mubr.f32.mxu0 0.0
        %2397 = vmatmul.mubr.f32.gmra.mxu0 %v2134
        %v2398 = vpop.f32.mrf.mxu0
        %v2399 = vadd.f32 %v2260, %v2398
        %v2400 = vpop.f32.mrf.mxu0
        %2401 = vmatprep.mubr.f32.mxu0 0.0
        %2402 = vmatmul.mubr.f32.gmra.mxu0 %v2238
        %v2403 = vpop.f32.mrf.mxu0
        %v2404 = vadd.f32 %v2260, %v2403
        %v2405 = vpop.f32.mrf.mxu0
        %2406 = vdwg.mxu0
        %v2407 = vand.u32 2147483647, %v2329
        %vm2408 = vcmp.le.f32.partialorder %v2407, 0.7853982
        %vm2409 = vcmp.lt.s32.totalorder %v2329, 0
        %v2410 = vand.u32 %v2329, 2139095040
        %v2411 = vshrl.u32 %v2410, 23
        %v2412 = vsub.s32 %v2411, 127
        %v2413 = vand.u32 2147483647, %v2329
        %v2414 = vand.u32 %v2413, 8388607
        %v2415 = vor.u32 %v2414, 8388608
        %v2416 = vsub.s32 0, %v2415
        %v2417 = vadd.s32 %v2412, 1
        %vm2418 = vcmp.gt.s32.totalorder %v2417, 0
        %v2419 = vsel %vm2418, %v2417, 0
        %v2420 = vshrl.u32 %v2419, 5
        %v2421 = vand.u32 %v2419, 31
        %v2422 = vsub.s32 32, %v2421
        %v2423 = vshrl.u32 683565275, %v2422
        %v2424 = vshll.u32 683565275, %v2421
        %v2425 = vshrl.u32 2475754826, %v2422
        %v2426 = vor.u32 %v2424, %v2425
        %v2427 = vshll.u32 2475754826, %v2421
        %v2428 = vshrl.u32 2131351028, %v2422
        %v2429 = vor.u32 %v2427, %v2428
        %v2430 = vshll.u32 2131351028, %v2421
        %v2431 = vshrl.u32 2102212464, %v2422
        %v2432 = vor.u32 %v2430, %v2431
        %v2433 = vshll.u32 2102212464, %v2421
        %v2434 = vshrl.u32 920167782, %v2422
        %v2435 = vor.u32 %v2433, %v2434
        %v2436 = vshll.u32 920167782, %v2421
        %v2437 = vshrl.u32 1326507024, %v2422
        %v2438 = vor.u32 %v2436, %v2437
        %vm2439 = vcmp.lt.s32.totalorder %v2420, 1
        %vm2440 = vcmp.lt.s32.totalorder %v2420, 2
        %vm2441 = vcmp.lt.s32.totalorder %v2420, 3
        %vm2442 = vcmp.lt.s32.totalorder %v2420, 4
        %v2443 = vsel %vm2439, %v2423, %v2426
        %v2444 = vsel %vm2442, %v2432, 2102212464
        %v2445 = vsel %vm2441, %v2429, %v2444
        %v2446 = vsel %vm2440, %v2443, %v2445
        %v2447 = vsel %vm2439, %v2426, %v2429
        %v2448 = vsel %vm2442, %v2435, 920167782
        %v2449 = vsel %vm2441, %v2432, %v2448
        %v2450 = vsel %vm2440, %v2447, %v2449
        %v2451 = vsel %vm2439, %v2429, %v2432
        %v2452 = vsel %vm2442, %v2438, 1326507024
        %v2453 = vsel %vm2441, %v2435, %v2452
        %v2454 = vsel %vm2440, %v2451, %v2453
        %v2455 = vshll.u32 %v2415, 8
        %v2456 = vmul.u32.u64.compose %v2455, %v2454
        %v2457 = vextract.low.u32 %v2456
        %v2458 = vextract.high.u32 %v2456
        %v2459 = vmul.u32.u64.compose %v2455, %v2450
        %v2460 = vextract.low.u32 %v2459
        %v2461 = vextract.high.u32 %v2459
        %v2462 = vmul.u32 %v2455, %v2446
        %v2463 = vadd.s32 %v2458, %v2460
        %vm2464 = vc.u32 %v2458, %v2460
        %v2465 = vadd.s32 %v2461, 1
        %v2466 = vsel %vm2464, %v2465, %v2461
        %v2467 = vadd.s32 %v2462, %v2466
        %v2468 = vadd.s32 %v2467, 536870912
        %v2469 = vshrl.u32 %v2468, 30
        %v2470 = vshll.u32 %v2469, 30
        %v2471 = vsub.s32 %v2467, %v2470
        %vm2472 = vcmp.lt.s32.totalorder %v2471, 0
        %v2473 = vsub.s32 0, %v2471
        %v2474 = vsel %vm2472, %v2473, %v2471
        %v2475 = vclz %v2474
        %v2476 = vsub.s32 %v2475, 2
        %vm2477 = vcmp.gt.s32.totalorder 0, %v2476
        %v2478 = vsel %vm2477, 0, %v2476
        %v2479 = vsub.s32 32, %v2478
        %v2480 = vshll.u32 %v2471, %v2478
        %v2481 = vshrl.u32 %v2463, %v2479
        %v2482 = vor.u32 %v2480, %v2481
        %v2483 = vsub.s32 4294967266, %v2478
        %v2484 = vadd.s32 %v2483, 127
        %v2485 = vshll.u32 %v2484, 23
        %v2486 = vor.u32 4788187, %v2485
        %v2487 = vand.u32 2147483647, %v2486
        %v2489 = vcvt.s32.f32 %v2482
        %v2490 = vmul.f32 %v2489, %v2487
        %v2491 = vxor.u32 %v2490, 2147483648
        %v2492 = vsel %vm2409, %v2491, %v2490
        %v2493 = vsub.s32 4, %v2469
        %v2494 = vsel %vm2409, %v2493, %v2469
        %v2495 = vsel %vm2408, %v2329, %v2492
        %v2496 = vsel %vm2408, 0, %v2494
        %v2497 = vcosq.f32.pop %v2495
        %v2498 = vsinq.f32.pop %v2495
        %vm2499 = vweird.f32 %v2329
        %v2500 = vadd.s32 %v2496, 3
        %v2501 = vand.u32 %v2500, 3
        %vm2502 = vcmp.lt.s32.totalorder %v2501, 2
        %vm2503 = vcmp.eq.s32.totalorder %v2501, 0
        %v2504 = vxor.u32 %v2498, 2147483648
        %v2505 = vsel %vm2503, %v2497, %v2504
        %vm2506 = vcmp.eq.s32.totalorder %v2501, 2
        %v2507 = vxor.u32 %v2497, 2147483648
        %v2508 = vsel %vm2506, %v2507, %v2498
        %v2509 = vsel %vm2502, %v2505, %v2508
        %v2510 = vsel %vm2499, nan, %v2509
        %v2511 = vand.u32 2147483647, %v2334
        %vm2512 = vcmp.le.f32.partialorder %v2511, 0.7853982
        %vm2513 = vcmp.lt.s32.totalorder %v2334, 0
        %v2514 = vand.u32 %v2334, 2139095040
        %v2515 = vshrl.u32 %v2514, 23
        %v2516 = vsub.s32 %v2515, 127
        %v2517 = vand.u32 2147483647, %v2334
        %v2518 = vand.u32 %v2517, 8388607
        %v2519 = vor.u32 %v2518, 8388608
        %v2520 = vsub.s32 0, %v2519
        %v2521 = vadd.s32 %v2516, 1
        %vm2522 = vcmp.gt.s32.totalorder %v2521, 0
        %v2523 = vsel %vm2522, %v2521, 0
        %v2524 = vshrl.u32 %v2523, 5
        %v2525 = vand.u32 %v2523, 31
        %v2526 = vsub.s32 32, %v2525
        %v2527 = vshrl.u32 683565275, %v2526
        %v2528 = vshll.u32 683565275, %v2525
        %v2529 = vshrl.u32 2475754826, %v2526
        %v2530 = vor.u32 %v2528, %v2529
        %v2531 = vshll.u32 2475754826, %v2525
        %v2532 = vshrl.u32 2131351028, %v2526
        %v2533 = vor.u32 %v2531, %v2532
        %v2534 = vshll.u32 2131351028, %v2525
        %v2535 = vshrl.u32 2102212464, %v2526
        %v2536 = vor.u32 %v2534, %v2535
        %v2537 = vshll.u32 2102212464, %v2525
        %v2538 = vshrl.u32 920167782, %v2526
        %v2539 = vor.u32 %v2537, %v2538
        %v2540 = vshll.u32 920167782, %v2525
        %v2541 = vshrl.u32 1326507024, %v2526
        %v2542 = vor.u32 %v2540, %v2541
        %vm2543 = vcmp.lt.s32.totalorder %v2524, 1
        %vm2544 = vcmp.lt.s32.totalorder %v2524, 2
        %vm2545 = vcmp.lt.s32.totalorder %v2524, 3
        %vm2546 = vcmp.lt.s32.totalorder %v2524, 4
        %v2547 = vsel %vm2543, %v2527, %v2530
        %v2548 = vsel %vm2546, %v2536, 2102212464
        %v2549 = vsel %vm2545, %v2533, %v2548
        %v2550 = vsel %vm2544, %v2547, %v2549
        %v2551 = vsel %vm2543, %v2530, %v2533
        %v2552 = vsel %vm2546, %v2539, 920167782
        %v2553 = vsel %vm2545, %v2536, %v2552
        %v2554 = vsel %vm2544, %v2551, %v2553
        %v2555 = vsel %vm2543, %v2533, %v2536
        %v2556 = vsel %vm2546, %v2542, 1326507024
        %v2557 = vsel %vm2545, %v2539, %v2556
        %v2558 = vsel %vm2544, %v2555, %v2557
        %v2559 = vshll.u32 %v2519, 8
        %v2560 = vmul.u32.u64.compose %v2559, %v2558
        %v2561 = vextract.low.u32 %v2560
        %v2562 = vextract.high.u32 %v2560
        %v2563 = vmul.u32.u64.compose %v2559, %v2554
        %v2564 = vextract.low.u32 %v2563
        %v2565 = vextract.high.u32 %v2563
        %v2566 = vmul.u32 %v2559, %v2550
        %v2567 = vadd.s32 %v2562, %v2564
        %vm2568 = vc.u32 %v2562, %v2564
        %v2569 = vadd.s32 %v2565, 1
        %v2570 = vsel %vm2568, %v2569, %v2565
        %v2571 = vadd.s32 %v2566, %v2570
        %v2572 = vadd.s32 %v2571, 536870912
        %v2573 = vshrl.u32 %v2572, 30
        %v2574 = vshll.u32 %v2573, 30
        %v2575 = vsub.s32 %v2571, %v2574
        %vm2576 = vcmp.lt.s32.totalorder %v2575, 0
        %v2577 = vsub.s32 0, %v2575
        %v2578 = vsel %vm2576, %v2577, %v2575
        %v2579 = vclz %v2578
        %v2580 = vsub.s32 %v2579, 2
        %vm2581 = vcmp.gt.s32.totalorder 0, %v2580
        %v2582 = vsel %vm2581, 0, %v2580
        %v2583 = vsub.s32 32, %v2582
        %v2584 = vshll.u32 %v2575, %v2582
        %v2585 = vshrl.u32 %v2567, %v2583
        %v2586 = vor.u32 %v2584, %v2585
        %v2587 = vsub.s32 4294967266, %v2582
        %v2588 = vadd.s32 %v2587, 127
        %v2589 = vshll.u32 %v2588, 23
        %v2590 = vor.u32 4788187, %v2589
        %v2591 = vand.u32 2147483647, %v2590
        %v2593 = vcvt.s32.f32 %v2586
        %v2594 = vmul.f32 %v2593, %v2591
        %v2595 = vxor.u32 %v2594, 2147483648
        %v2596 = vsel %vm2513, %v2595, %v2594
        %v2597 = vsub.s32 4, %v2573
        %v2598 = vsel %vm2513, %v2597, %v2573
        %v2599 = vsel %vm2512, %v2334, %v2596
        %v2600 = vsel %vm2512, 0, %v2598
        %v2601 = vcosq.f32.pop %v2599
        %v2602 = vsinq.f32.pop %v2599
        %vm2603 = vweird.f32 %v2334
        %v2604 = vadd.s32 %v2600, 3
        %v2605 = vand.u32 %v2604, 3
        %vm2606 = vcmp.lt.s32.totalorder %v2605, 2
        %vm2607 = vcmp.eq.s32.totalorder %v2605, 0
        %v2608 = vxor.u32 %v2602, 2147483648
        %v2609 = vsel %vm2607, %v2601, %v2608
        %vm2610 = vcmp.eq.s32.totalorder %v2605, 2
        %v2611 = vxor.u32 %v2601, 2147483648
        %v2612 = vsel %vm2610, %v2611, %v2602
        %v2613 = vsel %vm2606, %v2609, %v2612
        %v2614 = vsel %vm2603, nan, %v2613
        %v2615 = vand.u32 2147483647, %v2339
        %vm2616 = vcmp.le.f32.partialorder %v2615, 0.7853982
        %vm2617 = vcmp.lt.s32.totalorder %v2339, 0
        %v2618 = vand.u32 %v2339, 2139095040
        %v2619 = vshrl.u32 %v2618, 23
        %v2620 = vsub.s32 %v2619, 127
        %v2621 = vand.u32 2147483647, %v2339
        %v2622 = vand.u32 %v2621, 8388607
        %v2623 = vor.u32 %v2622, 8388608
        %v2624 = vsub.s32 0, %v2623
        %v2625 = vadd.s32 %v2620, 1
        %vm2626 = vcmp.gt.s32.totalorder %v2625, 0
        %v2627 = vsel %vm2626, %v2625, 0
        %v2628 = vshrl.u32 %v2627, 5
        %v2629 = vand.u32 %v2627, 31
        %v2630 = vsub.s32 32, %v2629
        %v2631 = vshrl.u32 683565275, %v2630
        %v2632 = vshll.u32 683565275, %v2629
        %v2633 = vshrl.u32 2475754826, %v2630
        %v2634 = vor.u32 %v2632, %v2633
        %v2635 = vshll.u32 2475754826, %v2629
        %v2636 = vshrl.u32 2131351028, %v2630
        %v2637 = vor.u32 %v2635, %v2636
        %v2638 = vshll.u32 2131351028, %v2629
        %v2639 = vshrl.u32 2102212464, %v2630
        %v2640 = vor.u32 %v2638, %v2639
        %v2641 = vshll.u32 2102212464, %v2629
        %v2642 = vshrl.u32 920167782, %v2630
        %v2643 = vor.u32 %v2641, %v2642
        %v2644 = vshll.u32 920167782, %v2629
        %v2645 = vshrl.u32 1326507024, %v2630
        %v2646 = vor.u32 %v2644, %v2645
        %vm2647 = vcmp.lt.s32.totalorder %v2628, 1
        %vm2648 = vcmp.lt.s32.totalorder %v2628, 2
        %vm2649 = vcmp.lt.s32.totalorder %v2628, 3
        %vm2650 = vcmp.lt.s32.totalorder %v2628, 4
        %v2651 = vsel %vm2647, %v2631, %v2634
        %v2652 = vsel %vm2650, %v2640, 2102212464
        %v2653 = vsel %vm2649, %v2637, %v2652
        %v2654 = vsel %vm2648, %v2651, %v2653
        %v2655 = vsel %vm2647, %v2634, %v2637
        %v2656 = vsel %vm2650, %v2643, 920167782
        %v2657 = vsel %vm2649, %v2640, %v2656
        %v2658 = vsel %vm2648, %v2655, %v2657
        %v2659 = vsel %vm2647, %v2637, %v2640
        %v2660 = vsel %vm2650, %v2646, 1326507024
        %v2661 = vsel %vm2649, %v2643, %v2660
        %v2662 = vsel %vm2648, %v2659, %v2661
        %v2663 = vshll.u32 %v2623, 8
        %v2664 = vmul.u32.u64.compose %v2663, %v2662
        %v2665 = vextract.low.u32 %v2664
        %v2666 = vextract.high.u32 %v2664
        %v2667 = vmul.u32.u64.compose %v2663, %v2658
        %v2668 = vextract.low.u32 %v2667
        %v2669 = vextract.high.u32 %v2667
        %v2670 = vmul.u32 %v2663, %v2654
        %v2671 = vadd.s32 %v2666, %v2668
        %vm2672 = vc.u32 %v2666, %v2668
        %v2673 = vadd.s32 %v2669, 1
        %v2674 = vsel %vm2672, %v2673, %v2669
        %v2675 = vadd.s32 %v2670, %v2674
        %v2676 = vadd.s32 %v2675, 536870912
        %v2677 = vshrl.u32 %v2676, 30
        %v2678 = vshll.u32 %v2677, 30
        %v2679 = vsub.s32 %v2675, %v2678
        %vm2680 = vcmp.lt.s32.totalorder %v2679, 0
        %v2681 = vsub.s32 0, %v2679
        %v2682 = vsel %vm2680, %v2681, %v2679
        %v2683 = vclz %v2682
        %v2684 = vsub.s32 %v2683, 2
        %vm2685 = vcmp.gt.s32.totalorder 0, %v2684
        %v2686 = vsel %vm2685, 0, %v2684
        %v2687 = vsub.s32 32, %v2686
        %v2688 = vshll.u32 %v2679, %v2686
        %v2689 = vshrl.u32 %v2671, %v2687
        %v2690 = vor.u32 %v2688, %v2689
        %v2691 = vsub.s32 4294967266, %v2686
        %v2692 = vadd.s32 %v2691, 127
        %v2693 = vshll.u32 %v2692, 23
        %v2694 = vor.u32 4788187, %v2693
        %v2695 = vand.u32 2147483647, %v2694
        %v2697 = vcvt.s32.f32 %v2690
        %v2698 = vmul.f32 %v2697, %v2695
        %v2699 = vxor.u32 %v2698, 2147483648
        %v2700 = vsel %vm2617, %v2699, %v2698
        %v2701 = vsub.s32 4, %v2677
        %v2702 = vsel %vm2617, %v2701, %v2677
        %v2703 = vsel %vm2616, %v2339, %v2700
        %v2704 = vsel %vm2616, 0, %v2702
        %v2705 = vcosq.f32.pop %v2703
        %v2706 = vsinq.f32.pop %v2703
        %vm2707 = vweird.f32 %v2339
        %v2708 = vadd.s32 %v2704, 3
        %v2709 = vand.u32 %v2708, 3
        %vm2710 = vcmp.lt.s32.totalorder %v2709, 2
        %vm2711 = vcmp.eq.s32.totalorder %v2709, 0
        %v2712 = vxor.u32 %v2706, 2147483648
        %v2713 = vsel %vm2711, %v2705, %v2712
        %vm2714 = vcmp.eq.s32.totalorder %v2709, 2
        %v2715 = vxor.u32 %v2705, 2147483648
        %v2716 = vsel %vm2714, %v2715, %v2706
        %v2717 = vsel %vm2710, %v2713, %v2716
        %v2718 = vsel %vm2707, nan, %v2717
        %v2719 = vand.u32 2147483647, %v2344
        %vm2720 = vcmp.le.f32.partialorder %v2719, 0.7853982
        %vm2721 = vcmp.lt.s32.totalorder %v2344, 0
        %v2722 = vand.u32 %v2344, 2139095040
        %v2723 = vshrl.u32 %v2722, 23
        %v2724 = vsub.s32 %v2723, 127
        %v2725 = vand.u32 2147483647, %v2344
        %v2726 = vand.u32 %v2725, 8388607
        %v2727 = vor.u32 %v2726, 8388608
        %v2728 = vsub.s32 0, %v2727
        %v2729 = vadd.s32 %v2724, 1
        %vm2730 = vcmp.gt.s32.totalorder %v2729, 0
        %v2731 = vsel %vm2730, %v2729, 0
        %v2732 = vshrl.u32 %v2731, 5
        %v2733 = vand.u32 %v2731, 31
        %v2734 = vsub.s32 32, %v2733
        %v2735 = vshrl.u32 683565275, %v2734
        %v2736 = vshll.u32 683565275, %v2733
        %v2737 = vshrl.u32 2475754826, %v2734
        %v2738 = vor.u32 %v2736, %v2737
        %v2739 = vshll.u32 2475754826, %v2733
        %v2740 = vshrl.u32 2131351028, %v2734
        %v2741 = vor.u32 %v2739, %v2740
        %v2742 = vshll.u32 2131351028, %v2733
        %v2743 = vshrl.u32 2102212464, %v2734
        %v2744 = vor.u32 %v2742, %v2743
        %v2745 = vshll.u32 2102212464, %v2733
        %v2746 = vshrl.u32 920167782, %v2734
        %v2747 = vor.u32 %v2745, %v2746
        %v2748 = vshll.u32 920167782, %v2733
        %v2749 = vshrl.u32 1326507024, %v2734
        %v2750 = vor.u32 %v2748, %v2749
        %vm2751 = vcmp.lt.s32.totalorder %v2732, 1
        %vm2752 = vcmp.lt.s32.totalorder %v2732, 2
        %vm2753 = vcmp.lt.s32.totalorder %v2732, 3
        %vm2754 = vcmp.lt.s32.totalorder %v2732, 4
        %v2755 = vsel %vm2751, %v2735, %v2738
        %v2756 = vsel %vm2754, %v2744, 2102212464
        %v2757 = vsel %vm2753, %v2741, %v2756
        %v2758 = vsel %vm2752, %v2755, %v2757
        %v2759 = vsel %vm2751, %v2738, %v2741
        %v2760 = vsel %vm2754, %v2747, 920167782
        %v2761 = vsel %vm2753, %v2744, %v2760
        %v2762 = vsel %vm2752, %v2759, %v2761
        %v2763 = vsel %vm2751, %v2741, %v2744
        %v2764 = vsel %vm2754, %v2750, 1326507024
        %v2765 = vsel %vm2753, %v2747, %v2764
        %v2766 = vsel %vm2752, %v2763, %v2765
        %v2767 = vshll.u32 %v2727, 8
        %v2768 = vmul.u32.u64.compose %v2767, %v2766
        %v2769 = vextract.low.u32 %v2768
        %v2770 = vextract.high.u32 %v2768
        %v2771 = vmul.u32.u64.compose %v2767, %v2762
        %v2772 = vextract.low.u32 %v2771
        %v2773 = vextract.high.u32 %v2771
        %v2774 = vmul.u32 %v2767, %v2758
        %v2775 = vadd.s32 %v2770, %v2772
        %vm2776 = vc.u32 %v2770, %v2772
        %v2777 = vadd.s32 %v2773, 1
        %v2778 = vsel %vm2776, %v2777, %v2773
        %v2779 = vadd.s32 %v2774, %v2778
        %v2780 = vadd.s32 %v2779, 536870912
        %v2781 = vshrl.u32 %v2780, 30
        %v2782 = vshll.u32 %v2781, 30
        %v2783 = vsub.s32 %v2779, %v2782
        %vm2784 = vcmp.lt.s32.totalorder %v2783, 0
        %v2785 = vsub.s32 0, %v2783
        %v2786 = vsel %vm2784, %v2785, %v2783
        %v2787 = vclz %v2786
        %v2788 = vsub.s32 %v2787, 2
        %vm2789 = vcmp.gt.s32.totalorder 0, %v2788
        %v2790 = vsel %vm2789, 0, %v2788
        %v2791 = vsub.s32 32, %v2790
        %v2792 = vshll.u32 %v2783, %v2790
        %v2793 = vshrl.u32 %v2775, %v2791
        %v2794 = vor.u32 %v2792, %v2793
        %v2795 = vsub.s32 4294967266, %v2790
        %v2796 = vadd.s32 %v2795, 127
        %v2797 = vshll.u32 %v2796, 23
        %v2798 = vor.u32 4788187, %v2797
        %v2799 = vand.u32 2147483647, %v2798
        %v2801 = vcvt.s32.f32 %v2794
        %v2802 = vmul.f32 %v2801, %v2799
        %v2803 = vxor.u32 %v2802, 2147483648
        %v2804 = vsel %vm2721, %v2803, %v2802
        %v2805 = vsub.s32 4, %v2781
        %v2806 = vsel %vm2721, %v2805, %v2781
        %v2807 = vsel %vm2720, %v2344, %v2804
        %v2808 = vsel %vm2720, 0, %v2806
        %v2809 = vcosq.f32.pop %v2807
        %v2810 = vsinq.f32.pop %v2807
        %vm2811 = vweird.f32 %v2344
        %v2812 = vadd.s32 %v2808, 3
        %v2813 = vand.u32 %v2812, 3
        %vm2814 = vcmp.lt.s32.totalorder %v2813, 2
        %vm2815 = vcmp.eq.s32.totalorder %v2813, 0
        %v2816 = vxor.u32 %v2810, 2147483648
        %v2817 = vsel %vm2815, %v2809, %v2816
        %vm2818 = vcmp.eq.s32.totalorder %v2813, 2
        %v2819 = vxor.u32 %v2809, 2147483648
        %v2820 = vsel %vm2818, %v2819, %v2810
        %v2821 = vsel %vm2814, %v2817, %v2820
        %v2822 = vsel %vm2811, nan, %v2821
        %v2823 = vand.u32 2147483647, %v2349
        %vm2824 = vcmp.le.f32.partialorder %v2823, 0.7853982
        %vm2825 = vcmp.lt.s32.totalorder %v2349, 0
        %v2826 = vand.u32 %v2349, 2139095040
        %v2827 = vshrl.u32 %v2826, 23
        %v2828 = vsub.s32 %v2827, 127
        %v2829 = vand.u32 2147483647, %v2349
        %v2830 = vand.u32 %v2829, 8388607
        %v2831 = vor.u32 %v2830, 8388608
        %v2832 = vsub.s32 0, %v2831
        %v2833 = vadd.s32 %v2828, 1
        %vm2834 = vcmp.gt.s32.totalorder %v2833, 0
        %v2835 = vsel %vm2834, %v2833, 0
        %v2836 = vshrl.u32 %v2835, 5
        %v2837 = vand.u32 %v2835, 31
        %v2838 = vsub.s32 32, %v2837
        %v2839 = vshrl.u32 683565275, %v2838
        %v2840 = vshll.u32 683565275, %v2837
        %v2841 = vshrl.u32 2475754826, %v2838
        %v2842 = vor.u32 %v2840, %v2841
        %v2843 = vshll.u32 2475754826, %v2837
        %v2844 = vshrl.u32 2131351028, %v2838
        %v2845 = vor.u32 %v2843, %v2844
        %v2846 = vshll.u32 2131351028, %v2837
        %v2847 = vshrl.u32 2102212464, %v2838
        %v2848 = vor.u32 %v2846, %v2847
        %v2849 = vshll.u32 2102212464, %v2837
        %v2850 = vshrl.u32 920167782, %v2838
        %v2851 = vor.u32 %v2849, %v2850
        %v2852 = vshll.u32 920167782, %v2837
        %v2853 = vshrl.u32 1326507024, %v2838
        %v2854 = vor.u32 %v2852, %v2853
        %vm2855 = vcmp.lt.s32.totalorder %v2836, 1
        %vm2856 = vcmp.lt.s32.totalorder %v2836, 2
        %vm2857 = vcmp.lt.s32.totalorder %v2836, 3
        %vm2858 = vcmp.lt.s32.totalorder %v2836, 4
        %v2859 = vsel %vm2855, %v2839, %v2842
        %v2860 = vsel %vm2858, %v2848, 2102212464
        %v2861 = vsel %vm2857, %v2845, %v2860
        %v2862 = vsel %vm2856, %v2859, %v2861
        %v2863 = vsel %vm2855, %v2842, %v2845
        %v2864 = vsel %vm2858, %v2851, 920167782
        %v2865 = vsel %vm2857, %v2848, %v2864
        %v2866 = vsel %vm2856, %v2863, %v2865
        %v2867 = vsel %vm2855, %v2845, %v2848
        %v2868 = vsel %vm2858, %v2854, 1326507024
        %v2869 = vsel %vm2857, %v2851, %v2868
        %v2870 = vsel %vm2856, %v2867, %v2869
        %v2871 = vshll.u32 %v2831, 8
        %v2872 = vmul.u32.u64.compose %v2871, %v2870
        %v2873 = vextract.low.u32 %v2872
        %v2874 = vextract.high.u32 %v2872
        %v2875 = vmul.u32.u64.compose %v2871, %v2866
        %v2876 = vextract.low.u32 %v2875
        %v2877 = vextract.high.u32 %v2875
        %v2878 = vmul.u32 %v2871, %v2862
        %v2879 = vadd.s32 %v2874, %v2876
        %vm2880 = vc.u32 %v2874, %v2876
        %v2881 = vadd.s32 %v2877, 1
        %v2882 = vsel %vm2880, %v2881, %v2877
        %v2883 = vadd.s32 %v2878, %v2882
        %v2884 = vadd.s32 %v2883, 536870912
        %v2885 = vshrl.u32 %v2884, 30
        %v2886 = vshll.u32 %v2885, 30
        %v2887 = vsub.s32 %v2883, %v2886
        %vm2888 = vcmp.lt.s32.totalorder %v2887, 0
        %v2889 = vsub.s32 0, %v2887
        %v2890 = vsel %vm2888, %v2889, %v2887
        %v2891 = vclz %v2890
        %v2892 = vsub.s32 %v2891, 2
        %vm2893 = vcmp.gt.s32.totalorder 0, %v2892
        %v2894 = vsel %vm2893, 0, %v2892
        %v2895 = vsub.s32 32, %v2894
        %v2896 = vshll.u32 %v2887, %v2894
        %v2897 = vshrl.u32 %v2879, %v2895
        %v2898 = vor.u32 %v2896, %v2897
        %v2899 = vsub.s32 4294967266, %v2894
        %v2900 = vadd.s32 %v2899, 127
        %v2901 = vshll.u32 %v2900, 23
        %v2902 = vor.u32 4788187, %v2901
        %v2903 = vand.u32 2147483647, %v2902
        %v2905 = vcvt.s32.f32 %v2898
        %v2906 = vmul.f32 %v2905, %v2903
        %v2907 = vxor.u32 %v2906, 2147483648
        %v2908 = vsel %vm2825, %v2907, %v2906
        %v2909 = vsub.s32 4, %v2885
        %v2910 = vsel %vm2825, %v2909, %v2885
        %v2911 = vsel %vm2824, %v2349, %v2908
        %v2912 = vsel %vm2824, 0, %v2910
        %v2913 = vcosq.f32.pop %v2911
        %v2914 = vsinq.f32.pop %v2911
        %vm2915 = vweird.f32 %v2349
        %v2916 = vadd.s32 %v2912, 3
        %v2917 = vand.u32 %v2916, 3
        %vm2918 = vcmp.lt.s32.totalorder %v2917, 2
        %vm2919 = vcmp.eq.s32.totalorder %v2917, 0
        %v2920 = vxor.u32 %v2914, 2147483648
        %v2921 = vsel %vm2919, %v2913, %v2920
        %vm2922 = vcmp.eq.s32.totalorder %v2917, 2
        %v2923 = vxor.u32 %v2913, 2147483648
        %v2924 = vsel %vm2922, %v2923, %v2914
        %v2925 = vsel %vm2918, %v2921, %v2924
        %v2926 = vsel %vm2915, nan, %v2925
        %v2927 = vand.u32 2147483647, %v2354
        %vm2928 = vcmp.le.f32.partialorder %v2927, 0.7853982
        %vm2929 = vcmp.lt.s32.totalorder %v2354, 0
        %v2930 = vand.u32 %v2354, 2139095040
        %v2931 = vshrl.u32 %v2930, 23
        %v2932 = vsub.s32 %v2931, 127
        %v2933 = vand.u32 2147483647, %v2354
        %v2934 = vand.u32 %v2933, 8388607
        %v2935 = vor.u32 %v2934, 8388608
        %v2936 = vsub.s32 0, %v2935
        %v2937 = vadd.s32 %v2932, 1
        %vm2938 = vcmp.gt.s32.totalorder %v2937, 0
        %v2939 = vsel %vm2938, %v2937, 0
        %v2940 = vshrl.u32 %v2939, 5
        %v2941 = vand.u32 %v2939, 31
        %v2942 = vsub.s32 32, %v2941
        %v2943 = vshrl.u32 683565275, %v2942
        %v2944 = vshll.u32 683565275, %v2941
        %v2945 = vshrl.u32 2475754826, %v2942
        %v2946 = vor.u32 %v2944, %v2945
        %v2947 = vshll.u32 2475754826, %v2941
        %v2948 = vshrl.u32 2131351028, %v2942
        %v2949 = vor.u32 %v2947, %v2948
        %v2950 = vshll.u32 2131351028, %v2941
        %v2951 = vshrl.u32 2102212464, %v2942
        %v2952 = vor.u32 %v2950, %v2951
        %v2953 = vshll.u32 2102212464, %v2941
        %v2954 = vshrl.u32 920167782, %v2942
        %v2955 = vor.u32 %v2953, %v2954
        %v2956 = vshll.u32 920167782, %v2941
        %v2957 = vshrl.u32 1326507024, %v2942
        %v2958 = vor.u32 %v2956, %v2957
        %vm2959 = vcmp.lt.s32.totalorder %v2940, 1
        %vm2960 = vcmp.lt.s32.totalorder %v2940, 2
        %vm2961 = vcmp.lt.s32.totalorder %v2940, 3
        %vm2962 = vcmp.lt.s32.totalorder %v2940, 4
        %v2963 = vsel %vm2959, %v2943, %v2946
        %v2964 = vsel %vm2962, %v2952, 2102212464
        %v2965 = vsel %vm2961, %v2949, %v2964
        %v2966 = vsel %vm2960, %v2963, %v2965
        %v2967 = vsel %vm2959, %v2946, %v2949
        %v2968 = vsel %vm2962, %v2955, 920167782
        %v2969 = vsel %vm2961, %v2952, %v2968
        %v2970 = vsel %vm2960, %v2967, %v2969
        %v2971 = vsel %vm2959, %v2949, %v2952
        %v2972 = vsel %vm2962, %v2958, 1326507024
        %v2973 = vsel %vm2961, %v2955, %v2972
        %v2974 = vsel %vm2960, %v2971, %v2973
        %v2975 = vshll.u32 %v2935, 8
        %v2976 = vmul.u32.u64.compose %v2975, %v2974
        %v2977 = vextract.low.u32 %v2976
        %v2978 = vextract.high.u32 %v2976
        %v2979 = vmul.u32.u64.compose %v2975, %v2970
        %v2980 = vextract.low.u32 %v2979
        %v2981 = vextract.high.u32 %v2979
        %v2982 = vmul.u32 %v2975, %v2966
        %v2983 = vadd.s32 %v2978, %v2980
        %vm2984 = vc.u32 %v2978, %v2980
        %v2985 = vadd.s32 %v2981, 1
        %v2986 = vsel %vm2984, %v2985, %v2981
        %v2987 = vadd.s32 %v2982, %v2986
        %v2988 = vadd.s32 %v2987, 536870912
        %v2989 = vshrl.u32 %v2988, 30
        %v2990 = vshll.u32 %v2989, 30
        %v2991 = vsub.s32 %v2987, %v2990
        %vm2992 = vcmp.lt.s32.totalorder %v2991, 0
        %v2993 = vsub.s32 0, %v2991
        %v2994 = vsel %vm2992, %v2993, %v2991
        %v2995 = vclz %v2994
        %v2996 = vsub.s32 %v2995, 2
        %vm2997 = vcmp.gt.s32.totalorder 0, %v2996
        %v2998 = vsel %vm2997, 0, %v2996
        %v2999 = vsub.s32 32, %v2998
        %v3000 = vshll.u32 %v2991, %v2998
        %v3001 = vshrl.u32 %v2983, %v2999
        %v3002 = vor.u32 %v3000, %v3001
        %v3003 = vsub.s32 4294967266, %v2998
        %v3004 = vadd.s32 %v3003, 127
        %v3005 = vshll.u32 %v3004, 23
        %v3006 = vor.u32 4788187, %v3005
        %v3007 = vand.u32 2147483647, %v3006
        %v3009 = vcvt.s32.f32 %v3002
        %v3010 = vmul.f32 %v3009, %v3007
        %v3011 = vxor.u32 %v3010, 2147483648
        %v3012 = vsel %vm2929, %v3011, %v3010
        %v3013 = vsub.s32 4, %v2989
        %v3014 = vsel %vm2929, %v3013, %v2989
        %v3015 = vsel %vm2928, %v2354, %v3012
        %v3016 = vsel %vm2928, 0, %v3014
        %v3017 = vcosq.f32.pop %v3015
        %v3018 = vsinq.f32.pop %v3015
        %vm3019 = vweird.f32 %v2354
        %v3020 = vadd.s32 %v3016, 3
        %v3021 = vand.u32 %v3020, 3
        %vm3022 = vcmp.lt.s32.totalorder %v3021, 2
        %vm3023 = vcmp.eq.s32.totalorder %v3021, 0
        %v3024 = vxor.u32 %v3018, 2147483648
        %v3025 = vsel %vm3023, %v3017, %v3024
        %vm3026 = vcmp.eq.s32.totalorder %v3021, 2
        %v3027 = vxor.u32 %v3017, 2147483648
        %v3028 = vsel %vm3026, %v3027, %v3018
        %v3029 = vsel %vm3022, %v3025, %v3028
        %v3030 = vsel %vm3019, nan, %v3029
        %v3031 = vand.u32 2147483647, %v2359
        %vm3032 = vcmp.le.f32.partialorder %v3031, 0.7853982
        %vm3033 = vcmp.lt.s32.totalorder %v2359, 0
        %v3034 = vand.u32 %v2359, 2139095040
        %v3035 = vshrl.u32 %v3034, 23
        %v3036 = vsub.s32 %v3035, 127
        %v3037 = vand.u32 2147483647, %v2359
        %v3038 = vand.u32 %v3037, 8388607
        %v3039 = vor.u32 %v3038, 8388608
        %v3040 = vsub.s32 0, %v3039
        %v3041 = vadd.s32 %v3036, 1
        %vm3042 = vcmp.gt.s32.totalorder %v3041, 0
        %v3043 = vsel %vm3042, %v3041, 0
        %v3044 = vshrl.u32 %v3043, 5
        %v3045 = vand.u32 %v3043, 31
        %v3046 = vsub.s32 32, %v3045
        %v3047 = vshrl.u32 683565275, %v3046
        %v3048 = vshll.u32 683565275, %v3045
        %v3049 = vshrl.u32 2475754826, %v3046
        %v3050 = vor.u32 %v3048, %v3049
        %v3051 = vshll.u32 2475754826, %v3045
        %v3052 = vshrl.u32 2131351028, %v3046
        %v3053 = vor.u32 %v3051, %v3052
        %v3054 = vshll.u32 2131351028, %v3045
        %v3055 = vshrl.u32 2102212464, %v3046
        %v3056 = vor.u32 %v3054, %v3055
        %v3057 = vshll.u32 2102212464, %v3045
        %v3058 = vshrl.u32 920167782, %v3046
        %v3059 = vor.u32 %v3057, %v3058
        %v3060 = vshll.u32 920167782, %v3045
        %v3061 = vshrl.u32 1326507024, %v3046
        %v3062 = vor.u32 %v3060, %v3061
        %vm3063 = vcmp.lt.s32.totalorder %v3044, 1
        %vm3064 = vcmp.lt.s32.totalorder %v3044, 2
        %vm3065 = vcmp.lt.s32.totalorder %v3044, 3
        %vm3066 = vcmp.lt.s32.totalorder %v3044, 4
        %v3067 = vsel %vm3063, %v3047, %v3050
        %v3068 = vsel %vm3066, %v3056, 2102212464
        %v3069 = vsel %vm3065, %v3053, %v3068
        %v3070 = vsel %vm3064, %v3067, %v3069
        %v3071 = vsel %vm3063, %v3050, %v3053
        %v3072 = vsel %vm3066, %v3059, 920167782
        %v3073 = vsel %vm3065, %v3056, %v3072
        %v3074 = vsel %vm3064, %v3071, %v3073
        %v3075 = vsel %vm3063, %v3053, %v3056
        %v3076 = vsel %vm3066, %v3062, 1326507024
        %v3077 = vsel %vm3065, %v3059, %v3076
        %v3078 = vsel %vm3064, %v3075, %v3077
        %v3079 = vshll.u32 %v3039, 8
        %v3080 = vmul.u32.u64.compose %v3079, %v3078
        %v3081 = vextract.low.u32 %v3080
        %v3082 = vextract.high.u32 %v3080
        %v3083 = vmul.u32.u64.compose %v3079, %v3074
        %v3084 = vextract.low.u32 %v3083
        %v3085 = vextract.high.u32 %v3083
        %v3086 = vmul.u32 %v3079, %v3070
        %v3087 = vadd.s32 %v3082, %v3084
        %vm3088 = vc.u32 %v3082, %v3084
        %v3089 = vadd.s32 %v3085, 1
        %v3090 = vsel %vm3088, %v3089, %v3085
        %v3091 = vadd.s32 %v3086, %v3090
        %v3092 = vadd.s32 %v3091, 536870912
        %v3093 = vshrl.u32 %v3092, 30
        %v3094 = vshll.u32 %v3093, 30
        %v3095 = vsub.s32 %v3091, %v3094
        %vm3096 = vcmp.lt.s32.totalorder %v3095, 0
        %v3097 = vsub.s32 0, %v3095
        %v3098 = vsel %vm3096, %v3097, %v3095
        %v3099 = vclz %v3098
        %v3100 = vsub.s32 %v3099, 2
        %vm3101 = vcmp.gt.s32.totalorder 0, %v3100
        %v3102 = vsel %vm3101, 0, %v3100
        %v3103 = vsub.s32 32, %v3102
        %v3104 = vshll.u32 %v3095, %v3102
        %v3105 = vshrl.u32 %v3087, %v3103
        %v3106 = vor.u32 %v3104, %v3105
        %v3107 = vsub.s32 4294967266, %v3102
        %v3108 = vadd.s32 %v3107, 127
        %v3109 = vshll.u32 %v3108, 23
        %v3110 = vor.u32 4788187, %v3109
        %v3111 = vand.u32 2147483647, %v3110
        %v3113 = vcvt.s32.f32 %v3106
        %v3114 = vmul.f32 %v3113, %v3111
        %v3115 = vxor.u32 %v3114, 2147483648
        %v3116 = vsel %vm3033, %v3115, %v3114
        %v3117 = vsub.s32 4, %v3093
        %v3118 = vsel %vm3033, %v3117, %v3093
        %v3119 = vsel %vm3032, %v2359, %v3116
        %v3120 = vsel %vm3032, 0, %v3118
        %v3121 = vcosq.f32.pop %v3119
        %v3122 = vsinq.f32.pop %v3119
        %vm3123 = vweird.f32 %v2359
        %v3124 = vadd.s32 %v3120, 3
        %v3125 = vand.u32 %v3124, 3
        %vm3126 = vcmp.lt.s32.totalorder %v3125, 2
        %vm3127 = vcmp.eq.s32.totalorder %v3125, 0
        %v3128 = vxor.u32 %v3122, 2147483648
        %v3129 = vsel %vm3127, %v3121, %v3128
        %vm3130 = vcmp.eq.s32.totalorder %v3125, 2
        %v3131 = vxor.u32 %v3121, 2147483648
        %v3132 = vsel %vm3130, %v3131, %v3122
        %v3133 = vsel %vm3126, %v3129, %v3132
        %v3134 = vsel %vm3123, nan, %v3133
        %v3135 = vand.u32 2147483647, %v2364
        %vm3136 = vcmp.le.f32.partialorder %v3135, 0.7853982
        %vm3137 = vcmp.lt.s32.totalorder %v2364, 0
        %v3138 = vand.u32 %v2364, 2139095040
        %v3139 = vshrl.u32 %v3138, 23
        %v3140 = vsub.s32 %v3139, 127
        %v3141 = vand.u32 2147483647, %v2364
        %v3142 = vand.u32 %v3141, 8388607
        %v3143 = vor.u32 %v3142, 8388608
        %v3144 = vsub.s32 0, %v3143
        %v3145 = vadd.s32 %v3140, 1
        %vm3146 = vcmp.gt.s32.totalorder %v3145, 0
        %v3147 = vsel %vm3146, %v3145, 0
        %v3148 = vshrl.u32 %v3147, 5
        %v3149 = vand.u32 %v3147, 31
        %v3150 = vsub.s32 32, %v3149
        %v3151 = vshrl.u32 683565275, %v3150
        %v3152 = vshll.u32 683565275, %v3149
        %v3153 = vshrl.u32 2475754826, %v3150
        %v3154 = vor.u32 %v3152, %v3153
        %v3155 = vshll.u32 2475754826, %v3149
        %v3156 = vshrl.u32 2131351028, %v3150
        %v3157 = vor.u32 %v3155, %v3156
        %v3158 = vshll.u32 2131351028, %v3149
        %v3159 = vshrl.u32 2102212464, %v3150
        %v3160 = vor.u32 %v3158, %v3159
        %v3161 = vshll.u32 2102212464, %v3149
        %v3162 = vshrl.u32 920167782, %v3150
        %v3163 = vor.u32 %v3161, %v3162
        %v3164 = vshll.u32 920167782, %v3149
        %v3165 = vshrl.u32 1326507024, %v3150
        %v3166 = vor.u32 %v3164, %v3165
        %vm3167 = vcmp.lt.s32.totalorder %v3148, 1
        %vm3168 = vcmp.lt.s32.totalorder %v3148, 2
        %vm3169 = vcmp.lt.s32.totalorder %v3148, 3
        %vm3170 = vcmp.lt.s32.totalorder %v3148, 4
        %v3171 = vsel %vm3167, %v3151, %v3154
        %v3172 = vsel %vm3170, %v3160, 2102212464
        %v3173 = vsel %vm3169, %v3157, %v3172
        %v3174 = vsel %vm3168, %v3171, %v3173
        %v3175 = vsel %vm3167, %v3154, %v3157
        %v3176 = vsel %vm3170, %v3163, 920167782
        %v3177 = vsel %vm3169, %v3160, %v3176
        %v3178 = vsel %vm3168, %v3175, %v3177
        %v3179 = vsel %vm3167, %v3157, %v3160
        %v3180 = vsel %vm3170, %v3166, 1326507024
        %v3181 = vsel %vm3169, %v3163, %v3180
        %v3182 = vsel %vm3168, %v3179, %v3181
        %v3183 = vshll.u32 %v3143, 8
        %v3184 = vmul.u32.u64.compose %v3183, %v3182
        %v3185 = vextract.low.u32 %v3184
        %v3186 = vextract.high.u32 %v3184
        %v3187 = vmul.u32.u64.compose %v3183, %v3178
        %v3188 = vextract.low.u32 %v3187
        %v3189 = vextract.high.u32 %v3187
        %v3190 = vmul.u32 %v3183, %v3174
        %v3191 = vadd.s32 %v3186, %v3188
        %vm3192 = vc.u32 %v3186, %v3188
        %v3193 = vadd.s32 %v3189, 1
        %v3194 = vsel %vm3192, %v3193, %v3189
        %v3195 = vadd.s32 %v3190, %v3194
        %v3196 = vadd.s32 %v3195, 536870912
        %v3197 = vshrl.u32 %v3196, 30
        %v3198 = vshll.u32 %v3197, 30
        %v3199 = vsub.s32 %v3195, %v3198
        %vm3200 = vcmp.lt.s32.totalorder %v3199, 0
        %v3201 = vsub.s32 0, %v3199
        %v3202 = vsel %vm3200, %v3201, %v3199
        %v3203 = vclz %v3202
        %v3204 = vsub.s32 %v3203, 2
        %vm3205 = vcmp.gt.s32.totalorder 0, %v3204
        %v3206 = vsel %vm3205, 0, %v3204
        %v3207 = vsub.s32 32, %v3206
        %v3208 = vshll.u32 %v3199, %v3206
        %v3209 = vshrl.u32 %v3191, %v3207
        %v3210 = vor.u32 %v3208, %v3209
        %v3211 = vsub.s32 4294967266, %v3206
        %v3212 = vadd.s32 %v3211, 127
        %v3213 = vshll.u32 %v3212, 23
        %v3214 = vor.u32 4788187, %v3213
        %v3215 = vand.u32 2147483647, %v3214
        %v3217 = vcvt.s32.f32 %v3210
        %v3218 = vmul.f32 %v3217, %v3215
        %v3219 = vxor.u32 %v3218, 2147483648
        %v3220 = vsel %vm3137, %v3219, %v3218
        %v3221 = vsub.s32 4, %v3197
        %v3222 = vsel %vm3137, %v3221, %v3197
        %v3223 = vsel %vm3136, %v2364, %v3220
        %v3224 = vsel %vm3136, 0, %v3222
        %v3225 = vcosq.f32.pop %v3223
        %v3226 = vsinq.f32.pop %v3223
        %vm3227 = vweird.f32 %v2364
        %v3228 = vadd.s32 %v3224, 3
        %v3229 = vand.u32 %v3228, 3
        %vm3230 = vcmp.lt.s32.totalorder %v3229, 2
        %vm3231 = vcmp.eq.s32.totalorder %v3229, 0
        %v3232 = vxor.u32 %v3226, 2147483648
        %v3233 = vsel %vm3231, %v3225, %v3232
        %vm3234 = vcmp.eq.s32.totalorder %v3229, 2
        %v3235 = vxor.u32 %v3225, 2147483648
        %v3236 = vsel %vm3234, %v3235, %v3226
        %v3237 = vsel %vm3230, %v3233, %v3236
        %v3238 = vsel %vm3227, nan, %v3237
        %v3239 = vand.u32 2147483647, %v2369
        %vm3240 = vcmp.le.f32.partialorder %v3239, 0.7853982
        %vm3241 = vcmp.lt.s32.totalorder %v2369, 0
        %v3242 = vand.u32 %v2369, 2139095040
        %v3243 = vshrl.u32 %v3242, 23
        %v3244 = vsub.s32 %v3243, 127
        %v3245 = vand.u32 2147483647, %v2369
        %v3246 = vand.u32 %v3245, 8388607
        %v3247 = vor.u32 %v3246, 8388608
        %v3248 = vsub.s32 0, %v3247
        %v3249 = vadd.s32 %v3244, 1
        %vm3250 = vcmp.gt.s32.totalorder %v3249, 0
        %v3251 = vsel %vm3250, %v3249, 0
        %v3252 = vshrl.u32 %v3251, 5
        %v3253 = vand.u32 %v3251, 31
        %v3254 = vsub.s32 32, %v3253
        %v3255 = vshrl.u32 683565275, %v3254
        %v3256 = vshll.u32 683565275, %v3253
        %v3257 = vshrl.u32 2475754826, %v3254
        %v3258 = vor.u32 %v3256, %v3257
        %v3259 = vshll.u32 2475754826, %v3253
        %v3260 = vshrl.u32 2131351028, %v3254
        %v3261 = vor.u32 %v3259, %v3260
        %v3262 = vshll.u32 2131351028, %v3253
        %v3263 = vshrl.u32 2102212464, %v3254
        %v3264 = vor.u32 %v3262, %v3263
        %v3265 = vshll.u32 2102212464, %v3253
        %v3266 = vshrl.u32 920167782, %v3254
        %v3267 = vor.u32 %v3265, %v3266
        %v3268 = vshll.u32 920167782, %v3253
        %v3269 = vshrl.u32 1326507024, %v3254
        %v3270 = vor.u32 %v3268, %v3269
        %vm3271 = vcmp.lt.s32.totalorder %v3252, 1
        %vm3272 = vcmp.lt.s32.totalorder %v3252, 2
        %vm3273 = vcmp.lt.s32.totalorder %v3252, 3
        %vm3274 = vcmp.lt.s32.totalorder %v3252, 4
        %v3275 = vsel %vm3271, %v3255, %v3258
        %v3276 = vsel %vm3274, %v3264, 2102212464
        %v3277 = vsel %vm3273, %v3261, %v3276
        %v3278 = vsel %vm3272, %v3275, %v3277
        %v3279 = vsel %vm3271, %v3258, %v3261
        %v3280 = vsel %vm3274, %v3267, 920167782
        %v3281 = vsel %vm3273, %v3264, %v3280
        %v3282 = vsel %vm3272, %v3279, %v3281
        %v3283 = vsel %vm3271, %v3261, %v3264
        %v3284 = vsel %vm3274, %v3270, 1326507024
        %v3285 = vsel %vm3273, %v3267, %v3284
        %v3286 = vsel %vm3272, %v3283, %v3285
        %v3287 = vshll.u32 %v3247, 8
        %v3288 = vmul.u32.u64.compose %v3287, %v3286
        %v3289 = vextract.low.u32 %v3288
        %v3290 = vextract.high.u32 %v3288
        %v3291 = vmul.u32.u64.compose %v3287, %v3282
        %v3292 = vextract.low.u32 %v3291
        %v3293 = vextract.high.u32 %v3291
        %v3294 = vmul.u32 %v3287, %v3278
        %v3295 = vadd.s32 %v3290, %v3292
        %vm3296 = vc.u32 %v3290, %v3292
        %v3297 = vadd.s32 %v3293, 1
        %v3298 = vsel %vm3296, %v3297, %v3293
        %v3299 = vadd.s32 %v3294, %v3298
        %v3300 = vadd.s32 %v3299, 536870912
        %v3301 = vshrl.u32 %v3300, 30
        %v3302 = vshll.u32 %v3301, 30
        %v3303 = vsub.s32 %v3299, %v3302
        %vm3304 = vcmp.lt.s32.totalorder %v3303, 0
        %v3305 = vsub.s32 0, %v3303
        %v3306 = vsel %vm3304, %v3305, %v3303
        %v3307 = vclz %v3306
        %v3308 = vsub.s32 %v3307, 2
        %vm3309 = vcmp.gt.s32.totalorder 0, %v3308
        %v3310 = vsel %vm3309, 0, %v3308
        %v3311 = vsub.s32 32, %v3310
        %v3312 = vshll.u32 %v3303, %v3310
        %v3313 = vshrl.u32 %v3295, %v3311
        %v3314 = vor.u32 %v3312, %v3313
        %v3315 = vsub.s32 4294967266, %v3310
        %v3316 = vadd.s32 %v3315, 127
        %v3317 = vshll.u32 %v3316, 23
        %v3318 = vor.u32 4788187, %v3317
        %v3319 = vand.u32 2147483647, %v3318
        %v3321 = vcvt.s32.f32 %v3314
        %v3322 = vmul.f32 %v3321, %v3319
        %v3323 = vxor.u32 %v3322, 2147483648
        %v3324 = vsel %vm3241, %v3323, %v3322
        %v3325 = vsub.s32 4, %v3301
        %v3326 = vsel %vm3241, %v3325, %v3301
        %v3327 = vsel %vm3240, %v2369, %v3324
        %v3328 = vsel %vm3240, 0, %v3326
        %v3329 = vcosq.f32.pop %v3327
        %v3330 = vsinq.f32.pop %v3327
        %vm3331 = vweird.f32 %v2369
        %v3332 = vadd.s32 %v3328, 3
        %v3333 = vand.u32 %v3332, 3
        %vm3334 = vcmp.lt.s32.totalorder %v3333, 2
        %vm3335 = vcmp.eq.s32.totalorder %v3333, 0
        %v3336 = vxor.u32 %v3330, 2147483648
        %v3337 = vsel %vm3335, %v3329, %v3336
        %vm3338 = vcmp.eq.s32.totalorder %v3333, 2
        %v3339 = vxor.u32 %v3329, 2147483648
        %v3340 = vsel %vm3338, %v3339, %v3330
        %v3341 = vsel %vm3334, %v3337, %v3340
        %v3342 = vsel %vm3331, nan, %v3341
        %v3343 = vand.u32 2147483647, %v2374
        %vm3344 = vcmp.le.f32.partialorder %v3343, 0.7853982
        %vm3345 = vcmp.lt.s32.totalorder %v2374, 0
        %v3346 = vand.u32 %v2374, 2139095040
        %v3347 = vshrl.u32 %v3346, 23
        %v3348 = vsub.s32 %v3347, 127
        %v3349 = vand.u32 2147483647, %v2374
        %v3350 = vand.u32 %v3349, 8388607
        %v3351 = vor.u32 %v3350, 8388608
        %v3352 = vsub.s32 0, %v3351
        %v3353 = vadd.s32 %v3348, 1
        %vm3354 = vcmp.gt.s32.totalorder %v3353, 0
        %v3355 = vsel %vm3354, %v3353, 0
        %v3356 = vshrl.u32 %v3355, 5
        %v3357 = vand.u32 %v3355, 31
        %v3358 = vsub.s32 32, %v3357
        %v3359 = vshrl.u32 683565275, %v3358
        %v3360 = vshll.u32 683565275, %v3357
        %v3361 = vshrl.u32 2475754826, %v3358
        %v3362 = vor.u32 %v3360, %v3361
        %v3363 = vshll.u32 2475754826, %v3357
        %v3364 = vshrl.u32 2131351028, %v3358
        %v3365 = vor.u32 %v3363, %v3364
        %v3366 = vshll.u32 2131351028, %v3357
        %v3367 = vshrl.u32 2102212464, %v3358
        %v3368 = vor.u32 %v3366, %v3367
        %v3369 = vshll.u32 2102212464, %v3357
        %v3370 = vshrl.u32 920167782, %v3358
        %v3371 = vor.u32 %v3369, %v3370
        %v3372 = vshll.u32 920167782, %v3357
        %v3373 = vshrl.u32 1326507024, %v3358
        %v3374 = vor.u32 %v3372, %v3373
        %vm3375 = vcmp.lt.s32.totalorder %v3356, 1
        %vm3376 = vcmp.lt.s32.totalorder %v3356, 2
        %vm3377 = vcmp.lt.s32.totalorder %v3356, 3
        %vm3378 = vcmp.lt.s32.totalorder %v3356, 4
        %v3379 = vsel %vm3375, %v3359, %v3362
        %v3380 = vsel %vm3378, %v3368, 2102212464
        %v3381 = vsel %vm3377, %v3365, %v3380
        %v3382 = vsel %vm3376, %v3379, %v3381
        %v3383 = vsel %vm3375, %v3362, %v3365
        %v3384 = vsel %vm3378, %v3371, 920167782
        %v3385 = vsel %vm3377, %v3368, %v3384
        %v3386 = vsel %vm3376, %v3383, %v3385
        %v3387 = vsel %vm3375, %v3365, %v3368
        %v3388 = vsel %vm3378, %v3374, 1326507024
        %v3389 = vsel %vm3377, %v3371, %v3388
        %v3390 = vsel %vm3376, %v3387, %v3389
        %v3391 = vshll.u32 %v3351, 8
        %v3392 = vmul.u32.u64.compose %v3391, %v3390
        %v3393 = vextract.low.u32 %v3392
        %v3394 = vextract.high.u32 %v3392
        %v3395 = vmul.u32.u64.compose %v3391, %v3386
        %v3396 = vextract.low.u32 %v3395
        %v3397 = vextract.high.u32 %v3395
        %v3398 = vmul.u32 %v3391, %v3382
        %v3399 = vadd.s32 %v3394, %v3396
        %vm3400 = vc.u32 %v3394, %v3396
        %v3401 = vadd.s32 %v3397, 1
        %v3402 = vsel %vm3400, %v3401, %v3397
        %v3403 = vadd.s32 %v3398, %v3402
        %v3404 = vadd.s32 %v3403, 536870912
        %v3405 = vshrl.u32 %v3404, 30
        %v3406 = vshll.u32 %v3405, 30
        %v3407 = vsub.s32 %v3403, %v3406
        %vm3408 = vcmp.lt.s32.totalorder %v3407, 0
        %v3409 = vsub.s32 0, %v3407
        %v3410 = vsel %vm3408, %v3409, %v3407
        %v3411 = vclz %v3410
        %v3412 = vsub.s32 %v3411, 2
        %vm3413 = vcmp.gt.s32.totalorder 0, %v3412
        %v3414 = vsel %vm3413, 0, %v3412
        %v3415 = vsub.s32 32, %v3414
        %v3416 = vshll.u32 %v3407, %v3414
        %v3417 = vshrl.u32 %v3399, %v3415
        %v3418 = vor.u32 %v3416, %v3417
        %v3419 = vsub.s32 4294967266, %v3414
        %v3420 = vadd.s32 %v3419, 127
        %v3421 = vshll.u32 %v3420, 23
        %v3422 = vor.u32 4788187, %v3421
        %v3423 = vand.u32 2147483647, %v3422
        %v3425 = vcvt.s32.f32 %v3418
        %v3426 = vmul.f32 %v3425, %v3423
        %v3427 = vxor.u32 %v3426, 2147483648
        %v3428 = vsel %vm3345, %v3427, %v3426
        %v3429 = vsub.s32 4, %v3405
        %v3430 = vsel %vm3345, %v3429, %v3405
        %v3431 = vsel %vm3344, %v2374, %v3428
        %v3432 = vsel %vm3344, 0, %v3430
        %v3433 = vcosq.f32.pop %v3431
        %v3434 = vsinq.f32.pop %v3431
        %vm3435 = vweird.f32 %v2374
        %v3436 = vadd.s32 %v3432, 3
        %v3437 = vand.u32 %v3436, 3
        %vm3438 = vcmp.lt.s32.totalorder %v3437, 2
        %vm3439 = vcmp.eq.s32.totalorder %v3437, 0
        %v3440 = vxor.u32 %v3434, 2147483648
        %v3441 = vsel %vm3439, %v3433, %v3440
        %vm3442 = vcmp.eq.s32.totalorder %v3437, 2
        %v3443 = vxor.u32 %v3433, 2147483648
        %v3444 = vsel %vm3442, %v3443, %v3434
        %v3445 = vsel %vm3438, %v3441, %v3444
        %v3446 = vsel %vm3435, nan, %v3445
        %v3447 = vand.u32 2147483647, %v2379
        %vm3448 = vcmp.le.f32.partialorder %v3447, 0.7853982
        %vm3449 = vcmp.lt.s32.totalorder %v2379, 0
        %v3450 = vand.u32 %v2379, 2139095040
        %v3451 = vshrl.u32 %v3450, 23
        %v3452 = vsub.s32 %v3451, 127
        %v3453 = vand.u32 2147483647, %v2379
        %v3454 = vand.u32 %v3453, 8388607
        %v3455 = vor.u32 %v3454, 8388608
        %v3456 = vsub.s32 0, %v3455
        %v3457 = vadd.s32 %v3452, 1
        %vm3458 = vcmp.gt.s32.totalorder %v3457, 0
        %v3459 = vsel %vm3458, %v3457, 0
        %v3460 = vshrl.u32 %v3459, 5
        %v3461 = vand.u32 %v3459, 31
        %v3462 = vsub.s32 32, %v3461
        %v3463 = vshrl.u32 683565275, %v3462
        %v3464 = vshll.u32 683565275, %v3461
        %v3465 = vshrl.u32 2475754826, %v3462
        %v3466 = vor.u32 %v3464, %v3465
        %v3467 = vshll.u32 2475754826, %v3461
        %v3468 = vshrl.u32 2131351028, %v3462
        %v3469 = vor.u32 %v3467, %v3468
        %v3470 = vshll.u32 2131351028, %v3461
        %v3471 = vshrl.u32 2102212464, %v3462
        %v3472 = vor.u32 %v3470, %v3471
        %v3473 = vshll.u32 2102212464, %v3461
        %v3474 = vshrl.u32 920167782, %v3462
        %v3475 = vor.u32 %v3473, %v3474
        %v3476 = vshll.u32 920167782, %v3461
        %v3477 = vshrl.u32 1326507024, %v3462
        %v3478 = vor.u32 %v3476, %v3477
        %vm3479 = vcmp.lt.s32.totalorder %v3460, 1
        %vm3480 = vcmp.lt.s32.totalorder %v3460, 2
        %vm3481 = vcmp.lt.s32.totalorder %v3460, 3
        %vm3482 = vcmp.lt.s32.totalorder %v3460, 4
        %v3483 = vsel %vm3479, %v3463, %v3466
        %v3484 = vsel %vm3482, %v3472, 2102212464
        %v3485 = vsel %vm3481, %v3469, %v3484
        %v3486 = vsel %vm3480, %v3483, %v3485
        %v3487 = vsel %vm3479, %v3466, %v3469
        %v3488 = vsel %vm3482, %v3475, 920167782
        %v3489 = vsel %vm3481, %v3472, %v3488
        %v3490 = vsel %vm3480, %v3487, %v3489
        %v3491 = vsel %vm3479, %v3469, %v3472
        %v3492 = vsel %vm3482, %v3478, 1326507024
        %v3493 = vsel %vm3481, %v3475, %v3492
        %v3494 = vsel %vm3480, %v3491, %v3493
        %v3495 = vshll.u32 %v3455, 8
        %v3496 = vmul.u32.u64.compose %v3495, %v3494
        %v3497 = vextract.low.u32 %v3496
        %v3498 = vextract.high.u32 %v3496
        %v3499 = vmul.u32.u64.compose %v3495, %v3490
        %v3500 = vextract.low.u32 %v3499
        %v3501 = vextract.high.u32 %v3499
        %v3502 = vmul.u32 %v3495, %v3486
        %v3503 = vadd.s32 %v3498, %v3500
        %vm3504 = vc.u32 %v3498, %v3500
        %v3505 = vadd.s32 %v3501, 1
        %v3506 = vsel %vm3504, %v3505, %v3501
        %v3507 = vadd.s32 %v3502, %v3506
        %v3508 = vadd.s32 %v3507, 536870912
        %v3509 = vshrl.u32 %v3508, 30
        %v3510 = vshll.u32 %v3509, 30
        %v3511 = vsub.s32 %v3507, %v3510
        %vm3512 = vcmp.lt.s32.totalorder %v3511, 0
        %v3513 = vsub.s32 0, %v3511
        %v3514 = vsel %vm3512, %v3513, %v3511
        %v3515 = vclz %v3514
        %v3516 = vsub.s32 %v3515, 2
        %vm3517 = vcmp.gt.s32.totalorder 0, %v3516
        %v3518 = vsel %vm3517, 0, %v3516
        %v3519 = vsub.s32 32, %v3518
        %v3520 = vshll.u32 %v3511, %v3518
        %v3521 = vshrl.u32 %v3503, %v3519
        %v3522 = vor.u32 %v3520, %v3521
        %v3523 = vsub.s32 4294967266, %v3518
        %v3524 = vadd.s32 %v3523, 127
        %v3525 = vshll.u32 %v3524, 23
        %v3526 = vor.u32 4788187, %v3525
        %v3527 = vand.u32 2147483647, %v3526
        %v3529 = vcvt.s32.f32 %v3522
        %v3530 = vmul.f32 %v3529, %v3527
        %v3531 = vxor.u32 %v3530, 2147483648
        %v3532 = vsel %vm3449, %v3531, %v3530
        %v3533 = vsub.s32 4, %v3509
        %v3534 = vsel %vm3449, %v3533, %v3509
        %v3535 = vsel %vm3448, %v2379, %v3532
        %v3536 = vsel %vm3448, 0, %v3534
        %v3537 = vcosq.f32.pop %v3535
        %v3538 = vsinq.f32.pop %v3535
        %vm3539 = vweird.f32 %v2379
        %v3540 = vadd.s32 %v3536, 3
        %v3541 = vand.u32 %v3540, 3
        %vm3542 = vcmp.lt.s32.totalorder %v3541, 2
        %vm3543 = vcmp.eq.s32.totalorder %v3541, 0
        %v3544 = vxor.u32 %v3538, 2147483648
        %v3545 = vsel %vm3543, %v3537, %v3544
        %vm3546 = vcmp.eq.s32.totalorder %v3541, 2
        %v3547 = vxor.u32 %v3537, 2147483648
        %v3548 = vsel %vm3546, %v3547, %v3538
        %v3549 = vsel %vm3542, %v3545, %v3548
        %v3550 = vsel %vm3539, nan, %v3549
        %v3551 = vand.u32 2147483647, %v2384
        %vm3552 = vcmp.le.f32.partialorder %v3551, 0.7853982
        %vm3553 = vcmp.lt.s32.totalorder %v2384, 0
        %v3554 = vand.u32 %v2384, 2139095040
        %v3555 = vshrl.u32 %v3554, 23
        %v3556 = vsub.s32 %v3555, 127
        %v3557 = vand.u32 2147483647, %v2384
        %v3558 = vand.u32 %v3557, 8388607
        %v3559 = vor.u32 %v3558, 8388608
        %v3560 = vsub.s32 0, %v3559
        %v3561 = vadd.s32 %v3556, 1
        %vm3562 = vcmp.gt.s32.totalorder %v3561, 0
        %v3563 = vsel %vm3562, %v3561, 0
        %v3564 = vshrl.u32 %v3563, 5
        %v3565 = vand.u32 %v3563, 31
        %v3566 = vsub.s32 32, %v3565
        %v3567 = vshrl.u32 683565275, %v3566
        %v3568 = vshll.u32 683565275, %v3565
        %v3569 = vshrl.u32 2475754826, %v3566
        %v3570 = vor.u32 %v3568, %v3569
        %v3571 = vshll.u32 2475754826, %v3565
        %v3572 = vshrl.u32 2131351028, %v3566
        %v3573 = vor.u32 %v3571, %v3572
        %v3574 = vshll.u32 2131351028, %v3565
        %v3575 = vshrl.u32 2102212464, %v3566
        %v3576 = vor.u32 %v3574, %v3575
        %v3577 = vshll.u32 2102212464, %v3565
        %v3578 = vshrl.u32 920167782, %v3566
        %v3579 = vor.u32 %v3577, %v3578
        %v3580 = vshll.u32 920167782, %v3565
        %v3581 = vshrl.u32 1326507024, %v3566
        %v3582 = vor.u32 %v3580, %v3581
        %vm3583 = vcmp.lt.s32.totalorder %v3564, 1
        %vm3584 = vcmp.lt.s32.totalorder %v3564, 2
        %vm3585 = vcmp.lt.s32.totalorder %v3564, 3
        %vm3586 = vcmp.lt.s32.totalorder %v3564, 4
        %v3587 = vsel %vm3583, %v3567, %v3570
        %v3588 = vsel %vm3586, %v3576, 2102212464
        %v3589 = vsel %vm3585, %v3573, %v3588
        %v3590 = vsel %vm3584, %v3587, %v3589
        %v3591 = vsel %vm3583, %v3570, %v3573
        %v3592 = vsel %vm3586, %v3579, 920167782
        %v3593 = vsel %vm3585, %v3576, %v3592
        %v3594 = vsel %vm3584, %v3591, %v3593
        %v3595 = vsel %vm3583, %v3573, %v3576
        %v3596 = vsel %vm3586, %v3582, 1326507024
        %v3597 = vsel %vm3585, %v3579, %v3596
        %v3598 = vsel %vm3584, %v3595, %v3597
        %v3599 = vshll.u32 %v3559, 8
        %v3600 = vmul.u32.u64.compose %v3599, %v3598
        %v3601 = vextract.low.u32 %v3600
        %v3602 = vextract.high.u32 %v3600
        %v3603 = vmul.u32.u64.compose %v3599, %v3594
        %v3604 = vextract.low.u32 %v3603
        %v3605 = vextract.high.u32 %v3603
        %v3606 = vmul.u32 %v3599, %v3590
        %v3607 = vadd.s32 %v3602, %v3604
        %vm3608 = vc.u32 %v3602, %v3604
        %v3609 = vadd.s32 %v3605, 1
        %v3610 = vsel %vm3608, %v3609, %v3605
        %v3611 = vadd.s32 %v3606, %v3610
        %v3612 = vadd.s32 %v3611, 536870912
        %v3613 = vshrl.u32 %v3612, 30
        %v3614 = vshll.u32 %v3613, 30
        %v3615 = vsub.s32 %v3611, %v3614
        %vm3616 = vcmp.lt.s32.totalorder %v3615, 0
        %v3617 = vsub.s32 0, %v3615
        %v3618 = vsel %vm3616, %v3617, %v3615
        %v3619 = vclz %v3618
        %v3620 = vsub.s32 %v3619, 2
        %vm3621 = vcmp.gt.s32.totalorder 0, %v3620
        %v3622 = vsel %vm3621, 0, %v3620
        %v3623 = vsub.s32 32, %v3622
        %v3624 = vshll.u32 %v3615, %v3622
        %v3625 = vshrl.u32 %v3607, %v3623
        %v3626 = vor.u32 %v3624, %v3625
        %v3627 = vsub.s32 4294967266, %v3622
        %v3628 = vadd.s32 %v3627, 127
        %v3629 = vshll.u32 %v3628, 23
        %v3630 = vor.u32 4788187, %v3629
        %v3631 = vand.u32 2147483647, %v3630
        %v3633 = vcvt.s32.f32 %v3626
        %v3634 = vmul.f32 %v3633, %v3631
        %v3635 = vxor.u32 %v3634, 2147483648
        %v3636 = vsel %vm3553, %v3635, %v3634
        %v3637 = vsub.s32 4, %v3613
        %v3638 = vsel %vm3553, %v3637, %v3613
        %v3639 = vsel %vm3552, %v2384, %v3636
        %v3640 = vsel %vm3552, 0, %v3638
        %v3641 = vcosq.f32.pop %v3639
        %v3642 = vsinq.f32.pop %v3639
        %vm3643 = vweird.f32 %v2384
        %v3644 = vadd.s32 %v3640, 3
        %v3645 = vand.u32 %v3644, 3
        %vm3646 = vcmp.lt.s32.totalorder %v3645, 2
        %vm3647 = vcmp.eq.s32.totalorder %v3645, 0
        %v3648 = vxor.u32 %v3642, 2147483648
        %v3649 = vsel %vm3647, %v3641, %v3648
        %vm3650 = vcmp.eq.s32.totalorder %v3645, 2
        %v3651 = vxor.u32 %v3641, 2147483648
        %v3652 = vsel %vm3650, %v3651, %v3642
        %v3653 = vsel %vm3646, %v3649, %v3652
        %v3654 = vsel %vm3643, nan, %v3653
        %v3655 = vand.u32 2147483647, %v2389
        %vm3656 = vcmp.le.f32.partialorder %v3655, 0.7853982
        %vm3657 = vcmp.lt.s32.totalorder %v2389, 0
        %v3658 = vand.u32 %v2389, 2139095040
        %v3659 = vshrl.u32 %v3658, 23
        %v3660 = vsub.s32 %v3659, 127
        %v3661 = vand.u32 2147483647, %v2389
        %v3662 = vand.u32 %v3661, 8388607
        %v3663 = vor.u32 %v3662, 8388608
        %v3664 = vsub.s32 0, %v3663
        %v3665 = vadd.s32 %v3660, 1
        %vm3666 = vcmp.gt.s32.totalorder %v3665, 0
        %v3667 = vsel %vm3666, %v3665, 0
        %v3668 = vshrl.u32 %v3667, 5
        %v3669 = vand.u32 %v3667, 31
        %v3670 = vsub.s32 32, %v3669
        %v3671 = vshrl.u32 683565275, %v3670
        %v3672 = vshll.u32 683565275, %v3669
        %v3673 = vshrl.u32 2475754826, %v3670
        %v3674 = vor.u32 %v3672, %v3673
        %v3675 = vshll.u32 2475754826, %v3669
        %v3676 = vshrl.u32 2131351028, %v3670
        %v3677 = vor.u32 %v3675, %v3676
        %v3678 = vshll.u32 2131351028, %v3669
        %v3679 = vshrl.u32 2102212464, %v3670
        %v3680 = vor.u32 %v3678, %v3679
        %v3681 = vshll.u32 2102212464, %v3669
        %v3682 = vshrl.u32 920167782, %v3670
        %v3683 = vor.u32 %v3681, %v3682
        %v3684 = vshll.u32 920167782, %v3669
        %v3685 = vshrl.u32 1326507024, %v3670
        %v3686 = vor.u32 %v3684, %v3685
        %vm3687 = vcmp.lt.s32.totalorder %v3668, 1
        %vm3688 = vcmp.lt.s32.totalorder %v3668, 2
        %vm3689 = vcmp.lt.s32.totalorder %v3668, 3
        %vm3690 = vcmp.lt.s32.totalorder %v3668, 4
        %v3691 = vsel %vm3687, %v3671, %v3674
        %v3692 = vsel %vm3690, %v3680, 2102212464
        %v3693 = vsel %vm3689, %v3677, %v3692
        %v3694 = vsel %vm3688, %v3691, %v3693
        %v3695 = vsel %vm3687, %v3674, %v3677
        %v3696 = vsel %vm3690, %v3683, 920167782
        %v3697 = vsel %vm3689, %v3680, %v3696
        %v3698 = vsel %vm3688, %v3695, %v3697
        %v3699 = vsel %vm3687, %v3677, %v3680
        %v3700 = vsel %vm3690, %v3686, 1326507024
        %v3701 = vsel %vm3689, %v3683, %v3700
        %v3702 = vsel %vm3688, %v3699, %v3701
        %v3703 = vshll.u32 %v3663, 8
        %v3704 = vmul.u32.u64.compose %v3703, %v3702
        %v3705 = vextract.low.u32 %v3704
        %v3706 = vextract.high.u32 %v3704
        %v3707 = vmul.u32.u64.compose %v3703, %v3698
        %v3708 = vextract.low.u32 %v3707
        %v3709 = vextract.high.u32 %v3707
        %v3710 = vmul.u32 %v3703, %v3694
        %v3711 = vadd.s32 %v3706, %v3708
        %vm3712 = vc.u32 %v3706, %v3708
        %v3713 = vadd.s32 %v3709, 1
        %v3714 = vsel %vm3712, %v3713, %v3709
        %v3715 = vadd.s32 %v3710, %v3714
        %v3716 = vadd.s32 %v3715, 536870912
        %v3717 = vshrl.u32 %v3716, 30
        %v3718 = vshll.u32 %v3717, 30
        %v3719 = vsub.s32 %v3715, %v3718
        %vm3720 = vcmp.lt.s32.totalorder %v3719, 0
        %v3721 = vsub.s32 0, %v3719
        %v3722 = vsel %vm3720, %v3721, %v3719
        %v3723 = vclz %v3722
        %v3724 = vsub.s32 %v3723, 2
        %vm3725 = vcmp.gt.s32.totalorder 0, %v3724
        %v3726 = vsel %vm3725, 0, %v3724
        %v3727 = vsub.s32 32, %v3726
        %v3728 = vshll.u32 %v3719, %v3726
        %v3729 = vshrl.u32 %v3711, %v3727
        %v3730 = vor.u32 %v3728, %v3729
        %v3731 = vsub.s32 4294967266, %v3726
        %v3732 = vadd.s32 %v3731, 127
        %v3733 = vshll.u32 %v3732, 23
        %v3734 = vor.u32 4788187, %v3733
        %v3735 = vand.u32 2147483647, %v3734
        %v3737 = vcvt.s32.f32 %v3730
        %v3738 = vmul.f32 %v3737, %v3735
        %v3739 = vxor.u32 %v3738, 2147483648
        %v3740 = vsel %vm3657, %v3739, %v3738
        %v3741 = vsub.s32 4, %v3717
        %v3742 = vsel %vm3657, %v3741, %v3717
        %v3743 = vsel %vm3656, %v2389, %v3740
        %v3744 = vsel %vm3656, 0, %v3742
        %v3745 = vcosq.f32.pop %v3743
        %v3746 = vsinq.f32.pop %v3743
        %vm3747 = vweird.f32 %v2389
        %v3748 = vadd.s32 %v3744, 3
        %v3749 = vand.u32 %v3748, 3
        %vm3750 = vcmp.lt.s32.totalorder %v3749, 2
        %vm3751 = vcmp.eq.s32.totalorder %v3749, 0
        %v3752 = vxor.u32 %v3746, 2147483648
        %v3753 = vsel %vm3751, %v3745, %v3752
        %vm3754 = vcmp.eq.s32.totalorder %v3749, 2
        %v3755 = vxor.u32 %v3745, 2147483648
        %v3756 = vsel %vm3754, %v3755, %v3746
        %v3757 = vsel %vm3750, %v3753, %v3756
        %v3758 = vsel %vm3747, nan, %v3757
        %v3759 = vand.u32 2147483647, %v2394
        %vm3760 = vcmp.le.f32.partialorder %v3759, 0.7853982
        %vm3761 = vcmp.lt.s32.totalorder %v2394, 0
        %v3762 = vand.u32 %v2394, 2139095040
        %v3763 = vshrl.u32 %v3762, 23
        %v3764 = vsub.s32 %v3763, 127
        %v3765 = vand.u32 2147483647, %v2394
        %v3766 = vand.u32 %v3765, 8388607
        %v3767 = vor.u32 %v3766, 8388608
        %v3768 = vsub.s32 0, %v3767
        %v3769 = vadd.s32 %v3764, 1
        %vm3770 = vcmp.gt.s32.totalorder %v3769, 0
        %v3771 = vsel %vm3770, %v3769, 0
        %v3772 = vshrl.u32 %v3771, 5
        %v3773 = vand.u32 %v3771, 31
        %v3774 = vsub.s32 32, %v3773
        %v3775 = vshrl.u32 683565275, %v3774
        %v3776 = vshll.u32 683565275, %v3773
        %v3777 = vshrl.u32 2475754826, %v3774
        %v3778 = vor.u32 %v3776, %v3777
        %v3779 = vshll.u32 2475754826, %v3773
        %v3780 = vshrl.u32 2131351028, %v3774
        %v3781 = vor.u32 %v3779, %v3780
        %v3782 = vshll.u32 2131351028, %v3773
        %v3783 = vshrl.u32 2102212464, %v3774
        %v3784 = vor.u32 %v3782, %v3783
        %v3785 = vshll.u32 2102212464, %v3773
        %v3786 = vshrl.u32 920167782, %v3774
        %v3787 = vor.u32 %v3785, %v3786
        %v3788 = vshll.u32 920167782, %v3773
        %v3789 = vshrl.u32 1326507024, %v3774
        %v3790 = vor.u32 %v3788, %v3789
        %vm3791 = vcmp.lt.s32.totalorder %v3772, 1
        %vm3792 = vcmp.lt.s32.totalorder %v3772, 2
        %vm3793 = vcmp.lt.s32.totalorder %v3772, 3
        %vm3794 = vcmp.lt.s32.totalorder %v3772, 4
        %v3795 = vsel %vm3791, %v3775, %v3778
        %v3796 = vsel %vm3794, %v3784, 2102212464
        %v3797 = vsel %vm3793, %v3781, %v3796
        %v3798 = vsel %vm3792, %v3795, %v3797
        %v3799 = vsel %vm3791, %v3778, %v3781
        %v3800 = vsel %vm3794, %v3787, 920167782
        %v3801 = vsel %vm3793, %v3784, %v3800
        %v3802 = vsel %vm3792, %v3799, %v3801
        %v3803 = vsel %vm3791, %v3781, %v3784
        %v3804 = vsel %vm3794, %v3790, 1326507024
        %v3805 = vsel %vm3793, %v3787, %v3804
        %v3806 = vsel %vm3792, %v3803, %v3805
        %v3807 = vshll.u32 %v3767, 8
        %v3808 = vmul.u32.u64.compose %v3807, %v3806
        %v3809 = vextract.low.u32 %v3808
        %v3810 = vextract.high.u32 %v3808
        %v3811 = vmul.u32.u64.compose %v3807, %v3802
        %v3812 = vextract.low.u32 %v3811
        %v3813 = vextract.high.u32 %v3811
        %v3814 = vmul.u32 %v3807, %v3798
        %v3815 = vadd.s32 %v3810, %v3812
        %vm3816 = vc.u32 %v3810, %v3812
        %v3817 = vadd.s32 %v3813, 1
        %v3818 = vsel %vm3816, %v3817, %v3813
        %v3819 = vadd.s32 %v3814, %v3818
        %v3820 = vadd.s32 %v3819, 536870912
        %v3821 = vshrl.u32 %v3820, 30
        %v3822 = vshll.u32 %v3821, 30
        %v3823 = vsub.s32 %v3819, %v3822
        %vm3824 = vcmp.lt.s32.totalorder %v3823, 0
        %v3825 = vsub.s32 0, %v3823
        %v3826 = vsel %vm3824, %v3825, %v3823
        %v3827 = vclz %v3826
        %v3828 = vsub.s32 %v3827, 2
        %vm3829 = vcmp.gt.s32.totalorder 0, %v3828
        %v3830 = vsel %vm3829, 0, %v3828
        %v3831 = vsub.s32 32, %v3830
        %v3832 = vshll.u32 %v3823, %v3830
        %v3833 = vshrl.u32 %v3815, %v3831
        %v3834 = vor.u32 %v3832, %v3833
        %v3835 = vsub.s32 4294967266, %v3830
        %v3836 = vadd.s32 %v3835, 127
        %v3837 = vshll.u32 %v3836, 23
        %v3838 = vor.u32 4788187, %v3837
        %v3839 = vand.u32 2147483647, %v3838
        %v3841 = vcvt.s32.f32 %v3834
        %v3842 = vmul.f32 %v3841, %v3839
        %v3843 = vxor.u32 %v3842, 2147483648
        %v3844 = vsel %vm3761, %v3843, %v3842
        %v3845 = vsub.s32 4, %v3821
        %v3846 = vsel %vm3761, %v3845, %v3821
        %v3847 = vsel %vm3760, %v2394, %v3844
        %v3848 = vsel %vm3760, 0, %v3846
        %v3849 = vcosq.f32.pop %v3847
        %v3850 = vsinq.f32.pop %v3847
        %vm3851 = vweird.f32 %v2394
        %v3852 = vadd.s32 %v3848, 3
        %v3853 = vand.u32 %v3852, 3
        %vm3854 = vcmp.lt.s32.totalorder %v3853, 2
        %vm3855 = vcmp.eq.s32.totalorder %v3853, 0
        %v3856 = vxor.u32 %v3850, 2147483648
        %v3857 = vsel %vm3855, %v3849, %v3856
        %vm3858 = vcmp.eq.s32.totalorder %v3853, 2
        %v3859 = vxor.u32 %v3849, 2147483648
        %v3860 = vsel %vm3858, %v3859, %v3850
        %v3861 = vsel %vm3854, %v3857, %v3860
        %v3862 = vsel %vm3851, nan, %v3861
        %v3863 = vand.u32 2147483647, %v2399
        %vm3864 = vcmp.le.f32.partialorder %v3863, 0.7853982
        %vm3865 = vcmp.lt.s32.totalorder %v2399, 0
        %v3866 = vand.u32 %v2399, 2139095040
        %v3867 = vshrl.u32 %v3866, 23
        %v3868 = vsub.s32 %v3867, 127
        %v3869 = vand.u32 2147483647, %v2399
        %v3870 = vand.u32 %v3869, 8388607
        %v3871 = vor.u32 %v3870, 8388608
        %v3872 = vsub.s32 0, %v3871
        %v3873 = vadd.s32 %v3868, 1
        %vm3874 = vcmp.gt.s32.totalorder %v3873, 0
        %v3875 = vsel %vm3874, %v3873, 0
        %v3876 = vshrl.u32 %v3875, 5
        %v3877 = vand.u32 %v3875, 31
        %v3878 = vsub.s32 32, %v3877
        %v3879 = vshrl.u32 683565275, %v3878
        %v3880 = vshll.u32 683565275, %v3877
        %v3881 = vshrl.u32 2475754826, %v3878
        %v3882 = vor.u32 %v3880, %v3881
        %v3883 = vshll.u32 2475754826, %v3877
        %v3884 = vshrl.u32 2131351028, %v3878
        %v3885 = vor.u32 %v3883, %v3884
        %v3886 = vshll.u32 2131351028, %v3877
        %v3887 = vshrl.u32 2102212464, %v3878
        %v3888 = vor.u32 %v3886, %v3887
        %v3889 = vshll.u32 2102212464, %v3877
        %v3890 = vshrl.u32 920167782, %v3878
        %v3891 = vor.u32 %v3889, %v3890
        %v3892 = vshll.u32 920167782, %v3877
        %v3893 = vshrl.u32 1326507024, %v3878
        %v3894 = vor.u32 %v3892, %v3893
        %vm3895 = vcmp.lt.s32.totalorder %v3876, 1
        %vm3896 = vcmp.lt.s32.totalorder %v3876, 2
        %vm3897 = vcmp.lt.s32.totalorder %v3876, 3
        %vm3898 = vcmp.lt.s32.totalorder %v3876, 4
        %v3899 = vsel %vm3895, %v3879, %v3882
        %v3900 = vsel %vm3898, %v3888, 2102212464
        %v3901 = vsel %vm3897, %v3885, %v3900
        %v3902 = vsel %vm3896, %v3899, %v3901
        %v3903 = vsel %vm3895, %v3882, %v3885
        %v3904 = vsel %vm3898, %v3891, 920167782
        %v3905 = vsel %vm3897, %v3888, %v3904
        %v3906 = vsel %vm3896, %v3903, %v3905
        %v3907 = vsel %vm3895, %v3885, %v3888
        %v3908 = vsel %vm3898, %v3894, 1326507024
        %v3909 = vsel %vm3897, %v3891, %v3908
        %v3910 = vsel %vm3896, %v3907, %v3909
        %v3911 = vshll.u32 %v3871, 8
        %v3912 = vmul.u32.u64.compose %v3911, %v3910
        %v3913 = vextract.low.u32 %v3912
        %v3914 = vextract.high.u32 %v3912
        %v3915 = vmul.u32.u64.compose %v3911, %v3906
        %v3916 = vextract.low.u32 %v3915
        %v3917 = vextract.high.u32 %v3915
        %v3918 = vmul.u32 %v3911, %v3902
        %v3919 = vadd.s32 %v3914, %v3916
        %vm3920 = vc.u32 %v3914, %v3916
        %v3921 = vadd.s32 %v3917, 1
        %v3922 = vsel %vm3920, %v3921, %v3917
        %v3923 = vadd.s32 %v3918, %v3922
        %v3924 = vadd.s32 %v3923, 536870912
        %v3925 = vshrl.u32 %v3924, 30
        %v3926 = vshll.u32 %v3925, 30
        %v3927 = vsub.s32 %v3923, %v3926
        %vm3928 = vcmp.lt.s32.totalorder %v3927, 0
        %v3929 = vsub.s32 0, %v3927
        %v3930 = vsel %vm3928, %v3929, %v3927
        %v3931 = vclz %v3930
        %v3932 = vsub.s32 %v3931, 2
        %vm3933 = vcmp.gt.s32.totalorder 0, %v3932
        %v3934 = vsel %vm3933, 0, %v3932
        %v3935 = vsub.s32 32, %v3934
        %v3936 = vshll.u32 %v3927, %v3934
        %v3937 = vshrl.u32 %v3919, %v3935
        %v3938 = vor.u32 %v3936, %v3937
        %v3939 = vsub.s32 4294967266, %v3934
        %v3940 = vadd.s32 %v3939, 127
        %v3941 = vshll.u32 %v3940, 23
        %v3942 = vor.u32 4788187, %v3941
        %v3943 = vand.u32 2147483647, %v3942
        %v3945 = vcvt.s32.f32 %v3938
        %v3946 = vmul.f32 %v3945, %v3943
        %v3947 = vxor.u32 %v3946, 2147483648
        %v3948 = vsel %vm3865, %v3947, %v3946
        %v3949 = vsub.s32 4, %v3925
        %v3950 = vsel %vm3865, %v3949, %v3925
        %v3951 = vsel %vm3864, %v2399, %v3948
        %v3952 = vsel %vm3864, 0, %v3950
        %v3953 = vcosq.f32.pop %v3951
        %v3954 = vsinq.f32.pop %v3951
        %vm3955 = vweird.f32 %v2399
        %v3956 = vadd.s32 %v3952, 3
        %v3957 = vand.u32 %v3956, 3
        %vm3958 = vcmp.lt.s32.totalorder %v3957, 2
        %vm3959 = vcmp.eq.s32.totalorder %v3957, 0
        %v3960 = vxor.u32 %v3954, 2147483648
        %v3961 = vsel %vm3959, %v3953, %v3960
        %vm3962 = vcmp.eq.s32.totalorder %v3957, 2
        %v3963 = vxor.u32 %v3953, 2147483648
        %v3964 = vsel %vm3962, %v3963, %v3954
        %v3965 = vsel %vm3958, %v3961, %v3964
        %v3966 = vsel %vm3955, nan, %v3965
        %v3967 = vand.u32 2147483647, %v2404
        %vm3968 = vcmp.le.f32.partialorder %v3967, 0.7853982
        %vm3969 = vcmp.lt.s32.totalorder %v2404, 0
        %v3970 = vand.u32 %v2404, 2139095040
        %v3971 = vshrl.u32 %v3970, 23
        %v3972 = vsub.s32 %v3971, 127
        %v3973 = vand.u32 2147483647, %v2404
        %v3974 = vand.u32 %v3973, 8388607
        %v3975 = vor.u32 %v3974, 8388608
        %v3976 = vsub.s32 0, %v3975
        %v3977 = vadd.s32 %v3972, 1
        %vm3978 = vcmp.gt.s32.totalorder %v3977, 0
        %v3979 = vsel %vm3978, %v3977, 0
        %v3980 = vshrl.u32 %v3979, 5
        %v3981 = vand.u32 %v3979, 31
        %v3982 = vsub.s32 32, %v3981
        %v3983 = vshrl.u32 683565275, %v3982
        %v3984 = vshll.u32 683565275, %v3981
        %v3985 = vshrl.u32 2475754826, %v3982
        %v3986 = vor.u32 %v3984, %v3985
        %v3987 = vshll.u32 2475754826, %v3981
        %v3988 = vshrl.u32 2131351028, %v3982
        %v3989 = vor.u32 %v3987, %v3988
        %v3990 = vshll.u32 2131351028, %v3981
        %v3991 = vshrl.u32 2102212464, %v3982
        %v3992 = vor.u32 %v3990, %v3991
        %v3993 = vshll.u32 2102212464, %v3981
        %v3994 = vshrl.u32 920167782, %v3982
        %v3995 = vor.u32 %v3993, %v3994
        %v3996 = vshll.u32 920167782, %v3981
        %v3997 = vshrl.u32 1326507024, %v3982
        %v3998 = vor.u32 %v3996, %v3997
        %vm3999 = vcmp.lt.s32.totalorder %v3980, 1
        %vm4000 = vcmp.lt.s32.totalorder %v3980, 2
        %vm4001 = vcmp.lt.s32.totalorder %v3980, 3
        %vm4002 = vcmp.lt.s32.totalorder %v3980, 4
        %v4003 = vsel %vm3999, %v3983, %v3986
        %v4004 = vsel %vm4002, %v3992, 2102212464
        %v4005 = vsel %vm4001, %v3989, %v4004
        %v4006 = vsel %vm4000, %v4003, %v4005
        %v4007 = vsel %vm3999, %v3986, %v3989
        %v4008 = vsel %vm4002, %v3995, 920167782
        %v4009 = vsel %vm4001, %v3992, %v4008
        %v4010 = vsel %vm4000, %v4007, %v4009
        %v4011 = vsel %vm3999, %v3989, %v3992
        %v4012 = vsel %vm4002, %v3998, 1326507024
        %v4013 = vsel %vm4001, %v3995, %v4012
        %v4014 = vsel %vm4000, %v4011, %v4013
        %v4015 = vshll.u32 %v3975, 8
        %v4016 = vmul.u32.u64.compose %v4015, %v4014
        %v4017 = vextract.low.u32 %v4016
        %v4018 = vextract.high.u32 %v4016
        %v4019 = vmul.u32.u64.compose %v4015, %v4010
        %v4020 = vextract.low.u32 %v4019
        %v4021 = vextract.high.u32 %v4019
        %v4022 = vmul.u32 %v4015, %v4006
        %v4023 = vadd.s32 %v4018, %v4020
        %vm4024 = vc.u32 %v4018, %v4020
        %v4025 = vadd.s32 %v4021, 1
        %v4026 = vsel %vm4024, %v4025, %v4021
        %v4027 = vadd.s32 %v4022, %v4026
        %v4028 = vadd.s32 %v4027, 536870912
        %v4029 = vshrl.u32 %v4028, 30
        %v4030 = vshll.u32 %v4029, 30
        %v4031 = vsub.s32 %v4027, %v4030
        %vm4032 = vcmp.lt.s32.totalorder %v4031, 0
        %v4033 = vsub.s32 0, %v4031
        %v4034 = vsel %vm4032, %v4033, %v4031
        %v4035 = vclz %v4034
        %v4036 = vsub.s32 %v4035, 2
        %vm4037 = vcmp.gt.s32.totalorder 0, %v4036
        %v4038 = vsel %vm4037, 0, %v4036
        %v4039 = vsub.s32 32, %v4038
        %v4040 = vshll.u32 %v4031, %v4038
        %v4041 = vshrl.u32 %v4023, %v4039
        %v4042 = vor.u32 %v4040, %v4041
        %v4043 = vsub.s32 4294967266, %v4038
        %v4044 = vadd.s32 %v4043, 127
        %v4045 = vshll.u32 %v4044, 23
        %v4046 = vor.u32 4788187, %v4045
        %v4047 = vand.u32 2147483647, %v4046
        %v4049 = vcvt.s32.f32 %v4042
        %v4050 = vmul.f32 %v4049, %v4047
        %v4051 = vxor.u32 %v4050, 2147483648
        %v4052 = vsel %vm3969, %v4051, %v4050
        %v4053 = vsub.s32 4, %v4029
        %v4054 = vsel %vm3969, %v4053, %v4029
        %v4055 = vsel %vm3968, %v2404, %v4052
        %v4056 = vsel %vm3968, 0, %v4054
        %v4057 = vcosq.f32.pop %v4055
        %v4058 = vsinq.f32.pop %v4055
        %vm4059 = vweird.f32 %v2404
        %v4060 = vadd.s32 %v4056, 3
        %v4061 = vand.u32 %v4060, 3
        %vm4062 = vcmp.lt.s32.totalorder %v4061, 2
        %vm4063 = vcmp.eq.s32.totalorder %v4061, 0
        %v4064 = vxor.u32 %v4058, 2147483648
        %v4065 = vsel %vm4063, %v4057, %v4064
        %vm4066 = vcmp.eq.s32.totalorder %v4061, 2
        %v4067 = vxor.u32 %v4057, 2147483648
        %v4068 = vsel %vm4066, %v4067, %v4058
        %v4069 = vsel %vm4062, %v4065, %v4068
        %v4070 = vsel %vm4059, nan, %v4069
        %v4071 = vld [vmem:[%s5] sm:$0xff]
        %v4072 = vld [vmem:[%s5 + $0x8] sm:$0xff]
        %v4073 = vld [vmem:[%s5 + $0x10] sm:$0xff]
        %v4074 = vld [vmem:[%s5 + $0x18] sm:$0xff]
        %v4075 = vld [vmem:[%s5 + $0x20] sm:$0xff]
        %v4076 = vld [vmem:[%s5 + $0x28] sm:$0xff]
        %v4077 = vld [vmem:[%s5 + $0x30] sm:$0xff]
        %v4078 = vld [vmem:[%s5 + $0x38] sm:$0xff]
        %v4079 = vld [vmem:[%s5 + $0x40] sm:$0xff]
        %v4080 = vld [vmem:[%s5 + $0x48] sm:$0xff]
        %v4081 = vld [vmem:[%s5 + $0x50] sm:$0xff]
        %v4082 = vld [vmem:[%s5 + $0x58] sm:$0xff]
        %v4083 = vld [vmem:[%s5 + $0x60] sm:$0xff]
        %v4084 = vld [vmem:[%s5 + $0x68] sm:$0xff]
        %v4085 = vld [vmem:[%s5 + $0x70] sm:$0xff]
        %v4086 = vld [vmem:[%s5 + $0x78] sm:$0xff]
        %v4087 = vld [vmem:[%s6] sm:$0x1]
        %v4089 = vlaneseq
        %v4090 = vshrl.u32 %v4089, 7
        %v4091 = vsub.s32 0, %v4090
        %v4092 = vrot.slane %v4087, %v4091
        %4094 = vmatprep.subr.mxu0 0.0
        %4095 = vmatpush1.msra.mxu0 %v4086
        %4096 = vmatprep.subr.mxu0 0.0
        %4097 = vmatpush1.msra.mxu0 %v4085
        %4098 = vmatprep.subr.mxu0 0.0
        %4099 = vmatpush1.msra.mxu0 %v4084
        %4100 = vmatprep.subr.mxu0 0.0
        %4101 = vmatpush1.msra.mxu0 %v4083
        %4102 = vmatprep.subr.mxu0 0.0
        %4103 = vmatpush1.msra.mxu0 %v4082
        %4104 = vmatprep.subr.mxu0 0.0
        %4105 = vmatpush1.msra.mxu0 %v4081
        %4106 = vmatprep.subr.mxu0 0.0
        %4107 = vmatpush1.msra.mxu0 %v4080
        %4108 = vmatprep.subr.mxu0 0.0
        %4109 = vmatpush1.msra.mxu0 %v4079
        %4110 = vmatprep.subr.mxu0 0.0
        %4111 = vmatpush1.msra.mxu0 %v4078
        %4112 = vmatprep.subr.mxu0 0.0
        %4113 = vmatpush1.msra.mxu0 %v4077
        %4114 = vmatprep.subr.mxu0 0.0
        %4115 = vmatpush1.msra.mxu0 %v4076
        %4116 = vmatprep.subr.mxu0 0.0
        %4117 = vmatpush1.msra.mxu0 %v4075
        %4118 = vmatprep.subr.mxu0 0.0
        %4119 = vmatpush1.msra.mxu0 %v4074
        %4120 = vmatprep.subr.mxu0 0.0
        %4121 = vmatpush1.msra.mxu0 %v4073
        %4122 = vmatprep.subr.mxu0 0.0
        %4123 = vmatpush1.msra.mxu0 %v4072
        %4124 = vmatprep.subr.mxu0 0.0
        %4125 = vmatpush1.msra.mxu0 %v4071
        %4126 = vmatprep.subr.mxu0 0.0
        %4127 = vmatpush2.msra.mxu0 0.0
        %4128 = vmatprep.subr.mxu0 0.0
        %4129 = vmatpush2.msra.mxu0 0.0
        %4130 = vmatprep.subr.mxu0 0.0
        %4131 = vmatpush2.msra.mxu0 0.0
        %4132 = vmatprep.subr.mxu0 0.0
        %4133 = vmatpush2.msra.mxu0 0.0
        %4134 = vmatprep.subr.mxu0 0.0
        %4135 = vmatpush2.msra.mxu0 0.0
        %4136 = vmatprep.subr.mxu0 0.0
        %4137 = vmatpush2.msra.mxu0 0.0
        %4138 = vmatprep.subr.mxu0 0.0
        %4139 = vmatpush2.msra.mxu0 0.0
        %4140 = vmatprep.subr.mxu0 0.0
        %4141 = vmatpush2.msra.mxu0 0.0
        %4142 = vmatprep.subr.mxu0 0.0
        %4143 = vmatpush2.msra.mxu0 0.0
        %4144 = vmatprep.subr.mxu0 0.0
        %4145 = vmatpush2.msra.mxu0 0.0
        %4146 = vmatprep.subr.mxu0 0.0
        %4147 = vmatpush2.msra.mxu0 0.0
        %4148 = vmatprep.subr.mxu0 0.0
        %4149 = vmatpush2.msra.mxu0 0.0
        %4150 = vmatprep.subr.mxu0 0.0
        %4151 = vmatpush2.msra.mxu0 0.0
        %4152 = vmatprep.subr.mxu0 0.0
        %4153 = vmatpush2.msra.mxu0 0.0
        %4154 = vmatprep.subr.mxu0 0.0
        %4155 = vmatpush2.msra.mxu0 0.0
        %4156 = vmatprep.subr.mxu0 0.0
        %4157 = vmatpush2.msra.mxu0 0.0
        %4158 = vmatprep.mubr.f32.mxu0 0.0
        %4159 = vmatmul.mubr.f32.gmra.mxu0 %v2510
        %v4160 = vpop.f32.mrf.mxu0
        %v4161 = vadd.f32 %v4092, %v4160
        %v4162 = vpop.f32.mrf.mxu0
        %4163 = vmatprep.mubr.f32.mxu0 0.0
        %4164 = vmatmul.mubr.f32.gmra.mxu0 %v2614
        %v4165 = vpop.f32.mrf.mxu0
        %v4166 = vadd.f32 %v4092, %v4165
        %v4167 = vpop.f32.mrf.mxu0
        %4168 = vmatprep.mubr.f32.mxu0 0.0
        %4169 = vmatmul.mubr.f32.gmra.mxu0 %v2718
        %v4170 = vpop.f32.mrf.mxu0
        %v4171 = vadd.f32 %v4092, %v4170
        %v4172 = vpop.f32.mrf.mxu0
        %4173 = vmatprep.mubr.f32.mxu0 0.0
        %4174 = vmatmul.mubr.f32.gmra.mxu0 %v2822
        %v4175 = vpop.f32.mrf.mxu0
        %v4176 = vadd.f32 %v4092, %v4175
        %v4177 = vpop.f32.mrf.mxu0
        %4178 = vmatprep.mubr.f32.mxu0 0.0
        %4179 = vmatmul.mubr.f32.gmra.mxu0 %v2926
        %v4180 = vpop.f32.mrf.mxu0
        %v4181 = vadd.f32 %v4092, %v4180
        %v4182 = vpop.f32.mrf.mxu0
        %4183 = vmatprep.mubr.f32.mxu0 0.0
        %4184 = vmatmul.mubr.f32.gmra.mxu0 %v3030
        %v4185 = vpop.f32.mrf.mxu0
        %v4186 = vadd.f32 %v4092, %v4185
        %v4187 = vpop.f32.mrf.mxu0
        %4188 = vmatprep.mubr.f32.mxu0 0.0
        %4189 = vmatmul.mubr.f32.gmra.mxu0 %v3134
        %v4190 = vpop.f32.mrf.mxu0
        %v4191 = vadd.f32 %v4092, %v4190
        %v4192 = vpop.f32.mrf.mxu0
        %4193 = vmatprep.mubr.f32.mxu0 0.0
        %4194 = vmatmul.mubr.f32.gmra.mxu0 %v3238
        %v4195 = vpop.f32.mrf.mxu0
        %v4196 = vadd.f32 %v4092, %v4195
        %v4197 = vpop.f32.mrf.mxu0
        %4198 = vmatprep.mubr.f32.mxu0 0.0
        %4199 = vmatmul.mubr.f32.gmra.mxu0 %v3342
        %v4200 = vpop.f32.mrf.mxu0
        %v4201 = vadd.f32 %v4092, %v4200
        %v4202 = vpop.f32.mrf.mxu0
        %4203 = vmatprep.mubr.f32.mxu0 0.0
        %4204 = vmatmul.mubr.f32.gmra.mxu0 %v3446
        %v4205 = vpop.f32.mrf.mxu0
        %v4206 = vadd.f32 %v4092, %v4205
        %v4207 = vpop.f32.mrf.mxu0
        %4208 = vmatprep.mubr.f32.mxu0 0.0
        %4209 = vmatmul.mubr.f32.gmra.mxu0 %v3550
        %v4210 = vpop.f32.mrf.mxu0
        %v4211 = vadd.f32 %v4092, %v4210
        %v4212 = vpop.f32.mrf.mxu0
        %4213 = vmatprep.mubr.f32.mxu0 0.0
        %4214 = vmatmul.mubr.f32.gmra.mxu0 %v3654
        %v4215 = vpop.f32.mrf.mxu0
        %v4216 = vadd.f32 %v4092, %v4215
        %v4217 = vpop.f32.mrf.mxu0
        %4218 = vmatprep.mubr.f32.mxu0 0.0
        %4219 = vmatmul.mubr.f32.gmra.mxu0 %v3758
        %v4220 = vpop.f32.mrf.mxu0
        %v4221 = vadd.f32 %v4092, %v4220
        %v4222 = vpop.f32.mrf.mxu0
        %4223 = vmatprep.mubr.f32.mxu0 0.0
        %4224 = vmatmul.mubr.f32.gmra.mxu0 %v3862
        %v4225 = vpop.f32.mrf.mxu0
        %v4226 = vadd.f32 %v4092, %v4225
        %v4227 = vpop.f32.mrf.mxu0
        %4228 = vmatprep.mubr.f32.mxu0 0.0
        %4229 = vmatmul.mubr.f32.gmra.mxu0 %v3966
        %v4230 = vpop.f32.mrf.mxu0
        %v4231 = vadd.f32 %v4092, %v4230
        %v4232 = vpop.f32.mrf.mxu0
        %4233 = vmatprep.mubr.f32.mxu0 0.0
        %4234 = vmatmul.mubr.f32.gmra.mxu0 %v4070
        %v4235 = vpop.f32.mrf.mxu0
        %v4236 = vadd.f32 %v4092, %v4235
        %v4237 = vpop.f32.mrf.mxu0
        %4238 = vdwg.mxu0
        %v4239 = vand.u32 2147483647, %v4161
        %vm4240 = vcmp.le.f32.partialorder %v4239, 0.7853982
        %vm4241 = vcmp.lt.s32.totalorder %v4161, 0
        %v4242 = vand.u32 %v4161, 2139095040
        %v4243 = vshrl.u32 %v4242, 23
        %v4244 = vsub.s32 %v4243, 127
        %v4245 = vand.u32 2147483647, %v4161
        %v4246 = vand.u32 %v4245, 8388607
        %v4247 = vor.u32 %v4246, 8388608
        %v4248 = vsub.s32 0, %v4247
        %v4249 = vadd.s32 %v4244, 1
        %vm4250 = vcmp.gt.s32.totalorder %v4249, 0
        %v4251 = vsel %vm4250, %v4249, 0
        %v4252 = vshrl.u32 %v4251, 5
        %v4253 = vand.u32 %v4251, 31
        %v4254 = vsub.s32 32, %v4253
        %v4255 = vshrl.u32 683565275, %v4254
        %v4256 = vshll.u32 683565275, %v4253
        %v4257 = vshrl.u32 2475754826, %v4254
        %v4258 = vor.u32 %v4256, %v4257
        %v4259 = vshll.u32 2475754826, %v4253
        %v4260 = vshrl.u32 2131351028, %v4254
        %v4261 = vor.u32 %v4259, %v4260
        %v4262 = vshll.u32 2131351028, %v4253
        %v4263 = vshrl.u32 2102212464, %v4254
        %v4264 = vor.u32 %v4262, %v4263
        %v4265 = vshll.u32 2102212464, %v4253
        %v4266 = vshrl.u32 920167782, %v4254
        %v4267 = vor.u32 %v4265, %v4266
        %v4268 = vshll.u32 920167782, %v4253
        %v4269 = vshrl.u32 1326507024, %v4254
        %v4270 = vor.u32 %v4268, %v4269
        %vm4271 = vcmp.lt.s32.totalorder %v4252, 1
        %vm4272 = vcmp.lt.s32.totalorder %v4252, 2
        %vm4273 = vcmp.lt.s32.totalorder %v4252, 3
        %vm4274 = vcmp.lt.s32.totalorder %v4252, 4
        %v4275 = vsel %vm4271, %v4255, %v4258
        %v4276 = vsel %vm4274, %v4264, 2102212464
        %v4277 = vsel %vm4273, %v4261, %v4276
        %v4278 = vsel %vm4272, %v4275, %v4277
        %v4279 = vsel %vm4271, %v4258, %v4261
        %v4280 = vsel %vm4274, %v4267, 920167782
        %v4281 = vsel %vm4273, %v4264, %v4280
        %v4282 = vsel %vm4272, %v4279, %v4281
        %v4283 = vsel %vm4271, %v4261, %v4264
        %v4284 = vsel %vm4274, %v4270, 1326507024
        %v4285 = vsel %vm4273, %v4267, %v4284
        %v4286 = vsel %vm4272, %v4283, %v4285
        %v4287 = vshll.u32 %v4247, 8
        %v4288 = vmul.u32.u64.compose %v4287, %v4286
        %v4289 = vextract.low.u32 %v4288
        %v4290 = vextract.high.u32 %v4288
        %v4291 = vmul.u32.u64.compose %v4287, %v4282
        %v4292 = vextract.low.u32 %v4291
        %v4293 = vextract.high.u32 %v4291
        %v4294 = vmul.u32 %v4287, %v4278
        %v4295 = vadd.s32 %v4290, %v4292
        %vm4296 = vc.u32 %v4290, %v4292
        %v4297 = vadd.s32 %v4293, 1
        %v4298 = vsel %vm4296, %v4297, %v4293
        %v4299 = vadd.s32 %v4294, %v4298
        %v4300 = vadd.s32 %v4299, 536870912
        %v4301 = vshrl.u32 %v4300, 30
        %v4302 = vshll.u32 %v4301, 30
        %v4303 = vsub.s32 %v4299, %v4302
        %vm4304 = vcmp.lt.s32.totalorder %v4303, 0
        %v4305 = vsub.s32 0, %v4303
        %v4306 = vsel %vm4304, %v4305, %v4303
        %v4307 = vclz %v4306
        %v4308 = vsub.s32 %v4307, 2
        %vm4309 = vcmp.gt.s32.totalorder 0, %v4308
        %v4310 = vsel %vm4309, 0, %v4308
        %v4311 = vsub.s32 32, %v4310
        %v4312 = vshll.u32 %v4303, %v4310
        %v4313 = vshrl.u32 %v4295, %v4311
        %v4314 = vor.u32 %v4312, %v4313
        %v4315 = vsub.s32 4294967266, %v4310
        %v4316 = vadd.s32 %v4315, 127
        %v4317 = vshll.u32 %v4316, 23
        %v4318 = vor.u32 4788187, %v4317
        %v4319 = vand.u32 2147483647, %v4318
        %v4321 = vcvt.s32.f32 %v4314
        %v4322 = vmul.f32 %v4321, %v4319
        %v4323 = vxor.u32 %v4322, 2147483648
        %v4324 = vsel %vm4241, %v4323, %v4322
        %v4325 = vsub.s32 4, %v4301
        %v4326 = vsel %vm4241, %v4325, %v4301
        %v4327 = vsel %vm4240, %v4161, %v4324
        %v4328 = vsel %vm4240, 0, %v4326
        %v4329 = vcosq.f32.pop %v4327
        %v4330 = vsinq.f32.pop %v4327
        %vm4331 = vweird.f32 %v4161
        %v4332 = vadd.s32 %v4328, 3
        %v4333 = vand.u32 %v4332, 3
        %vm4334 = vcmp.lt.s32.totalorder %v4333, 2
        %vm4335 = vcmp.eq.s32.totalorder %v4333, 0
        %v4336 = vxor.u32 %v4330, 2147483648
        %v4337 = vsel %vm4335, %v4329, %v4336
        %vm4338 = vcmp.eq.s32.totalorder %v4333, 2
        %v4339 = vxor.u32 %v4329, 2147483648
        %v4340 = vsel %vm4338, %v4339, %v4330
        %v4341 = vsel %vm4334, %v4337, %v4340
        %v4342 = vsel %vm4331, nan, %v4341
        %v4343 = vand.u32 2147483647, %v4166
        %vm4344 = vcmp.le.f32.partialorder %v4343, 0.7853982
        %vm4345 = vcmp.lt.s32.totalorder %v4166, 0
        %v4346 = vand.u32 %v4166, 2139095040
        %v4347 = vshrl.u32 %v4346, 23
        %v4348 = vsub.s32 %v4347, 127
        %v4349 = vand.u32 2147483647, %v4166
        %v4350 = vand.u32 %v4349, 8388607
        %v4351 = vor.u32 %v4350, 8388608
        %v4352 = vsub.s32 0, %v4351
        %v4353 = vadd.s32 %v4348, 1
        %vm4354 = vcmp.gt.s32.totalorder %v4353, 0
        %v4355 = vsel %vm4354, %v4353, 0
        %v4356 = vshrl.u32 %v4355, 5
        %v4357 = vand.u32 %v4355, 31
        %v4358 = vsub.s32 32, %v4357
        %v4359 = vshrl.u32 683565275, %v4358
        %v4360 = vshll.u32 683565275, %v4357
        %v4361 = vshrl.u32 2475754826, %v4358
        %v4362 = vor.u32 %v4360, %v4361
        %v4363 = vshll.u32 2475754826, %v4357
        %v4364 = vshrl.u32 2131351028, %v4358
        %v4365 = vor.u32 %v4363, %v4364
        %v4366 = vshll.u32 2131351028, %v4357
        %v4367 = vshrl.u32 2102212464, %v4358
        %v4368 = vor.u32 %v4366, %v4367
        %v4369 = vshll.u32 2102212464, %v4357
        %v4370 = vshrl.u32 920167782, %v4358
        %v4371 = vor.u32 %v4369, %v4370
        %v4372 = vshll.u32 920167782, %v4357
        %v4373 = vshrl.u32 1326507024, %v4358
        %v4374 = vor.u32 %v4372, %v4373
        %vm4375 = vcmp.lt.s32.totalorder %v4356, 1
        %vm4376 = vcmp.lt.s32.totalorder %v4356, 2
        %vm4377 = vcmp.lt.s32.totalorder %v4356, 3
        %vm4378 = vcmp.lt.s32.totalorder %v4356, 4
        %v4379 = vsel %vm4375, %v4359, %v4362
        %v4380 = vsel %vm4378, %v4368, 2102212464
        %v4381 = vsel %vm4377, %v4365, %v4380
        %v4382 = vsel %vm4376, %v4379, %v4381
        %v4383 = vsel %vm4375, %v4362, %v4365
        %v4384 = vsel %vm4378, %v4371, 920167782
        %v4385 = vsel %vm4377, %v4368, %v4384
        %v4386 = vsel %vm4376, %v4383, %v4385
        %v4387 = vsel %vm4375, %v4365, %v4368
        %v4388 = vsel %vm4378, %v4374, 1326507024
        %v4389 = vsel %vm4377, %v4371, %v4388
        %v4390 = vsel %vm4376, %v4387, %v4389
        %v4391 = vshll.u32 %v4351, 8
        %v4392 = vmul.u32.u64.compose %v4391, %v4390
        %v4393 = vextract.low.u32 %v4392
        %v4394 = vextract.high.u32 %v4392
        %v4395 = vmul.u32.u64.compose %v4391, %v4386
        %v4396 = vextract.low.u32 %v4395
        %v4397 = vextract.high.u32 %v4395
        %v4398 = vmul.u32 %v4391, %v4382
        %v4399 = vadd.s32 %v4394, %v4396
        %vm4400 = vc.u32 %v4394, %v4396
        %v4401 = vadd.s32 %v4397, 1
        %v4402 = vsel %vm4400, %v4401, %v4397
        %v4403 = vadd.s32 %v4398, %v4402
        %v4404 = vadd.s32 %v4403, 536870912
        %v4405 = vshrl.u32 %v4404, 30
        %v4406 = vshll.u32 %v4405, 30
        %v4407 = vsub.s32 %v4403, %v4406
        %vm4408 = vcmp.lt.s32.totalorder %v4407, 0
        %v4409 = vsub.s32 0, %v4407
        %v4410 = vsel %vm4408, %v4409, %v4407
        %v4411 = vclz %v4410
        %v4412 = vsub.s32 %v4411, 2
        %vm4413 = vcmp.gt.s32.totalorder 0, %v4412
        %v4414 = vsel %vm4413, 0, %v4412
        %v4415 = vsub.s32 32, %v4414
        %v4416 = vshll.u32 %v4407, %v4414
        %v4417 = vshrl.u32 %v4399, %v4415
        %v4418 = vor.u32 %v4416, %v4417
        %v4419 = vsub.s32 4294967266, %v4414
        %v4420 = vadd.s32 %v4419, 127
        %v4421 = vshll.u32 %v4420, 23
        %v4422 = vor.u32 4788187, %v4421
        %v4423 = vand.u32 2147483647, %v4422
        %v4425 = vcvt.s32.f32 %v4418
        %v4426 = vmul.f32 %v4425, %v4423
        %v4427 = vxor.u32 %v4426, 2147483648
        %v4428 = vsel %vm4345, %v4427, %v4426
        %v4429 = vsub.s32 4, %v4405
        %v4430 = vsel %vm4345, %v4429, %v4405
        %v4431 = vsel %vm4344, %v4166, %v4428
        %v4432 = vsel %vm4344, 0, %v4430
        %v4433 = vcosq.f32.pop %v4431
        %v4434 = vsinq.f32.pop %v4431
        %vm4435 = vweird.f32 %v4166
        %v4436 = vadd.s32 %v4432, 3
        %v4437 = vand.u32 %v4436, 3
        %vm4438 = vcmp.lt.s32.totalorder %v4437, 2
        %vm4439 = vcmp.eq.s32.totalorder %v4437, 0
        %v4440 = vxor.u32 %v4434, 2147483648
        %v4441 = vsel %vm4439, %v4433, %v4440
        %vm4442 = vcmp.eq.s32.totalorder %v4437, 2
        %v4443 = vxor.u32 %v4433, 2147483648
        %v4444 = vsel %vm4442, %v4443, %v4434
        %v4445 = vsel %vm4438, %v4441, %v4444
        %v4446 = vsel %vm4435, nan, %v4445
        %v4447 = vand.u32 2147483647, %v4171
        %vm4448 = vcmp.le.f32.partialorder %v4447, 0.7853982
        %vm4449 = vcmp.lt.s32.totalorder %v4171, 0
        %v4450 = vand.u32 %v4171, 2139095040
        %v4451 = vshrl.u32 %v4450, 23
        %v4452 = vsub.s32 %v4451, 127
        %v4453 = vand.u32 2147483647, %v4171
        %v4454 = vand.u32 %v4453, 8388607
        %v4455 = vor.u32 %v4454, 8388608
        %v4456 = vsub.s32 0, %v4455
        %v4457 = vadd.s32 %v4452, 1
        %vm4458 = vcmp.gt.s32.totalorder %v4457, 0
        %v4459 = vsel %vm4458, %v4457, 0
        %v4460 = vshrl.u32 %v4459, 5
        %v4461 = vand.u32 %v4459, 31
        %v4462 = vsub.s32 32, %v4461
        %v4463 = vshrl.u32 683565275, %v4462
        %v4464 = vshll.u32 683565275, %v4461
        %v4465 = vshrl.u32 2475754826, %v4462
        %v4466 = vor.u32 %v4464, %v4465
        %v4467 = vshll.u32 2475754826, %v4461
        %v4468 = vshrl.u32 2131351028, %v4462
        %v4469 = vor.u32 %v4467, %v4468
        %v4470 = vshll.u32 2131351028, %v4461
        %v4471 = vshrl.u32 2102212464, %v4462
        %v4472 = vor.u32 %v4470, %v4471
        %v4473 = vshll.u32 2102212464, %v4461
        %v4474 = vshrl.u32 920167782, %v4462
        %v4475 = vor.u32 %v4473, %v4474
        %v4476 = vshll.u32 920167782, %v4461
        %v4477 = vshrl.u32 1326507024, %v4462
        %v4478 = vor.u32 %v4476, %v4477
        %vm4479 = vcmp.lt.s32.totalorder %v4460, 1
        %vm4480 = vcmp.lt.s32.totalorder %v4460, 2
        %vm4481 = vcmp.lt.s32.totalorder %v4460, 3
        %vm4482 = vcmp.lt.s32.totalorder %v4460, 4
        %v4483 = vsel %vm4479, %v4463, %v4466
        %v4484 = vsel %vm4482, %v4472, 2102212464
        %v4485 = vsel %vm4481, %v4469, %v4484
        %v4486 = vsel %vm4480, %v4483, %v4485
        %v4487 = vsel %vm4479, %v4466, %v4469
        %v4488 = vsel %vm4482, %v4475, 920167782
        %v4489 = vsel %vm4481, %v4472, %v4488
        %v4490 = vsel %vm4480, %v4487, %v4489
        %v4491 = vsel %vm4479, %v4469, %v4472
        %v4492 = vsel %vm4482, %v4478, 1326507024
        %v4493 = vsel %vm4481, %v4475, %v4492
        %v4494 = vsel %vm4480, %v4491, %v4493
        %v4495 = vshll.u32 %v4455, 8
        %v4496 = vmul.u32.u64.compose %v4495, %v4494
        %v4497 = vextract.low.u32 %v4496
        %v4498 = vextract.high.u32 %v4496
        %v4499 = vmul.u32.u64.compose %v4495, %v4490
        %v4500 = vextract.low.u32 %v4499
        %v4501 = vextract.high.u32 %v4499
        %v4502 = vmul.u32 %v4495, %v4486
        %v4503 = vadd.s32 %v4498, %v4500
        %vm4504 = vc.u32 %v4498, %v4500
        %v4505 = vadd.s32 %v4501, 1
        %v4506 = vsel %vm4504, %v4505, %v4501
        %v4507 = vadd.s32 %v4502, %v4506
        %v4508 = vadd.s32 %v4507, 536870912
        %v4509 = vshrl.u32 %v4508, 30
        %v4510 = vshll.u32 %v4509, 30
        %v4511 = vsub.s32 %v4507, %v4510
        %vm4512 = vcmp.lt.s32.totalorder %v4511, 0
        %v4513 = vsub.s32 0, %v4511
        %v4514 = vsel %vm4512, %v4513, %v4511
        %v4515 = vclz %v4514
        %v4516 = vsub.s32 %v4515, 2
        %vm4517 = vcmp.gt.s32.totalorder 0, %v4516
        %v4518 = vsel %vm4517, 0, %v4516
        %v4519 = vsub.s32 32, %v4518
        %v4520 = vshll.u32 %v4511, %v4518
        %v4521 = vshrl.u32 %v4503, %v4519
        %v4522 = vor.u32 %v4520, %v4521
        %v4523 = vsub.s32 4294967266, %v4518
        %v4524 = vadd.s32 %v4523, 127
        %v4525 = vshll.u32 %v4524, 23
        %v4526 = vor.u32 4788187, %v4525
        %v4527 = vand.u32 2147483647, %v4526
        %v4529 = vcvt.s32.f32 %v4522
        %v4530 = vmul.f32 %v4529, %v4527
        %v4531 = vxor.u32 %v4530, 2147483648
        %v4532 = vsel %vm4449, %v4531, %v4530
        %v4533 = vsub.s32 4, %v4509
        %v4534 = vsel %vm4449, %v4533, %v4509
        %v4535 = vsel %vm4448, %v4171, %v4532
        %v4536 = vsel %vm4448, 0, %v4534
        %v4537 = vcosq.f32.pop %v4535
        %v4538 = vsinq.f32.pop %v4535
        %vm4539 = vweird.f32 %v4171
        %v4540 = vadd.s32 %v4536, 3
        %v4541 = vand.u32 %v4540, 3
        %vm4542 = vcmp.lt.s32.totalorder %v4541, 2
        %vm4543 = vcmp.eq.s32.totalorder %v4541, 0
        %v4544 = vxor.u32 %v4538, 2147483648
        %v4545 = vsel %vm4543, %v4537, %v4544
        %vm4546 = vcmp.eq.s32.totalorder %v4541, 2
        %v4547 = vxor.u32 %v4537, 2147483648
        %v4548 = vsel %vm4546, %v4547, %v4538
        %v4549 = vsel %vm4542, %v4545, %v4548
        %v4550 = vsel %vm4539, nan, %v4549
        %v4551 = vand.u32 2147483647, %v4176
        %vm4552 = vcmp.le.f32.partialorder %v4551, 0.7853982
        %vm4553 = vcmp.lt.s32.totalorder %v4176, 0
        %v4554 = vand.u32 %v4176, 2139095040
        %v4555 = vshrl.u32 %v4554, 23
        %v4556 = vsub.s32 %v4555, 127
        %v4557 = vand.u32 2147483647, %v4176
        %v4558 = vand.u32 %v4557, 8388607
        %v4559 = vor.u32 %v4558, 8388608
        %v4560 = vsub.s32 0, %v4559
        %v4561 = vadd.s32 %v4556, 1
        %vm4562 = vcmp.gt.s32.totalorder %v4561, 0
        %v4563 = vsel %vm4562, %v4561, 0
        %v4564 = vshrl.u32 %v4563, 5
        %v4565 = vand.u32 %v4563, 31
        %v4566 = vsub.s32 32, %v4565
        %v4567 = vshrl.u32 683565275, %v4566
        %v4568 = vshll.u32 683565275, %v4565
        %v4569 = vshrl.u32 2475754826, %v4566
        %v4570 = vor.u32 %v4568, %v4569
        %v4571 = vshll.u32 2475754826, %v4565
        %v4572 = vshrl.u32 2131351028, %v4566
        %v4573 = vor.u32 %v4571, %v4572
        %v4574 = vshll.u32 2131351028, %v4565
        %v4575 = vshrl.u32 2102212464, %v4566
        %v4576 = vor.u32 %v4574, %v4575
        %v4577 = vshll.u32 2102212464, %v4565
        %v4578 = vshrl.u32 920167782, %v4566
        %v4579 = vor.u32 %v4577, %v4578
        %v4580 = vshll.u32 920167782, %v4565
        %v4581 = vshrl.u32 1326507024, %v4566
        %v4582 = vor.u32 %v4580, %v4581
        %vm4583 = vcmp.lt.s32.totalorder %v4564, 1
        %vm4584 = vcmp.lt.s32.totalorder %v4564, 2
        %vm4585 = vcmp.lt.s32.totalorder %v4564, 3
        %vm4586 = vcmp.lt.s32.totalorder %v4564, 4
        %v4587 = vsel %vm4583, %v4567, %v4570
        %v4588 = vsel %vm4586, %v4576, 2102212464
        %v4589 = vsel %vm4585, %v4573, %v4588
        %v4590 = vsel %vm4584, %v4587, %v4589
        %v4591 = vsel %vm4583, %v4570, %v4573
        %v4592 = vsel %vm4586, %v4579, 920167782
        %v4593 = vsel %vm4585, %v4576, %v4592
        %v4594 = vsel %vm4584, %v4591, %v4593
        %v4595 = vsel %vm4583, %v4573, %v4576
        %v4596 = vsel %vm4586, %v4582, 1326507024
        %v4597 = vsel %vm4585, %v4579, %v4596
        %v4598 = vsel %vm4584, %v4595, %v4597
        %v4599 = vshll.u32 %v4559, 8
        %v4600 = vmul.u32.u64.compose %v4599, %v4598
        %v4601 = vextract.low.u32 %v4600
        %v4602 = vextract.high.u32 %v4600
        %v4603 = vmul.u32.u64.compose %v4599, %v4594
        %v4604 = vextract.low.u32 %v4603
        %v4605 = vextract.high.u32 %v4603
        %v4606 = vmul.u32 %v4599, %v4590
        %v4607 = vadd.s32 %v4602, %v4604
        %vm4608 = vc.u32 %v4602, %v4604
        %v4609 = vadd.s32 %v4605, 1
        %v4610 = vsel %vm4608, %v4609, %v4605
        %v4611 = vadd.s32 %v4606, %v4610
        %v4612 = vadd.s32 %v4611, 536870912
        %v4613 = vshrl.u32 %v4612, 30
        %v4614 = vshll.u32 %v4613, 30
        %v4615 = vsub.s32 %v4611, %v4614
        %vm4616 = vcmp.lt.s32.totalorder %v4615, 0
        %v4617 = vsub.s32 0, %v4615
        %v4618 = vsel %vm4616, %v4617, %v4615
        %v4619 = vclz %v4618
        %v4620 = vsub.s32 %v4619, 2
        %vm4621 = vcmp.gt.s32.totalorder 0, %v4620
        %v4622 = vsel %vm4621, 0, %v4620
        %v4623 = vsub.s32 32, %v4622
        %v4624 = vshll.u32 %v4615, %v4622
        %v4625 = vshrl.u32 %v4607, %v4623
        %v4626 = vor.u32 %v4624, %v4625
        %v4627 = vsub.s32 4294967266, %v4622
        %v4628 = vadd.s32 %v4627, 127
        %v4629 = vshll.u32 %v4628, 23
        %v4630 = vor.u32 4788187, %v4629
        %v4631 = vand.u32 2147483647, %v4630
        %v4633 = vcvt.s32.f32 %v4626
        %v4634 = vmul.f32 %v4633, %v4631
        %v4635 = vxor.u32 %v4634, 2147483648
        %v4636 = vsel %vm4553, %v4635, %v4634
        %v4637 = vsub.s32 4, %v4613
        %v4638 = vsel %vm4553, %v4637, %v4613
        %v4639 = vsel %vm4552, %v4176, %v4636
        %v4640 = vsel %vm4552, 0, %v4638
        %v4641 = vcosq.f32.pop %v4639
        %v4642 = vsinq.f32.pop %v4639
        %vm4643 = vweird.f32 %v4176
        %v4644 = vadd.s32 %v4640, 3
        %v4645 = vand.u32 %v4644, 3
        %vm4646 = vcmp.lt.s32.totalorder %v4645, 2
        %vm4647 = vcmp.eq.s32.totalorder %v4645, 0
        %v4648 = vxor.u32 %v4642, 2147483648
        %v4649 = vsel %vm4647, %v4641, %v4648
        %vm4650 = vcmp.eq.s32.totalorder %v4645, 2
        %v4651 = vxor.u32 %v4641, 2147483648
        %v4652 = vsel %vm4650, %v4651, %v4642
        %v4653 = vsel %vm4646, %v4649, %v4652
        %v4654 = vsel %vm4643, nan, %v4653
        %v4655 = vand.u32 2147483647, %v4181
        %vm4656 = vcmp.le.f32.partialorder %v4655, 0.7853982
        %vm4657 = vcmp.lt.s32.totalorder %v4181, 0
        %v4658 = vand.u32 %v4181, 2139095040
        %v4659 = vshrl.u32 %v4658, 23
        %v4660 = vsub.s32 %v4659, 127
        %v4661 = vand.u32 2147483647, %v4181
        %v4662 = vand.u32 %v4661, 8388607
        %v4663 = vor.u32 %v4662, 8388608
        %v4664 = vsub.s32 0, %v4663
        %v4665 = vadd.s32 %v4660, 1
        %vm4666 = vcmp.gt.s32.totalorder %v4665, 0
        %v4667 = vsel %vm4666, %v4665, 0
        %v4668 = vshrl.u32 %v4667, 5
        %v4669 = vand.u32 %v4667, 31
        %v4670 = vsub.s32 32, %v4669
        %v4671 = vshrl.u32 683565275, %v4670
        %v4672 = vshll.u32 683565275, %v4669
        %v4673 = vshrl.u32 2475754826, %v4670
        %v4674 = vor.u32 %v4672, %v4673
        %v4675 = vshll.u32 2475754826, %v4669
        %v4676 = vshrl.u32 2131351028, %v4670
        %v4677 = vor.u32 %v4675, %v4676
        %v4678 = vshll.u32 2131351028, %v4669
        %v4679 = vshrl.u32 2102212464, %v4670
        %v4680 = vor.u32 %v4678, %v4679
        %v4681 = vshll.u32 2102212464, %v4669
        %v4682 = vshrl.u32 920167782, %v4670
        %v4683 = vor.u32 %v4681, %v4682
        %v4684 = vshll.u32 920167782, %v4669
        %v4685 = vshrl.u32 1326507024, %v4670
        %v4686 = vor.u32 %v4684, %v4685
        %vm4687 = vcmp.lt.s32.totalorder %v4668, 1
        %vm4688 = vcmp.lt.s32.totalorder %v4668, 2
        %vm4689 = vcmp.lt.s32.totalorder %v4668, 3
        %vm4690 = vcmp.lt.s32.totalorder %v4668, 4
        %v4691 = vsel %vm4687, %v4671, %v4674
        %v4692 = vsel %vm4690, %v4680, 2102212464
        %v4693 = vsel %vm4689, %v4677, %v4692
        %v4694 = vsel %vm4688, %v4691, %v4693
        %v4695 = vsel %vm4687, %v4674, %v4677
        %v4696 = vsel %vm4690, %v4683, 920167782
        %v4697 = vsel %vm4689, %v4680, %v4696
        %v4698 = vsel %vm4688, %v4695, %v4697
        %v4699 = vsel %vm4687, %v4677, %v4680
        %v4700 = vsel %vm4690, %v4686, 1326507024
        %v4701 = vsel %vm4689, %v4683, %v4700
        %v4702 = vsel %vm4688, %v4699, %v4701
        %v4703 = vshll.u32 %v4663, 8
        %v4704 = vmul.u32.u64.compose %v4703, %v4702
        %v4705 = vextract.low.u32 %v4704
        %v4706 = vextract.high.u32 %v4704
        %v4707 = vmul.u32.u64.compose %v4703, %v4698
        %v4708 = vextract.low.u32 %v4707
        %v4709 = vextract.high.u32 %v4707
        %v4710 = vmul.u32 %v4703, %v4694
        %v4711 = vadd.s32 %v4706, %v4708
        %vm4712 = vc.u32 %v4706, %v4708
        %v4713 = vadd.s32 %v4709, 1
        %v4714 = vsel %vm4712, %v4713, %v4709
        %v4715 = vadd.s32 %v4710, %v4714
        %v4716 = vadd.s32 %v4715, 536870912
        %v4717 = vshrl.u32 %v4716, 30
        %v4718 = vshll.u32 %v4717, 30
        %v4719 = vsub.s32 %v4715, %v4718
        %vm4720 = vcmp.lt.s32.totalorder %v4719, 0
        %v4721 = vsub.s32 0, %v4719
        %v4722 = vsel %vm4720, %v4721, %v4719
        %v4723 = vclz %v4722
        %v4724 = vsub.s32 %v4723, 2
        %vm4725 = vcmp.gt.s32.totalorder 0, %v4724
        %v4726 = vsel %vm4725, 0, %v4724
        %v4727 = vsub.s32 32, %v4726
        %v4728 = vshll.u32 %v4719, %v4726
        %v4729 = vshrl.u32 %v4711, %v4727
        %v4730 = vor.u32 %v4728, %v4729
        %v4731 = vsub.s32 4294967266, %v4726
        %v4732 = vadd.s32 %v4731, 127
        %v4733 = vshll.u32 %v4732, 23
        %v4734 = vor.u32 4788187, %v4733
        %v4735 = vand.u32 2147483647, %v4734
        %v4737 = vcvt.s32.f32 %v4730
        %v4738 = vmul.f32 %v4737, %v4735
        %v4739 = vxor.u32 %v4738, 2147483648
        %v4740 = vsel %vm4657, %v4739, %v4738
        %v4741 = vsub.s32 4, %v4717
        %v4742 = vsel %vm4657, %v4741, %v4717
        %v4743 = vsel %vm4656, %v4181, %v4740
        %v4744 = vsel %vm4656, 0, %v4742
        %v4745 = vcosq.f32.pop %v4743
        %v4746 = vsinq.f32.pop %v4743
        %vm4747 = vweird.f32 %v4181
        %v4748 = vadd.s32 %v4744, 3
        %v4749 = vand.u32 %v4748, 3
        %vm4750 = vcmp.lt.s32.totalorder %v4749, 2
        %vm4751 = vcmp.eq.s32.totalorder %v4749, 0
        %v4752 = vxor.u32 %v4746, 2147483648
        %v4753 = vsel %vm4751, %v4745, %v4752
        %vm4754 = vcmp.eq.s32.totalorder %v4749, 2
        %v4755 = vxor.u32 %v4745, 2147483648
        %v4756 = vsel %vm4754, %v4755, %v4746
        %v4757 = vsel %vm4750, %v4753, %v4756
        %v4758 = vsel %vm4747, nan, %v4757
        %v4759 = vand.u32 2147483647, %v4186
        %vm4760 = vcmp.le.f32.partialorder %v4759, 0.7853982
        %vm4761 = vcmp.lt.s32.totalorder %v4186, 0
        %v4762 = vand.u32 %v4186, 2139095040
        %v4763 = vshrl.u32 %v4762, 23
        %v4764 = vsub.s32 %v4763, 127
        %v4765 = vand.u32 2147483647, %v4186
        %v4766 = vand.u32 %v4765, 8388607
        %v4767 = vor.u32 %v4766, 8388608
        %v4768 = vsub.s32 0, %v4767
        %v4769 = vadd.s32 %v4764, 1
        %vm4770 = vcmp.gt.s32.totalorder %v4769, 0
        %v4771 = vsel %vm4770, %v4769, 0
        %v4772 = vshrl.u32 %v4771, 5
        %v4773 = vand.u32 %v4771, 31
        %v4774 = vsub.s32 32, %v4773
        %v4775 = vshrl.u32 683565275, %v4774
        %v4776 = vshll.u32 683565275, %v4773
        %v4777 = vshrl.u32 2475754826, %v4774
        %v4778 = vor.u32 %v4776, %v4777
        %v4779 = vshll.u32 2475754826, %v4773
        %v4780 = vshrl.u32 2131351028, %v4774
        %v4781 = vor.u32 %v4779, %v4780
        %v4782 = vshll.u32 2131351028, %v4773
        %v4783 = vshrl.u32 2102212464, %v4774
        %v4784 = vor.u32 %v4782, %v4783
        %v4785 = vshll.u32 2102212464, %v4773
        %v4786 = vshrl.u32 920167782, %v4774
        %v4787 = vor.u32 %v4785, %v4786
        %v4788 = vshll.u32 920167782, %v4773
        %v4789 = vshrl.u32 1326507024, %v4774
        %v4790 = vor.u32 %v4788, %v4789
        %vm4791 = vcmp.lt.s32.totalorder %v4772, 1
        %vm4792 = vcmp.lt.s32.totalorder %v4772, 2
        %vm4793 = vcmp.lt.s32.totalorder %v4772, 3
        %vm4794 = vcmp.lt.s32.totalorder %v4772, 4
        %v4795 = vsel %vm4791, %v4775, %v4778
        %v4796 = vsel %vm4794, %v4784, 2102212464
        %v4797 = vsel %vm4793, %v4781, %v4796
        %v4798 = vsel %vm4792, %v4795, %v4797
        %v4799 = vsel %vm4791, %v4778, %v4781
        %v4800 = vsel %vm4794, %v4787, 920167782
        %v4801 = vsel %vm4793, %v4784, %v4800
        %v4802 = vsel %vm4792, %v4799, %v4801
        %v4803 = vsel %vm4791, %v4781, %v4784
        %v4804 = vsel %vm4794, %v4790, 1326507024
        %v4805 = vsel %vm4793, %v4787, %v4804
        %v4806 = vsel %vm4792, %v4803, %v4805
        %v4807 = vshll.u32 %v4767, 8
        %v4808 = vmul.u32.u64.compose %v4807, %v4806
        %v4809 = vextract.low.u32 %v4808
        %v4810 = vextract.high.u32 %v4808
        %v4811 = vmul.u32.u64.compose %v4807, %v4802
        %v4812 = vextract.low.u32 %v4811
        %v4813 = vextract.high.u32 %v4811
        %v4814 = vmul.u32 %v4807, %v4798
        %v4815 = vadd.s32 %v4810, %v4812
        %vm4816 = vc.u32 %v4810, %v4812
        %v4817 = vadd.s32 %v4813, 1
        %v4818 = vsel %vm4816, %v4817, %v4813
        %v4819 = vadd.s32 %v4814, %v4818
        %v4820 = vadd.s32 %v4819, 536870912
        %v4821 = vshrl.u32 %v4820, 30
        %v4822 = vshll.u32 %v4821, 30
        %v4823 = vsub.s32 %v4819, %v4822
        %vm4824 = vcmp.lt.s32.totalorder %v4823, 0
        %v4825 = vsub.s32 0, %v4823
        %v4826 = vsel %vm4824, %v4825, %v4823
        %v4827 = vclz %v4826
        %v4828 = vsub.s32 %v4827, 2
        %vm4829 = vcmp.gt.s32.totalorder 0, %v4828
        %v4830 = vsel %vm4829, 0, %v4828
        %v4831 = vsub.s32 32, %v4830
        %v4832 = vshll.u32 %v4823, %v4830
        %v4833 = vshrl.u32 %v4815, %v4831
        %v4834 = vor.u32 %v4832, %v4833
        %v4835 = vsub.s32 4294967266, %v4830
        %v4836 = vadd.s32 %v4835, 127
        %v4837 = vshll.u32 %v4836, 23
        %v4838 = vor.u32 4788187, %v4837
        %v4839 = vand.u32 2147483647, %v4838
        %v4841 = vcvt.s32.f32 %v4834
        %v4842 = vmul.f32 %v4841, %v4839
        %v4843 = vxor.u32 %v4842, 2147483648
        %v4844 = vsel %vm4761, %v4843, %v4842
        %v4845 = vsub.s32 4, %v4821
        %v4846 = vsel %vm4761, %v4845, %v4821
        %v4847 = vsel %vm4760, %v4186, %v4844
        %v4848 = vsel %vm4760, 0, %v4846
        %v4849 = vcosq.f32.pop %v4847
        %v4850 = vsinq.f32.pop %v4847
        %vm4851 = vweird.f32 %v4186
        %v4852 = vadd.s32 %v4848, 3
        %v4853 = vand.u32 %v4852, 3
        %vm4854 = vcmp.lt.s32.totalorder %v4853, 2
        %vm4855 = vcmp.eq.s32.totalorder %v4853, 0
        %v4856 = vxor.u32 %v4850, 2147483648
        %v4857 = vsel %vm4855, %v4849, %v4856
        %vm4858 = vcmp.eq.s32.totalorder %v4853, 2
        %v4859 = vxor.u32 %v4849, 2147483648
        %v4860 = vsel %vm4858, %v4859, %v4850
        %v4861 = vsel %vm4854, %v4857, %v4860
        %v4862 = vsel %vm4851, nan, %v4861
        %v4863 = vand.u32 2147483647, %v4191
        %vm4864 = vcmp.le.f32.partialorder %v4863, 0.7853982
        %vm4865 = vcmp.lt.s32.totalorder %v4191, 0
        %v4866 = vand.u32 %v4191, 2139095040
        %v4867 = vshrl.u32 %v4866, 23
        %v4868 = vsub.s32 %v4867, 127
        %v4869 = vand.u32 2147483647, %v4191
        %v4870 = vand.u32 %v4869, 8388607
        %v4871 = vor.u32 %v4870, 8388608
        %v4872 = vsub.s32 0, %v4871
        %v4873 = vadd.s32 %v4868, 1
        %vm4874 = vcmp.gt.s32.totalorder %v4873, 0
        %v4875 = vsel %vm4874, %v4873, 0
        %v4876 = vshrl.u32 %v4875, 5
        %v4877 = vand.u32 %v4875, 31
        %v4878 = vsub.s32 32, %v4877
        %v4879 = vshrl.u32 683565275, %v4878
        %v4880 = vshll.u32 683565275, %v4877
        %v4881 = vshrl.u32 2475754826, %v4878
        %v4882 = vor.u32 %v4880, %v4881
        %v4883 = vshll.u32 2475754826, %v4877
        %v4884 = vshrl.u32 2131351028, %v4878
        %v4885 = vor.u32 %v4883, %v4884
        %v4886 = vshll.u32 2131351028, %v4877
        %v4887 = vshrl.u32 2102212464, %v4878
        %v4888 = vor.u32 %v4886, %v4887
        %v4889 = vshll.u32 2102212464, %v4877
        %v4890 = vshrl.u32 920167782, %v4878
        %v4891 = vor.u32 %v4889, %v4890
        %v4892 = vshll.u32 920167782, %v4877
        %v4893 = vshrl.u32 1326507024, %v4878
        %v4894 = vor.u32 %v4892, %v4893
        %vm4895 = vcmp.lt.s32.totalorder %v4876, 1
        %vm4896 = vcmp.lt.s32.totalorder %v4876, 2
        %vm4897 = vcmp.lt.s32.totalorder %v4876, 3
        %vm4898 = vcmp.lt.s32.totalorder %v4876, 4
        %v4899 = vsel %vm4895, %v4879, %v4882
        %v4900 = vsel %vm4898, %v4888, 2102212464
        %v4901 = vsel %vm4897, %v4885, %v4900
        %v4902 = vsel %vm4896, %v4899, %v4901
        %v4903 = vsel %vm4895, %v4882, %v4885
        %v4904 = vsel %vm4898, %v4891, 920167782
        %v4905 = vsel %vm4897, %v4888, %v4904
        %v4906 = vsel %vm4896, %v4903, %v4905
        %v4907 = vsel %vm4895, %v4885, %v4888
        %v4908 = vsel %vm4898, %v4894, 1326507024
        %v4909 = vsel %vm4897, %v4891, %v4908
        %v4910 = vsel %vm4896, %v4907, %v4909
        %v4911 = vshll.u32 %v4871, 8
        %v4912 = vmul.u32.u64.compose %v4911, %v4910
        %v4913 = vextract.low.u32 %v4912
        %v4914 = vextract.high.u32 %v4912
        %v4915 = vmul.u32.u64.compose %v4911, %v4906
        %v4916 = vextract.low.u32 %v4915
        %v4917 = vextract.high.u32 %v4915
        %v4918 = vmul.u32 %v4911, %v4902
        %v4919 = vadd.s32 %v4914, %v4916
        %vm4920 = vc.u32 %v4914, %v4916
        %v4921 = vadd.s32 %v4917, 1
        %v4922 = vsel %vm4920, %v4921, %v4917
        %v4923 = vadd.s32 %v4918, %v4922
        %v4924 = vadd.s32 %v4923, 536870912
        %v4925 = vshrl.u32 %v4924, 30
        %v4926 = vshll.u32 %v4925, 30
        %v4927 = vsub.s32 %v4923, %v4926
        %vm4928 = vcmp.lt.s32.totalorder %v4927, 0
        %v4929 = vsub.s32 0, %v4927
        %v4930 = vsel %vm4928, %v4929, %v4927
        %v4931 = vclz %v4930
        %v4932 = vsub.s32 %v4931, 2
        %vm4933 = vcmp.gt.s32.totalorder 0, %v4932
        %v4934 = vsel %vm4933, 0, %v4932
        %v4935 = vsub.s32 32, %v4934
        %v4936 = vshll.u32 %v4927, %v4934
        %v4937 = vshrl.u32 %v4919, %v4935
        %v4938 = vor.u32 %v4936, %v4937
        %v4939 = vsub.s32 4294967266, %v4934
        %v4940 = vadd.s32 %v4939, 127
        %v4941 = vshll.u32 %v4940, 23
        %v4942 = vor.u32 4788187, %v4941
        %v4943 = vand.u32 2147483647, %v4942
        %v4945 = vcvt.s32.f32 %v4938
        %v4946 = vmul.f32 %v4945, %v4943
        %v4947 = vxor.u32 %v4946, 2147483648
        %v4948 = vsel %vm4865, %v4947, %v4946
        %v4949 = vsub.s32 4, %v4925
        %v4950 = vsel %vm4865, %v4949, %v4925
        %v4951 = vsel %vm4864, %v4191, %v4948
        %v4952 = vsel %vm4864, 0, %v4950
        %v4953 = vcosq.f32.pop %v4951
        %v4954 = vsinq.f32.pop %v4951
        %vm4955 = vweird.f32 %v4191
        %v4956 = vadd.s32 %v4952, 3
        %v4957 = vand.u32 %v4956, 3
        %vm4958 = vcmp.lt.s32.totalorder %v4957, 2
        %vm4959 = vcmp.eq.s32.totalorder %v4957, 0
        %v4960 = vxor.u32 %v4954, 2147483648
        %v4961 = vsel %vm4959, %v4953, %v4960
        %vm4962 = vcmp.eq.s32.totalorder %v4957, 2
        %v4963 = vxor.u32 %v4953, 2147483648
        %v4964 = vsel %vm4962, %v4963, %v4954
        %v4965 = vsel %vm4958, %v4961, %v4964
        %v4966 = vsel %vm4955, nan, %v4965
        %v4967 = vand.u32 2147483647, %v4196
        %vm4968 = vcmp.le.f32.partialorder %v4967, 0.7853982
        %vm4969 = vcmp.lt.s32.totalorder %v4196, 0
        %v4970 = vand.u32 %v4196, 2139095040
        %v4971 = vshrl.u32 %v4970, 23
        %v4972 = vsub.s32 %v4971, 127
        %v4973 = vand.u32 2147483647, %v4196
        %v4974 = vand.u32 %v4973, 8388607
        %v4975 = vor.u32 %v4974, 8388608
        %v4976 = vsub.s32 0, %v4975
        %v4977 = vadd.s32 %v4972, 1
        %vm4978 = vcmp.gt.s32.totalorder %v4977, 0
        %v4979 = vsel %vm4978, %v4977, 0
        %v4980 = vshrl.u32 %v4979, 5
        %v4981 = vand.u32 %v4979, 31
        %v4982 = vsub.s32 32, %v4981
        %v4983 = vshrl.u32 683565275, %v4982
        %v4984 = vshll.u32 683565275, %v4981
        %v4985 = vshrl.u32 2475754826, %v4982
        %v4986 = vor.u32 %v4984, %v4985
        %v4987 = vshll.u32 2475754826, %v4981
        %v4988 = vshrl.u32 2131351028, %v4982
        %v4989 = vor.u32 %v4987, %v4988
        %v4990 = vshll.u32 2131351028, %v4981
        %v4991 = vshrl.u32 2102212464, %v4982
        %v4992 = vor.u32 %v4990, %v4991
        %v4993 = vshll.u32 2102212464, %v4981
        %v4994 = vshrl.u32 920167782, %v4982
        %v4995 = vor.u32 %v4993, %v4994
        %v4996 = vshll.u32 920167782, %v4981
        %v4997 = vshrl.u32 1326507024, %v4982
        %v4998 = vor.u32 %v4996, %v4997
        %vm4999 = vcmp.lt.s32.totalorder %v4980, 1
        %vm5000 = vcmp.lt.s32.totalorder %v4980, 2
        %vm5001 = vcmp.lt.s32.totalorder %v4980, 3
        %vm5002 = vcmp.lt.s32.totalorder %v4980, 4
        %v5003 = vsel %vm4999, %v4983, %v4986
        %v5004 = vsel %vm5002, %v4992, 2102212464
        %v5005 = vsel %vm5001, %v4989, %v5004
        %v5006 = vsel %vm5000, %v5003, %v5005
        %v5007 = vsel %vm4999, %v4986, %v4989
        %v5008 = vsel %vm5002, %v4995, 920167782
        %v5009 = vsel %vm5001, %v4992, %v5008
        %v5010 = vsel %vm5000, %v5007, %v5009
        %v5011 = vsel %vm4999, %v4989, %v4992
        %v5012 = vsel %vm5002, %v4998, 1326507024
        %v5013 = vsel %vm5001, %v4995, %v5012
        %v5014 = vsel %vm5000, %v5011, %v5013
        %v5015 = vshll.u32 %v4975, 8
        %v5016 = vmul.u32.u64.compose %v5015, %v5014
        %v5017 = vextract.low.u32 %v5016
        %v5018 = vextract.high.u32 %v5016
        %v5019 = vmul.u32.u64.compose %v5015, %v5010
        %v5020 = vextract.low.u32 %v5019
        %v5021 = vextract.high.u32 %v5019
        %v5022 = vmul.u32 %v5015, %v5006
        %v5023 = vadd.s32 %v5018, %v5020
        %vm5024 = vc.u32 %v5018, %v5020
        %v5025 = vadd.s32 %v5021, 1
        %v5026 = vsel %vm5024, %v5025, %v5021
        %v5027 = vadd.s32 %v5022, %v5026
        %v5028 = vadd.s32 %v5027, 536870912
        %v5029 = vshrl.u32 %v5028, 30
        %v5030 = vshll.u32 %v5029, 30
        %v5031 = vsub.s32 %v5027, %v5030
        %vm5032 = vcmp.lt.s32.totalorder %v5031, 0
        %v5033 = vsub.s32 0, %v5031
        %v5034 = vsel %vm5032, %v5033, %v5031
        %v5035 = vclz %v5034
        %v5036 = vsub.s32 %v5035, 2
        %vm5037 = vcmp.gt.s32.totalorder 0, %v5036
        %v5038 = vsel %vm5037, 0, %v5036
        %v5039 = vsub.s32 32, %v5038
        %v5040 = vshll.u32 %v5031, %v5038
        %v5041 = vshrl.u32 %v5023, %v5039
        %v5042 = vor.u32 %v5040, %v5041
        %v5043 = vsub.s32 4294967266, %v5038
        %v5044 = vadd.s32 %v5043, 127
        %v5045 = vshll.u32 %v5044, 23
        %v5046 = vor.u32 4788187, %v5045
        %v5047 = vand.u32 2147483647, %v5046
        %v5049 = vcvt.s32.f32 %v5042
        %v5050 = vmul.f32 %v5049, %v5047
        %v5051 = vxor.u32 %v5050, 2147483648
        %v5052 = vsel %vm4969, %v5051, %v5050
        %v5053 = vsub.s32 4, %v5029
        %v5054 = vsel %vm4969, %v5053, %v5029
        %v5055 = vsel %vm4968, %v4196, %v5052
        %v5056 = vsel %vm4968, 0, %v5054
        %v5057 = vcosq.f32.pop %v5055
        %v5058 = vsinq.f32.pop %v5055
        %vm5059 = vweird.f32 %v4196
        %v5060 = vadd.s32 %v5056, 3
        %v5061 = vand.u32 %v5060, 3
        %vm5062 = vcmp.lt.s32.totalorder %v5061, 2
        %vm5063 = vcmp.eq.s32.totalorder %v5061, 0
        %v5064 = vxor.u32 %v5058, 2147483648
        %v5065 = vsel %vm5063, %v5057, %v5064
        %vm5066 = vcmp.eq.s32.totalorder %v5061, 2
        %v5067 = vxor.u32 %v5057, 2147483648
        %v5068 = vsel %vm5066, %v5067, %v5058
        %v5069 = vsel %vm5062, %v5065, %v5068
        %v5070 = vsel %vm5059, nan, %v5069
        %v5071 = vand.u32 2147483647, %v4201
        %vm5072 = vcmp.le.f32.partialorder %v5071, 0.7853982
        %vm5073 = vcmp.lt.s32.totalorder %v4201, 0
        %v5074 = vand.u32 %v4201, 2139095040
        %v5075 = vshrl.u32 %v5074, 23
        %v5076 = vsub.s32 %v5075, 127
        %v5077 = vand.u32 2147483647, %v4201
        %v5078 = vand.u32 %v5077, 8388607
        %v5079 = vor.u32 %v5078, 8388608
        %v5080 = vsub.s32 0, %v5079
        %v5081 = vadd.s32 %v5076, 1
        %vm5082 = vcmp.gt.s32.totalorder %v5081, 0
        %v5083 = vsel %vm5082, %v5081, 0
        %v5084 = vshrl.u32 %v5083, 5
        %v5085 = vand.u32 %v5083, 31
        %v5086 = vsub.s32 32, %v5085
        %v5087 = vshrl.u32 683565275, %v5086
        %v5088 = vshll.u32 683565275, %v5085
        %v5089 = vshrl.u32 2475754826, %v5086
        %v5090 = vor.u32 %v5088, %v5089
        %v5091 = vshll.u32 2475754826, %v5085
        %v5092 = vshrl.u32 2131351028, %v5086
        %v5093 = vor.u32 %v5091, %v5092
        %v5094 = vshll.u32 2131351028, %v5085
        %v5095 = vshrl.u32 2102212464, %v5086
        %v5096 = vor.u32 %v5094, %v5095
        %v5097 = vshll.u32 2102212464, %v5085
        %v5098 = vshrl.u32 920167782, %v5086
        %v5099 = vor.u32 %v5097, %v5098
        %v5100 = vshll.u32 920167782, %v5085
        %v5101 = vshrl.u32 1326507024, %v5086
        %v5102 = vor.u32 %v5100, %v5101
        %vm5103 = vcmp.lt.s32.totalorder %v5084, 1
        %vm5104 = vcmp.lt.s32.totalorder %v5084, 2
        %vm5105 = vcmp.lt.s32.totalorder %v5084, 3
        %vm5106 = vcmp.lt.s32.totalorder %v5084, 4
        %v5107 = vsel %vm5103, %v5087, %v5090
        %v5108 = vsel %vm5106, %v5096, 2102212464
        %v5109 = vsel %vm5105, %v5093, %v5108
        %v5110 = vsel %vm5104, %v5107, %v5109
        %v5111 = vsel %vm5103, %v5090, %v5093
        %v5112 = vsel %vm5106, %v5099, 920167782
        %v5113 = vsel %vm5105, %v5096, %v5112
        %v5114 = vsel %vm5104, %v5111, %v5113
        %v5115 = vsel %vm5103, %v5093, %v5096
        %v5116 = vsel %vm5106, %v5102, 1326507024
        %v5117 = vsel %vm5105, %v5099, %v5116
        %v5118 = vsel %vm5104, %v5115, %v5117
        %v5119 = vshll.u32 %v5079, 8
        %v5120 = vmul.u32.u64.compose %v5119, %v5118
        %v5121 = vextract.low.u32 %v5120
        %v5122 = vextract.high.u32 %v5120
        %v5123 = vmul.u32.u64.compose %v5119, %v5114
        %v5124 = vextract.low.u32 %v5123
        %v5125 = vextract.high.u32 %v5123
        %v5126 = vmul.u32 %v5119, %v5110
        %v5127 = vadd.s32 %v5122, %v5124
        %vm5128 = vc.u32 %v5122, %v5124
        %v5129 = vadd.s32 %v5125, 1
        %v5130 = vsel %vm5128, %v5129, %v5125
        %v5131 = vadd.s32 %v5126, %v5130
        %v5132 = vadd.s32 %v5131, 536870912
        %v5133 = vshrl.u32 %v5132, 30
        %v5134 = vshll.u32 %v5133, 30
        %v5135 = vsub.s32 %v5131, %v5134
        %vm5136 = vcmp.lt.s32.totalorder %v5135, 0
        %v5137 = vsub.s32 0, %v5135
        %v5138 = vsel %vm5136, %v5137, %v5135
        %v5139 = vclz %v5138
        %v5140 = vsub.s32 %v5139, 2
        %vm5141 = vcmp.gt.s32.totalorder 0, %v5140
        %v5142 = vsel %vm5141, 0, %v5140
        %v5143 = vsub.s32 32, %v5142
        %v5144 = vshll.u32 %v5135, %v5142
        %v5145 = vshrl.u32 %v5127, %v5143
        %v5146 = vor.u32 %v5144, %v5145
        %v5147 = vsub.s32 4294967266, %v5142
        %v5148 = vadd.s32 %v5147, 127
        %v5149 = vshll.u32 %v5148, 23
        %v5150 = vor.u32 4788187, %v5149
        %v5151 = vand.u32 2147483647, %v5150
        %v5153 = vcvt.s32.f32 %v5146
        %v5154 = vmul.f32 %v5153, %v5151
        %v5155 = vxor.u32 %v5154, 2147483648
        %v5156 = vsel %vm5073, %v5155, %v5154
        %v5157 = vsub.s32 4, %v5133
        %v5158 = vsel %vm5073, %v5157, %v5133
        %v5159 = vsel %vm5072, %v4201, %v5156
        %v5160 = vsel %vm5072, 0, %v5158
        %v5161 = vcosq.f32.pop %v5159
        %v5162 = vsinq.f32.pop %v5159
        %vm5163 = vweird.f32 %v4201
        %v5164 = vadd.s32 %v5160, 3
        %v5165 = vand.u32 %v5164, 3
        %vm5166 = vcmp.lt.s32.totalorder %v5165, 2
        %vm5167 = vcmp.eq.s32.totalorder %v5165, 0
        %v5168 = vxor.u32 %v5162, 2147483648
        %v5169 = vsel %vm5167, %v5161, %v5168
        %vm5170 = vcmp.eq.s32.totalorder %v5165, 2
        %v5171 = vxor.u32 %v5161, 2147483648
        %v5172 = vsel %vm5170, %v5171, %v5162
        %v5173 = vsel %vm5166, %v5169, %v5172
        %v5174 = vsel %vm5163, nan, %v5173
        %v5175 = vand.u32 2147483647, %v4206
        %vm5176 = vcmp.le.f32.partialorder %v5175, 0.7853982
        %vm5177 = vcmp.lt.s32.totalorder %v4206, 0
        %v5178 = vand.u32 %v4206, 2139095040
        %v5179 = vshrl.u32 %v5178, 23
        %v5180 = vsub.s32 %v5179, 127
        %v5181 = vand.u32 2147483647, %v4206
        %v5182 = vand.u32 %v5181, 8388607
        %v5183 = vor.u32 %v5182, 8388608
        %v5184 = vsub.s32 0, %v5183
        %v5185 = vadd.s32 %v5180, 1
        %vm5186 = vcmp.gt.s32.totalorder %v5185, 0
        %v5187 = vsel %vm5186, %v5185, 0
        %v5188 = vshrl.u32 %v5187, 5
        %v5189 = vand.u32 %v5187, 31
        %v5190 = vsub.s32 32, %v5189
        %v5191 = vshrl.u32 683565275, %v5190
        %v5192 = vshll.u32 683565275, %v5189
        %v5193 = vshrl.u32 2475754826, %v5190
        %v5194 = vor.u32 %v5192, %v5193
        %v5195 = vshll.u32 2475754826, %v5189
        %v5196 = vshrl.u32 2131351028, %v5190
        %v5197 = vor.u32 %v5195, %v5196
        %v5198 = vshll.u32 2131351028, %v5189
        %v5199 = vshrl.u32 2102212464, %v5190
        %v5200 = vor.u32 %v5198, %v5199
        %v5201 = vshll.u32 2102212464, %v5189
        %v5202 = vshrl.u32 920167782, %v5190
        %v5203 = vor.u32 %v5201, %v5202
        %v5204 = vshll.u32 920167782, %v5189
        %v5205 = vshrl.u32 1326507024, %v5190
        %v5206 = vor.u32 %v5204, %v5205
        %vm5207 = vcmp.lt.s32.totalorder %v5188, 1
        %vm5208 = vcmp.lt.s32.totalorder %v5188, 2
        %vm5209 = vcmp.lt.s32.totalorder %v5188, 3
        %vm5210 = vcmp.lt.s32.totalorder %v5188, 4
        %v5211 = vsel %vm5207, %v5191, %v5194
        %v5212 = vsel %vm5210, %v5200, 2102212464
        %v5213 = vsel %vm5209, %v5197, %v5212
        %v5214 = vsel %vm5208, %v5211, %v5213
        %v5215 = vsel %vm5207, %v5194, %v5197
        %v5216 = vsel %vm5210, %v5203, 920167782
        %v5217 = vsel %vm5209, %v5200, %v5216
        %v5218 = vsel %vm5208, %v5215, %v5217
        %v5219 = vsel %vm5207, %v5197, %v5200
        %v5220 = vsel %vm5210, %v5206, 1326507024
        %v5221 = vsel %vm5209, %v5203, %v5220
        %v5222 = vsel %vm5208, %v5219, %v5221
        %v5223 = vshll.u32 %v5183, 8
        %v5224 = vmul.u32.u64.compose %v5223, %v5222
        %v5225 = vextract.low.u32 %v5224
        %v5226 = vextract.high.u32 %v5224
        %v5227 = vmul.u32.u64.compose %v5223, %v5218
        %v5228 = vextract.low.u32 %v5227
        %v5229 = vextract.high.u32 %v5227
        %v5230 = vmul.u32 %v5223, %v5214
        %v5231 = vadd.s32 %v5226, %v5228
        %vm5232 = vc.u32 %v5226, %v5228
        %v5233 = vadd.s32 %v5229, 1
        %v5234 = vsel %vm5232, %v5233, %v5229
        %v5235 = vadd.s32 %v5230, %v5234
        %v5236 = vadd.s32 %v5235, 536870912
        %v5237 = vshrl.u32 %v5236, 30
        %v5238 = vshll.u32 %v5237, 30
        %v5239 = vsub.s32 %v5235, %v5238
        %vm5240 = vcmp.lt.s32.totalorder %v5239, 0
        %v5241 = vsub.s32 0, %v5239
        %v5242 = vsel %vm5240, %v5241, %v5239
        %v5243 = vclz %v5242
        %v5244 = vsub.s32 %v5243, 2
        %vm5245 = vcmp.gt.s32.totalorder 0, %v5244
        %v5246 = vsel %vm5245, 0, %v5244
        %v5247 = vsub.s32 32, %v5246
        %v5248 = vshll.u32 %v5239, %v5246
        %v5249 = vshrl.u32 %v5231, %v5247
        %v5250 = vor.u32 %v5248, %v5249
        %v5251 = vsub.s32 4294967266, %v5246
        %v5252 = vadd.s32 %v5251, 127
        %v5253 = vshll.u32 %v5252, 23
        %v5254 = vor.u32 4788187, %v5253
        %v5255 = vand.u32 2147483647, %v5254
        %v5257 = vcvt.s32.f32 %v5250
        %v5258 = vmul.f32 %v5257, %v5255
        %v5259 = vxor.u32 %v5258, 2147483648
        %v5260 = vsel %vm5177, %v5259, %v5258
        %v5261 = vsub.s32 4, %v5237
        %v5262 = vsel %vm5177, %v5261, %v5237
        %v5263 = vsel %vm5176, %v4206, %v5260
        %v5264 = vsel %vm5176, 0, %v5262
        %v5265 = vcosq.f32.pop %v5263
        %v5266 = vsinq.f32.pop %v5263
        %vm5267 = vweird.f32 %v4206
        %v5268 = vadd.s32 %v5264, 3
        %v5269 = vand.u32 %v5268, 3
        %vm5270 = vcmp.lt.s32.totalorder %v5269, 2
        %vm5271 = vcmp.eq.s32.totalorder %v5269, 0
        %v5272 = vxor.u32 %v5266, 2147483648
        %v5273 = vsel %vm5271, %v5265, %v5272
        %vm5274 = vcmp.eq.s32.totalorder %v5269, 2
        %v5275 = vxor.u32 %v5265, 2147483648
        %v5276 = vsel %vm5274, %v5275, %v5266
        %v5277 = vsel %vm5270, %v5273, %v5276
        %v5278 = vsel %vm5267, nan, %v5277
        %v5279 = vand.u32 2147483647, %v4211
        %vm5280 = vcmp.le.f32.partialorder %v5279, 0.7853982
        %vm5281 = vcmp.lt.s32.totalorder %v4211, 0
        %v5282 = vand.u32 %v4211, 2139095040
        %v5283 = vshrl.u32 %v5282, 23
        %v5284 = vsub.s32 %v5283, 127
        %v5285 = vand.u32 2147483647, %v4211
        %v5286 = vand.u32 %v5285, 8388607
        %v5287 = vor.u32 %v5286, 8388608
        %v5288 = vsub.s32 0, %v5287
        %v5289 = vadd.s32 %v5284, 1
        %vm5290 = vcmp.gt.s32.totalorder %v5289, 0
        %v5291 = vsel %vm5290, %v5289, 0
        %v5292 = vshrl.u32 %v5291, 5
        %v5293 = vand.u32 %v5291, 31
        %v5294 = vsub.s32 32, %v5293
        %v5295 = vshrl.u32 683565275, %v5294
        %v5296 = vshll.u32 683565275, %v5293
        %v5297 = vshrl.u32 2475754826, %v5294
        %v5298 = vor.u32 %v5296, %v5297
        %v5299 = vshll.u32 2475754826, %v5293
        %v5300 = vshrl.u32 2131351028, %v5294
        %v5301 = vor.u32 %v5299, %v5300
        %v5302 = vshll.u32 2131351028, %v5293
        %v5303 = vshrl.u32 2102212464, %v5294
        %v5304 = vor.u32 %v5302, %v5303
        %v5305 = vshll.u32 2102212464, %v5293
        %v5306 = vshrl.u32 920167782, %v5294
        %v5307 = vor.u32 %v5305, %v5306
        %v5308 = vshll.u32 920167782, %v5293
        %v5309 = vshrl.u32 1326507024, %v5294
        %v5310 = vor.u32 %v5308, %v5309
        %vm5311 = vcmp.lt.s32.totalorder %v5292, 1
        %vm5312 = vcmp.lt.s32.totalorder %v5292, 2
        %vm5313 = vcmp.lt.s32.totalorder %v5292, 3
        %vm5314 = vcmp.lt.s32.totalorder %v5292, 4
        %v5315 = vsel %vm5311, %v5295, %v5298
        %v5316 = vsel %vm5314, %v5304, 2102212464
        %v5317 = vsel %vm5313, %v5301, %v5316
        %v5318 = vsel %vm5312, %v5315, %v5317
        %v5319 = vsel %vm5311, %v5298, %v5301
        %v5320 = vsel %vm5314, %v5307, 920167782
        %v5321 = vsel %vm5313, %v5304, %v5320
        %v5322 = vsel %vm5312, %v5319, %v5321
        %v5323 = vsel %vm5311, %v5301, %v5304
        %v5324 = vsel %vm5314, %v5310, 1326507024
        %v5325 = vsel %vm5313, %v5307, %v5324
        %v5326 = vsel %vm5312, %v5323, %v5325
        %v5327 = vshll.u32 %v5287, 8
        %v5328 = vmul.u32.u64.compose %v5327, %v5326
        %v5329 = vextract.low.u32 %v5328
        %v5330 = vextract.high.u32 %v5328
        %v5331 = vmul.u32.u64.compose %v5327, %v5322
        %v5332 = vextract.low.u32 %v5331
        %v5333 = vextract.high.u32 %v5331
        %v5334 = vmul.u32 %v5327, %v5318
        %v5335 = vadd.s32 %v5330, %v5332
        %vm5336 = vc.u32 %v5330, %v5332
        %v5337 = vadd.s32 %v5333, 1
        %v5338 = vsel %vm5336, %v5337, %v5333
        %v5339 = vadd.s32 %v5334, %v5338
        %v5340 = vadd.s32 %v5339, 536870912
        %v5341 = vshrl.u32 %v5340, 30
        %v5342 = vshll.u32 %v5341, 30
        %v5343 = vsub.s32 %v5339, %v5342
        %vm5344 = vcmp.lt.s32.totalorder %v5343, 0
        %v5345 = vsub.s32 0, %v5343
        %v5346 = vsel %vm5344, %v5345, %v5343
        %v5347 = vclz %v5346
        %v5348 = vsub.s32 %v5347, 2
        %vm5349 = vcmp.gt.s32.totalorder 0, %v5348
        %v5350 = vsel %vm5349, 0, %v5348
        %v5351 = vsub.s32 32, %v5350
        %v5352 = vshll.u32 %v5343, %v5350
        %v5353 = vshrl.u32 %v5335, %v5351
        %v5354 = vor.u32 %v5352, %v5353
        %v5355 = vsub.s32 4294967266, %v5350
        %v5356 = vadd.s32 %v5355, 127
        %v5357 = vshll.u32 %v5356, 23
        %v5358 = vor.u32 4788187, %v5357
        %v5359 = vand.u32 2147483647, %v5358
        %v5361 = vcvt.s32.f32 %v5354
        %v5362 = vmul.f32 %v5361, %v5359
        %v5363 = vxor.u32 %v5362, 2147483648
        %v5364 = vsel %vm5281, %v5363, %v5362
        %v5365 = vsub.s32 4, %v5341
        %v5366 = vsel %vm5281, %v5365, %v5341
        %v5367 = vsel %vm5280, %v4211, %v5364
        %v5368 = vsel %vm5280, 0, %v5366
        %v5369 = vcosq.f32.pop %v5367
        %v5370 = vsinq.f32.pop %v5367
        %vm5371 = vweird.f32 %v4211
        %v5372 = vadd.s32 %v5368, 3
        %v5373 = vand.u32 %v5372, 3
        %vm5374 = vcmp.lt.s32.totalorder %v5373, 2
        %vm5375 = vcmp.eq.s32.totalorder %v5373, 0
        %v5376 = vxor.u32 %v5370, 2147483648
        %v5377 = vsel %vm5375, %v5369, %v5376
        %vm5378 = vcmp.eq.s32.totalorder %v5373, 2
        %v5379 = vxor.u32 %v5369, 2147483648
        %v5380 = vsel %vm5378, %v5379, %v5370
        %v5381 = vsel %vm5374, %v5377, %v5380
        %v5382 = vsel %vm5371, nan, %v5381
        %v5383 = vand.u32 2147483647, %v4216
        %vm5384 = vcmp.le.f32.partialorder %v5383, 0.7853982
        %vm5385 = vcmp.lt.s32.totalorder %v4216, 0
        %v5386 = vand.u32 %v4216, 2139095040
        %v5387 = vshrl.u32 %v5386, 23
        %v5388 = vsub.s32 %v5387, 127
        %v5389 = vand.u32 2147483647, %v4216
        %v5390 = vand.u32 %v5389, 8388607
        %v5391 = vor.u32 %v5390, 8388608
        %v5392 = vsub.s32 0, %v5391
        %v5393 = vadd.s32 %v5388, 1
        %vm5394 = vcmp.gt.s32.totalorder %v5393, 0
        %v5395 = vsel %vm5394, %v5393, 0
        %v5396 = vshrl.u32 %v5395, 5
        %v5397 = vand.u32 %v5395, 31
        %v5398 = vsub.s32 32, %v5397
        %v5399 = vshrl.u32 683565275, %v5398
        %v5400 = vshll.u32 683565275, %v5397
        %v5401 = vshrl.u32 2475754826, %v5398
        %v5402 = vor.u32 %v5400, %v5401
        %v5403 = vshll.u32 2475754826, %v5397
        %v5404 = vshrl.u32 2131351028, %v5398
        %v5405 = vor.u32 %v5403, %v5404
        %v5406 = vshll.u32 2131351028, %v5397
        %v5407 = vshrl.u32 2102212464, %v5398
        %v5408 = vor.u32 %v5406, %v5407
        %v5409 = vshll.u32 2102212464, %v5397
        %v5410 = vshrl.u32 920167782, %v5398
        %v5411 = vor.u32 %v5409, %v5410
        %v5412 = vshll.u32 920167782, %v5397
        %v5413 = vshrl.u32 1326507024, %v5398
        %v5414 = vor.u32 %v5412, %v5413
        %vm5415 = vcmp.lt.s32.totalorder %v5396, 1
        %vm5416 = vcmp.lt.s32.totalorder %v5396, 2
        %vm5417 = vcmp.lt.s32.totalorder %v5396, 3
        %vm5418 = vcmp.lt.s32.totalorder %v5396, 4
        %v5419 = vsel %vm5415, %v5399, %v5402
        %v5420 = vsel %vm5418, %v5408, 2102212464
        %v5421 = vsel %vm5417, %v5405, %v5420
        %v5422 = vsel %vm5416, %v5419, %v5421
        %v5423 = vsel %vm5415, %v5402, %v5405
        %v5424 = vsel %vm5418, %v5411, 920167782
        %v5425 = vsel %vm5417, %v5408, %v5424
        %v5426 = vsel %vm5416, %v5423, %v5425
        %v5427 = vsel %vm5415, %v5405, %v5408
        %v5428 = vsel %vm5418, %v5414, 1326507024
        %v5429 = vsel %vm5417, %v5411, %v5428
        %v5430 = vsel %vm5416, %v5427, %v5429
        %v5431 = vshll.u32 %v5391, 8
        %v5432 = vmul.u32.u64.compose %v5431, %v5430
        %v5433 = vextract.low.u32 %v5432
        %v5434 = vextract.high.u32 %v5432
        %v5435 = vmul.u32.u64.compose %v5431, %v5426
        %v5436 = vextract.low.u32 %v5435
        %v5437 = vextract.high.u32 %v5435
        %v5438 = vmul.u32 %v5431, %v5422
        %v5439 = vadd.s32 %v5434, %v5436
        %vm5440 = vc.u32 %v5434, %v5436
        %v5441 = vadd.s32 %v5437, 1
        %v5442 = vsel %vm5440, %v5441, %v5437
        %v5443 = vadd.s32 %v5438, %v5442
        %v5444 = vadd.s32 %v5443, 536870912
        %v5445 = vshrl.u32 %v5444, 30
        %v5446 = vshll.u32 %v5445, 30
        %v5447 = vsub.s32 %v5443, %v5446
        %vm5448 = vcmp.lt.s32.totalorder %v5447, 0
        %v5449 = vsub.s32 0, %v5447
        %v5450 = vsel %vm5448, %v5449, %v5447
        %v5451 = vclz %v5450
        %v5452 = vsub.s32 %v5451, 2
        %vm5453 = vcmp.gt.s32.totalorder 0, %v5452
        %v5454 = vsel %vm5453, 0, %v5452
        %v5455 = vsub.s32 32, %v5454
        %v5456 = vshll.u32 %v5447, %v5454
        %v5457 = vshrl.u32 %v5439, %v5455
        %v5458 = vor.u32 %v5456, %v5457
        %v5459 = vsub.s32 4294967266, %v5454
        %v5460 = vadd.s32 %v5459, 127
        %v5461 = vshll.u32 %v5460, 23
        %v5462 = vor.u32 4788187, %v5461
        %v5463 = vand.u32 2147483647, %v5462
        %v5465 = vcvt.s32.f32 %v5458
        %v5466 = vmul.f32 %v5465, %v5463
        %v5467 = vxor.u32 %v5466, 2147483648
        %v5468 = vsel %vm5385, %v5467, %v5466
        %v5469 = vsub.s32 4, %v5445
        %v5470 = vsel %vm5385, %v5469, %v5445
        %v5471 = vsel %vm5384, %v4216, %v5468
        %v5472 = vsel %vm5384, 0, %v5470
        %v5473 = vcosq.f32.pop %v5471
        %v5474 = vsinq.f32.pop %v5471
        %vm5475 = vweird.f32 %v4216
        %v5476 = vadd.s32 %v5472, 3
        %v5477 = vand.u32 %v5476, 3
        %vm5478 = vcmp.lt.s32.totalorder %v5477, 2
        %vm5479 = vcmp.eq.s32.totalorder %v5477, 0
        %v5480 = vxor.u32 %v5474, 2147483648
        %v5481 = vsel %vm5479, %v5473, %v5480
        %vm5482 = vcmp.eq.s32.totalorder %v5477, 2
        %v5483 = vxor.u32 %v5473, 2147483648
        %v5484 = vsel %vm5482, %v5483, %v5474
        %v5485 = vsel %vm5478, %v5481, %v5484
        %v5486 = vsel %vm5475, nan, %v5485
        %v5487 = vand.u32 2147483647, %v4221
        %vm5488 = vcmp.le.f32.partialorder %v5487, 0.7853982
        %vm5489 = vcmp.lt.s32.totalorder %v4221, 0
        %v5490 = vand.u32 %v4221, 2139095040
        %v5491 = vshrl.u32 %v5490, 23
        %v5492 = vsub.s32 %v5491, 127
        %v5493 = vand.u32 2147483647, %v4221
        %v5494 = vand.u32 %v5493, 8388607
        %v5495 = vor.u32 %v5494, 8388608
        %v5496 = vsub.s32 0, %v5495
        %v5497 = vadd.s32 %v5492, 1
        %vm5498 = vcmp.gt.s32.totalorder %v5497, 0
        %v5499 = vsel %vm5498, %v5497, 0
        %v5500 = vshrl.u32 %v5499, 5
        %v5501 = vand.u32 %v5499, 31
        %v5502 = vsub.s32 32, %v5501
        %v5503 = vshrl.u32 683565275, %v5502
        %v5504 = vshll.u32 683565275, %v5501
        %v5505 = vshrl.u32 2475754826, %v5502
        %v5506 = vor.u32 %v5504, %v5505
        %v5507 = vshll.u32 2475754826, %v5501
        %v5508 = vshrl.u32 2131351028, %v5502
        %v5509 = vor.u32 %v5507, %v5508
        %v5510 = vshll.u32 2131351028, %v5501
        %v5511 = vshrl.u32 2102212464, %v5502
        %v5512 = vor.u32 %v5510, %v5511
        %v5513 = vshll.u32 2102212464, %v5501
        %v5514 = vshrl.u32 920167782, %v5502
        %v5515 = vor.u32 %v5513, %v5514
        %v5516 = vshll.u32 920167782, %v5501
        %v5517 = vshrl.u32 1326507024, %v5502
        %v5518 = vor.u32 %v5516, %v5517
        %vm5519 = vcmp.lt.s32.totalorder %v5500, 1
        %vm5520 = vcmp.lt.s32.totalorder %v5500, 2
        %vm5521 = vcmp.lt.s32.totalorder %v5500, 3
        %vm5522 = vcmp.lt.s32.totalorder %v5500, 4
        %v5523 = vsel %vm5519, %v5503, %v5506
        %v5524 = vsel %vm5522, %v5512, 2102212464
        %v5525 = vsel %vm5521, %v5509, %v5524
        %v5526 = vsel %vm5520, %v5523, %v5525
        %v5527 = vsel %vm5519, %v5506, %v5509
        %v5528 = vsel %vm5522, %v5515, 920167782
        %v5529 = vsel %vm5521, %v5512, %v5528
        %v5530 = vsel %vm5520, %v5527, %v5529
        %v5531 = vsel %vm5519, %v5509, %v5512
        %v5532 = vsel %vm5522, %v5518, 1326507024
        %v5533 = vsel %vm5521, %v5515, %v5532
        %v5534 = vsel %vm5520, %v5531, %v5533
        %v5535 = vshll.u32 %v5495, 8
        %v5536 = vmul.u32.u64.compose %v5535, %v5534
        %v5537 = vextract.low.u32 %v5536
        %v5538 = vextract.high.u32 %v5536
        %v5539 = vmul.u32.u64.compose %v5535, %v5530
        %v5540 = vextract.low.u32 %v5539
        %v5541 = vextract.high.u32 %v5539
        %v5542 = vmul.u32 %v5535, %v5526
        %v5543 = vadd.s32 %v5538, %v5540
        %vm5544 = vc.u32 %v5538, %v5540
        %v5545 = vadd.s32 %v5541, 1
        %v5546 = vsel %vm5544, %v5545, %v5541
        %v5547 = vadd.s32 %v5542, %v5546
        %v5548 = vadd.s32 %v5547, 536870912
        %v5549 = vshrl.u32 %v5548, 30
        %v5550 = vshll.u32 %v5549, 30
        %v5551 = vsub.s32 %v5547, %v5550
        %vm5552 = vcmp.lt.s32.totalorder %v5551, 0
        %v5553 = vsub.s32 0, %v5551
        %v5554 = vsel %vm5552, %v5553, %v5551
        %v5555 = vclz %v5554
        %v5556 = vsub.s32 %v5555, 2
        %vm5557 = vcmp.gt.s32.totalorder 0, %v5556
        %v5558 = vsel %vm5557, 0, %v5556
        %v5559 = vsub.s32 32, %v5558
        %v5560 = vshll.u32 %v5551, %v5558
        %v5561 = vshrl.u32 %v5543, %v5559
        %v5562 = vor.u32 %v5560, %v5561
        %v5563 = vsub.s32 4294967266, %v5558
        %v5564 = vadd.s32 %v5563, 127
        %v5565 = vshll.u32 %v5564, 23
        %v5566 = vor.u32 4788187, %v5565
        %v5567 = vand.u32 2147483647, %v5566
        %v5569 = vcvt.s32.f32 %v5562
        %v5570 = vmul.f32 %v5569, %v5567
        %v5571 = vxor.u32 %v5570, 2147483648
        %v5572 = vsel %vm5489, %v5571, %v5570
        %v5573 = vsub.s32 4, %v5549
        %v5574 = vsel %vm5489, %v5573, %v5549
        %v5575 = vsel %vm5488, %v4221, %v5572
        %v5576 = vsel %vm5488, 0, %v5574
        %v5577 = vcosq.f32.pop %v5575
        %v5578 = vsinq.f32.pop %v5575
        %vm5579 = vweird.f32 %v4221
        %v5580 = vadd.s32 %v5576, 3
        %v5581 = vand.u32 %v5580, 3
        %vm5582 = vcmp.lt.s32.totalorder %v5581, 2
        %vm5583 = vcmp.eq.s32.totalorder %v5581, 0
        %v5584 = vxor.u32 %v5578, 2147483648
        %v5585 = vsel %vm5583, %v5577, %v5584
        %vm5586 = vcmp.eq.s32.totalorder %v5581, 2
        %v5587 = vxor.u32 %v5577, 2147483648
        %v5588 = vsel %vm5586, %v5587, %v5578
        %v5589 = vsel %vm5582, %v5585, %v5588
        %v5590 = vsel %vm5579, nan, %v5589
        %v5591 = vand.u32 2147483647, %v4226
        %vm5592 = vcmp.le.f32.partialorder %v5591, 0.7853982
        %vm5593 = vcmp.lt.s32.totalorder %v4226, 0
        %v5594 = vand.u32 %v4226, 2139095040
        %v5595 = vshrl.u32 %v5594, 23
        %v5596 = vsub.s32 %v5595, 127
        %v5597 = vand.u32 2147483647, %v4226
        %v5598 = vand.u32 %v5597, 8388607
        %v5599 = vor.u32 %v5598, 8388608
        %v5600 = vsub.s32 0, %v5599
        %v5601 = vadd.s32 %v5596, 1
        %vm5602 = vcmp.gt.s32.totalorder %v5601, 0
        %v5603 = vsel %vm5602, %v5601, 0
        %v5604 = vshrl.u32 %v5603, 5
        %v5605 = vand.u32 %v5603, 31
        %v5606 = vsub.s32 32, %v5605
        %v5607 = vshrl.u32 683565275, %v5606
        %v5608 = vshll.u32 683565275, %v5605
        %v5609 = vshrl.u32 2475754826, %v5606
        %v5610 = vor.u32 %v5608, %v5609
        %v5611 = vshll.u32 2475754826, %v5605
        %v5612 = vshrl.u32 2131351028, %v5606
        %v5613 = vor.u32 %v5611, %v5612
        %v5614 = vshll.u32 2131351028, %v5605
        %v5615 = vshrl.u32 2102212464, %v5606
        %v5616 = vor.u32 %v5614, %v5615
        %v5617 = vshll.u32 2102212464, %v5605
        %v5618 = vshrl.u32 920167782, %v5606
        %v5619 = vor.u32 %v5617, %v5618
        %v5620 = vshll.u32 920167782, %v5605
        %v5621 = vshrl.u32 1326507024, %v5606
        %v5622 = vor.u32 %v5620, %v5621
        %vm5623 = vcmp.lt.s32.totalorder %v5604, 1
        %vm5624 = vcmp.lt.s32.totalorder %v5604, 2
        %vm5625 = vcmp.lt.s32.totalorder %v5604, 3
        %vm5626 = vcmp.lt.s32.totalorder %v5604, 4
        %v5627 = vsel %vm5623, %v5607, %v5610
        %v5628 = vsel %vm5626, %v5616, 2102212464
        %v5629 = vsel %vm5625, %v5613, %v5628
        %v5630 = vsel %vm5624, %v5627, %v5629
        %v5631 = vsel %vm5623, %v5610, %v5613
        %v5632 = vsel %vm5626, %v5619, 920167782
        %v5633 = vsel %vm5625, %v5616, %v5632
        %v5634 = vsel %vm5624, %v5631, %v5633
        %v5635 = vsel %vm5623, %v5613, %v5616
        %v5636 = vsel %vm5626, %v5622, 1326507024
        %v5637 = vsel %vm5625, %v5619, %v5636
        %v5638 = vsel %vm5624, %v5635, %v5637
        %v5639 = vshll.u32 %v5599, 8
        %v5640 = vmul.u32.u64.compose %v5639, %v5638
        %v5641 = vextract.low.u32 %v5640
        %v5642 = vextract.high.u32 %v5640
        %v5643 = vmul.u32.u64.compose %v5639, %v5634
        %v5644 = vextract.low.u32 %v5643
        %v5645 = vextract.high.u32 %v5643
        %v5646 = vmul.u32 %v5639, %v5630
        %v5647 = vadd.s32 %v5642, %v5644
        %vm5648 = vc.u32 %v5642, %v5644
        %v5649 = vadd.s32 %v5645, 1
        %v5650 = vsel %vm5648, %v5649, %v5645
        %v5651 = vadd.s32 %v5646, %v5650
        %v5652 = vadd.s32 %v5651, 536870912
        %v5653 = vshrl.u32 %v5652, 30
        %v5654 = vshll.u32 %v5653, 30
        %v5655 = vsub.s32 %v5651, %v5654
        %vm5656 = vcmp.lt.s32.totalorder %v5655, 0
        %v5657 = vsub.s32 0, %v5655
        %v5658 = vsel %vm5656, %v5657, %v5655
        %v5659 = vclz %v5658
        %v5660 = vsub.s32 %v5659, 2
        %vm5661 = vcmp.gt.s32.totalorder 0, %v5660
        %v5662 = vsel %vm5661, 0, %v5660
        %v5663 = vsub.s32 32, %v5662
        %v5664 = vshll.u32 %v5655, %v5662
        %v5665 = vshrl.u32 %v5647, %v5663
        %v5666 = vor.u32 %v5664, %v5665
        %v5667 = vsub.s32 4294967266, %v5662
        %v5668 = vadd.s32 %v5667, 127
        %v5669 = vshll.u32 %v5668, 23
        %v5670 = vor.u32 4788187, %v5669
        %v5671 = vand.u32 2147483647, %v5670
        %v5673 = vcvt.s32.f32 %v5666
        %v5674 = vmul.f32 %v5673, %v5671
        %v5675 = vxor.u32 %v5674, 2147483648
        %v5676 = vsel %vm5593, %v5675, %v5674
        %v5677 = vsub.s32 4, %v5653
        %v5678 = vsel %vm5593, %v5677, %v5653
        %v5679 = vsel %vm5592, %v4226, %v5676
        %v5680 = vsel %vm5592, 0, %v5678
        %v5681 = vcosq.f32.pop %v5679
        %v5682 = vsinq.f32.pop %v5679
        %vm5683 = vweird.f32 %v4226
        %v5684 = vadd.s32 %v5680, 3
        %v5685 = vand.u32 %v5684, 3
        %vm5686 = vcmp.lt.s32.totalorder %v5685, 2
        %vm5687 = vcmp.eq.s32.totalorder %v5685, 0
        %v5688 = vxor.u32 %v5682, 2147483648
        %v5689 = vsel %vm5687, %v5681, %v5688
        %vm5690 = vcmp.eq.s32.totalorder %v5685, 2
        %v5691 = vxor.u32 %v5681, 2147483648
        %v5692 = vsel %vm5690, %v5691, %v5682
        %v5693 = vsel %vm5686, %v5689, %v5692
        %v5694 = vsel %vm5683, nan, %v5693
        %v5695 = vand.u32 2147483647, %v4231
        %vm5696 = vcmp.le.f32.partialorder %v5695, 0.7853982
        %vm5697 = vcmp.lt.s32.totalorder %v4231, 0
        %v5698 = vand.u32 %v4231, 2139095040
        %v5699 = vshrl.u32 %v5698, 23
        %v5700 = vsub.s32 %v5699, 127
        %v5701 = vand.u32 2147483647, %v4231
        %v5702 = vand.u32 %v5701, 8388607
        %v5703 = vor.u32 %v5702, 8388608
        %v5704 = vsub.s32 0, %v5703
        %v5705 = vadd.s32 %v5700, 1
        %vm5706 = vcmp.gt.s32.totalorder %v5705, 0
        %v5707 = vsel %vm5706, %v5705, 0
        %v5708 = vshrl.u32 %v5707, 5
        %v5709 = vand.u32 %v5707, 31
        %v5710 = vsub.s32 32, %v5709
        %v5711 = vshrl.u32 683565275, %v5710
        %v5712 = vshll.u32 683565275, %v5709
        %v5713 = vshrl.u32 2475754826, %v5710
        %v5714 = vor.u32 %v5712, %v5713
        %v5715 = vshll.u32 2475754826, %v5709
        %v5716 = vshrl.u32 2131351028, %v5710
        %v5717 = vor.u32 %v5715, %v5716
        %v5718 = vshll.u32 2131351028, %v5709
        %v5719 = vshrl.u32 2102212464, %v5710
        %v5720 = vor.u32 %v5718, %v5719
        %v5721 = vshll.u32 2102212464, %v5709
        %v5722 = vshrl.u32 920167782, %v5710
        %v5723 = vor.u32 %v5721, %v5722
        %v5724 = vshll.u32 920167782, %v5709
        %v5725 = vshrl.u32 1326507024, %v5710
        %v5726 = vor.u32 %v5724, %v5725
        %vm5727 = vcmp.lt.s32.totalorder %v5708, 1
        %vm5728 = vcmp.lt.s32.totalorder %v5708, 2
        %vm5729 = vcmp.lt.s32.totalorder %v5708, 3
        %vm5730 = vcmp.lt.s32.totalorder %v5708, 4
        %v5731 = vsel %vm5727, %v5711, %v5714
        %v5732 = vsel %vm5730, %v5720, 2102212464
        %v5733 = vsel %vm5729, %v5717, %v5732
        %v5734 = vsel %vm5728, %v5731, %v5733
        %v5735 = vsel %vm5727, %v5714, %v5717
        %v5736 = vsel %vm5730, %v5723, 920167782
        %v5737 = vsel %vm5729, %v5720, %v5736
        %v5738 = vsel %vm5728, %v5735, %v5737
        %v5739 = vsel %vm5727, %v5717, %v5720
        %v5740 = vsel %vm5730, %v5726, 1326507024
        %v5741 = vsel %vm5729, %v5723, %v5740
        %v5742 = vsel %vm5728, %v5739, %v5741
        %v5743 = vshll.u32 %v5703, 8
        %v5744 = vmul.u32.u64.compose %v5743, %v5742
        %v5745 = vextract.low.u32 %v5744
        %v5746 = vextract.high.u32 %v5744
        %v5747 = vmul.u32.u64.compose %v5743, %v5738
        %v5748 = vextract.low.u32 %v5747
        %v5749 = vextract.high.u32 %v5747
        %v5750 = vmul.u32 %v5743, %v5734
        %v5751 = vadd.s32 %v5746, %v5748
        %vm5752 = vc.u32 %v5746, %v5748
        %v5753 = vadd.s32 %v5749, 1
        %v5754 = vsel %vm5752, %v5753, %v5749
        %v5755 = vadd.s32 %v5750, %v5754
        %v5756 = vadd.s32 %v5755, 536870912
        %v5757 = vshrl.u32 %v5756, 30
        %v5758 = vshll.u32 %v5757, 30
        %v5759 = vsub.s32 %v5755, %v5758
        %vm5760 = vcmp.lt.s32.totalorder %v5759, 0
        %v5761 = vsub.s32 0, %v5759
        %v5762 = vsel %vm5760, %v5761, %v5759
        %v5763 = vclz %v5762
        %v5764 = vsub.s32 %v5763, 2
        %vm5765 = vcmp.gt.s32.totalorder 0, %v5764
        %v5766 = vsel %vm5765, 0, %v5764
        %v5767 = vsub.s32 32, %v5766
        %v5768 = vshll.u32 %v5759, %v5766
        %v5769 = vshrl.u32 %v5751, %v5767
        %v5770 = vor.u32 %v5768, %v5769
        %v5771 = vsub.s32 4294967266, %v5766
        %v5772 = vadd.s32 %v5771, 127
        %v5773 = vshll.u32 %v5772, 23
        %v5774 = vor.u32 4788187, %v5773
        %v5775 = vand.u32 2147483647, %v5774
        %v5777 = vcvt.s32.f32 %v5770
        %v5778 = vmul.f32 %v5777, %v5775
        %v5779 = vxor.u32 %v5778, 2147483648
        %v5780 = vsel %vm5697, %v5779, %v5778
        %v5781 = vsub.s32 4, %v5757
        %v5782 = vsel %vm5697, %v5781, %v5757
        %v5783 = vsel %vm5696, %v4231, %v5780
        %v5784 = vsel %vm5696, 0, %v5782
        %v5785 = vcosq.f32.pop %v5783
        %v5786 = vsinq.f32.pop %v5783
        %vm5787 = vweird.f32 %v4231
        %v5788 = vadd.s32 %v5784, 3
        %v5789 = vand.u32 %v5788, 3
        %vm5790 = vcmp.lt.s32.totalorder %v5789, 2
        %vm5791 = vcmp.eq.s32.totalorder %v5789, 0
        %v5792 = vxor.u32 %v5786, 2147483648
        %v5793 = vsel %vm5791, %v5785, %v5792
        %vm5794 = vcmp.eq.s32.totalorder %v5789, 2
        %v5795 = vxor.u32 %v5785, 2147483648
        %v5796 = vsel %vm5794, %v5795, %v5786
        %v5797 = vsel %vm5790, %v5793, %v5796
        %v5798 = vsel %vm5787, nan, %v5797
        %v5799 = vand.u32 2147483647, %v4236
        %vm5800 = vcmp.le.f32.partialorder %v5799, 0.7853982
        %vm5801 = vcmp.lt.s32.totalorder %v4236, 0
        %v5802 = vand.u32 %v4236, 2139095040
        %v5803 = vshrl.u32 %v5802, 23
        %v5804 = vsub.s32 %v5803, 127
        %v5805 = vand.u32 2147483647, %v4236
        %v5806 = vand.u32 %v5805, 8388607
        %v5807 = vor.u32 %v5806, 8388608
        %v5808 = vsub.s32 0, %v5807
        %v5809 = vadd.s32 %v5804, 1
        %vm5810 = vcmp.gt.s32.totalorder %v5809, 0
        %v5811 = vsel %vm5810, %v5809, 0
        %v5812 = vshrl.u32 %v5811, 5
        %v5813 = vand.u32 %v5811, 31
        %v5814 = vsub.s32 32, %v5813
        %v5815 = vshrl.u32 683565275, %v5814
        %v5816 = vshll.u32 683565275, %v5813
        %v5817 = vshrl.u32 2475754826, %v5814
        %v5818 = vor.u32 %v5816, %v5817
        %v5819 = vshll.u32 2475754826, %v5813
        %v5820 = vshrl.u32 2131351028, %v5814
        %v5821 = vor.u32 %v5819, %v5820
        %v5822 = vshll.u32 2131351028, %v5813
        %v5823 = vshrl.u32 2102212464, %v5814
        %v5824 = vor.u32 %v5822, %v5823
        %v5825 = vshll.u32 2102212464, %v5813
        %v5826 = vshrl.u32 920167782, %v5814
        %v5827 = vor.u32 %v5825, %v5826
        %v5828 = vshll.u32 920167782, %v5813
        %v5829 = vshrl.u32 1326507024, %v5814
        %v5830 = vor.u32 %v5828, %v5829
        %vm5831 = vcmp.lt.s32.totalorder %v5812, 1
        %vm5832 = vcmp.lt.s32.totalorder %v5812, 2
        %vm5833 = vcmp.lt.s32.totalorder %v5812, 3
        %vm5834 = vcmp.lt.s32.totalorder %v5812, 4
        %v5835 = vsel %vm5831, %v5815, %v5818
        %v5836 = vsel %vm5834, %v5824, 2102212464
        %v5837 = vsel %vm5833, %v5821, %v5836
        %v5838 = vsel %vm5832, %v5835, %v5837
        %v5839 = vsel %vm5831, %v5818, %v5821
        %v5840 = vsel %vm5834, %v5827, 920167782
        %v5841 = vsel %vm5833, %v5824, %v5840
        %v5842 = vsel %vm5832, %v5839, %v5841
        %v5843 = vsel %vm5831, %v5821, %v5824
        %v5844 = vsel %vm5834, %v5830, 1326507024
        %v5845 = vsel %vm5833, %v5827, %v5844
        %v5846 = vsel %vm5832, %v5843, %v5845
        %v5847 = vshll.u32 %v5807, 8
        %v5848 = vmul.u32.u64.compose %v5847, %v5846
        %v5849 = vextract.low.u32 %v5848
        %v5850 = vextract.high.u32 %v5848
        %v5851 = vmul.u32.u64.compose %v5847, %v5842
        %v5852 = vextract.low.u32 %v5851
        %v5853 = vextract.high.u32 %v5851
        %v5854 = vmul.u32 %v5847, %v5838
        %v5855 = vadd.s32 %v5850, %v5852
        %vm5856 = vc.u32 %v5850, %v5852
        %v5857 = vadd.s32 %v5853, 1
        %v5858 = vsel %vm5856, %v5857, %v5853
        %v5859 = vadd.s32 %v5854, %v5858
        %v5860 = vadd.s32 %v5859, 536870912
        %v5861 = vshrl.u32 %v5860, 30
        %v5862 = vshll.u32 %v5861, 30
        %v5863 = vsub.s32 %v5859, %v5862
        %vm5864 = vcmp.lt.s32.totalorder %v5863, 0
        %v5865 = vsub.s32 0, %v5863
        %v5866 = vsel %vm5864, %v5865, %v5863
        %v5867 = vclz %v5866
        %v5868 = vsub.s32 %v5867, 2
        %vm5869 = vcmp.gt.s32.totalorder 0, %v5868
        %v5870 = vsel %vm5869, 0, %v5868
        %v5871 = vsub.s32 32, %v5870
        %v5872 = vshll.u32 %v5863, %v5870
        %v5873 = vshrl.u32 %v5855, %v5871
        %v5874 = vor.u32 %v5872, %v5873
        %v5875 = vsub.s32 4294967266, %v5870
        %v5876 = vadd.s32 %v5875, 127
        %v5877 = vshll.u32 %v5876, 23
        %v5878 = vor.u32 4788187, %v5877
        %v5879 = vand.u32 2147483647, %v5878
        %v5881 = vcvt.s32.f32 %v5874
        %v5882 = vmul.f32 %v5881, %v5879
        %v5883 = vxor.u32 %v5882, 2147483648
        %v5884 = vsel %vm5801, %v5883, %v5882
        %v5885 = vsub.s32 4, %v5861
        %v5886 = vsel %vm5801, %v5885, %v5861
        %v5887 = vsel %vm5800, %v4236, %v5884
        %v5888 = vsel %vm5800, 0, %v5886
        %v5889 = vcosq.f32.pop %v5887
        %v5890 = vsinq.f32.pop %v5887
        %vm5891 = vweird.f32 %v4236
        %v5892 = vadd.s32 %v5888, 3
        %v5893 = vand.u32 %v5892, 3
        %vm5894 = vcmp.lt.s32.totalorder %v5893, 2
        %vm5895 = vcmp.eq.s32.totalorder %v5893, 0
        %v5896 = vxor.u32 %v5890, 2147483648
        %v5897 = vsel %vm5895, %v5889, %v5896
        %vm5898 = vcmp.eq.s32.totalorder %v5893, 2
        %v5899 = vxor.u32 %v5889, 2147483648
        %v5900 = vsel %vm5898, %v5899, %v5890
        %v5901 = vsel %vm5894, %v5897, %v5900
        %v5902 = vsel %vm5891, nan, %v5901
        %v5903 = vld [vmem:[%s7] sm:$0xff]
        %v5904 = vld [vmem:[%s7 + $0x8] sm:$0xff]
        %v5905 = vld [vmem:[%s7 + $0x10] sm:$0xff]
        %v5906 = vld [vmem:[%s7 + $0x18] sm:$0xff]
        %v5907 = vld [vmem:[%s7 + $0x20] sm:$0xff]
        %v5908 = vld [vmem:[%s7 + $0x28] sm:$0xff]
        %v5909 = vld [vmem:[%s7 + $0x30] sm:$0xff]
        %v5910 = vld [vmem:[%s7 + $0x38] sm:$0xff]
        %v5911 = vld [vmem:[%s7 + $0x40] sm:$0xff]
        %v5912 = vld [vmem:[%s7 + $0x48] sm:$0xff]
        %v5913 = vld [vmem:[%s7 + $0x50] sm:$0xff]
        %v5914 = vld [vmem:[%s7 + $0x58] sm:$0xff]
        %v5915 = vld [vmem:[%s7 + $0x60] sm:$0xff]
        %v5916 = vld [vmem:[%s7 + $0x68] sm:$0xff]
        %v5917 = vld [vmem:[%s7 + $0x70] sm:$0xff]
        %v5918 = vld [vmem:[%s7 + $0x78] sm:$0xff]
        %v5919 = vld [vmem:[%s8] sm:$0x1]
        %v5921 = vlaneseq
        %v5922 = vshrl.u32 %v5921, 7
        %v5923 = vsub.s32 0, %v5922
        %v5924 = vrot.slane %v5919, %v5923
        %5926 = vmatprep.subr.mxu0 0.0
        %5927 = vmatpush1.msra.mxu0 %v5918
        %5928 = vmatprep.subr.mxu0 0.0
        %5929 = vmatpush1.msra.mxu0 %v5917
        %5930 = vmatprep.subr.mxu0 0.0
        %5931 = vmatpush1.msra.mxu0 %v5916
        %5932 = vmatprep.subr.mxu0 0.0
        %5933 = vmatpush1.msra.mxu0 %v5915
        %5934 = vmatprep.subr.mxu0 0.0
        %5935 = vmatpush1.msra.mxu0 %v5914
        %5936 = vmatprep.subr.mxu0 0.0
        %5937 = vmatpush1.msra.mxu0 %v5913
        %5938 = vmatprep.subr.mxu0 0.0
        %5939 = vmatpush1.msra.mxu0 %v5912
        %5940 = vmatprep.subr.mxu0 0.0
        %5941 = vmatpush1.msra.mxu0 %v5911
        %5942 = vmatprep.subr.mxu0 0.0
        %5943 = vmatpush1.msra.mxu0 %v5910
        %5944 = vmatprep.subr.mxu0 0.0
        %5945 = vmatpush1.msra.mxu0 %v5909
        %5946 = vmatprep.subr.mxu0 0.0
        %5947 = vmatpush1.msra.mxu0 %v5908
        %5948 = vmatprep.subr.mxu0 0.0
        %5949 = vmatpush1.msra.mxu0 %v5907
        %5950 = vmatprep.subr.mxu0 0.0
        %5951 = vmatpush1.msra.mxu0 %v5906
        %5952 = vmatprep.subr.mxu0 0.0
        %5953 = vmatpush1.msra.mxu0 %v5905
        %5954 = vmatprep.subr.mxu0 0.0
        %5955 = vmatpush1.msra.mxu0 %v5904
        %5956 = vmatprep.subr.mxu0 0.0
        %5957 = vmatpush1.msra.mxu0 %v5903
        %5958 = vmatprep.subr.mxu0 0.0
        %5959 = vmatpush2.msra.mxu0 0.0
        %5960 = vmatprep.subr.mxu0 0.0
        %5961 = vmatpush2.msra.mxu0 0.0
        %5962 = vmatprep.subr.mxu0 0.0
        %5963 = vmatpush2.msra.mxu0 0.0
        %5964 = vmatprep.subr.mxu0 0.0
        %5965 = vmatpush2.msra.mxu0 0.0
        %5966 = vmatprep.subr.mxu0 0.0
        %5967 = vmatpush2.msra.mxu0 0.0
        %5968 = vmatprep.subr.mxu0 0.0
        %5969 = vmatpush2.msra.mxu0 0.0
        %5970 = vmatprep.subr.mxu0 0.0
        %5971 = vmatpush2.msra.mxu0 0.0
        %5972 = vmatprep.subr.mxu0 0.0
        %5973 = vmatpush2.msra.mxu0 0.0
        %5974 = vmatprep.subr.mxu0 0.0
        %5975 = vmatpush2.msra.mxu0 0.0
        %5976 = vmatprep.subr.mxu0 0.0
        %5977 = vmatpush2.msra.mxu0 0.0
        %5978 = vmatprep.subr.mxu0 0.0
        %5979 = vmatpush2.msra.mxu0 0.0
        %5980 = vmatprep.subr.mxu0 0.0
        %5981 = vmatpush2.msra.mxu0 0.0
        %5982 = vmatprep.subr.mxu0 0.0
        %5983 = vmatpush2.msra.mxu0 0.0
        %5984 = vmatprep.subr.mxu0 0.0
        %5985 = vmatpush2.msra.mxu0 0.0
        %5986 = vmatprep.subr.mxu0 0.0
        %5987 = vmatpush2.msra.mxu0 0.0
        %5988 = vmatprep.subr.mxu0 0.0
        %5989 = vmatpush2.msra.mxu0 0.0
        %5990 = vmatprep.mubr.f32.mxu0 0.0
        %5991 = vmatmul.mubr.f32.gmra.mxu0 %v4342
        %v5992 = vpop.f32.mrf.mxu0
        %v5993 = vadd.f32 %v5924, %v5992
        %v5994 = vpop.f32.mrf.mxu0
        %5995 = vmatprep.mubr.f32.mxu0 0.0
        %5996 = vmatmul.mubr.f32.gmra.mxu0 %v4446
        %v5997 = vpop.f32.mrf.mxu0
        %v5998 = vadd.f32 %v5924, %v5997
        %v5999 = vpop.f32.mrf.mxu0
        %6000 = vmatprep.mubr.f32.mxu0 0.0
        %6001 = vmatmul.mubr.f32.gmra.mxu0 %v4550
        %v6002 = vpop.f32.mrf.mxu0
        %v6003 = vadd.f32 %v5924, %v6002
        %v6004 = vpop.f32.mrf.mxu0
        %6005 = vmatprep.mubr.f32.mxu0 0.0
        %6006 = vmatmul.mubr.f32.gmra.mxu0 %v4654
        %v6007 = vpop.f32.mrf.mxu0
        %v6008 = vadd.f32 %v5924, %v6007
        %v6009 = vpop.f32.mrf.mxu0
        %6010 = vmatprep.mubr.f32.mxu0 0.0
        %6011 = vmatmul.mubr.f32.gmra.mxu0 %v4758
        %v6012 = vpop.f32.mrf.mxu0
        %v6013 = vadd.f32 %v5924, %v6012
        %v6014 = vpop.f32.mrf.mxu0
        %6015 = vmatprep.mubr.f32.mxu0 0.0
        %6016 = vmatmul.mubr.f32.gmra.mxu0 %v4862
        %v6017 = vpop.f32.mrf.mxu0
        %v6018 = vadd.f32 %v5924, %v6017
        %v6019 = vpop.f32.mrf.mxu0
        %6020 = vmatprep.mubr.f32.mxu0 0.0
        %6021 = vmatmul.mubr.f32.gmra.mxu0 %v4966
        %v6022 = vpop.f32.mrf.mxu0
        %v6023 = vadd.f32 %v5924, %v6022
        %v6024 = vpop.f32.mrf.mxu0
        %6025 = vmatprep.mubr.f32.mxu0 0.0
        %6026 = vmatmul.mubr.f32.gmra.mxu0 %v5070
        %v6027 = vpop.f32.mrf.mxu0
        %v6028 = vadd.f32 %v5924, %v6027
        %v6029 = vpop.f32.mrf.mxu0
        %6030 = vmatprep.mubr.f32.mxu0 0.0
        %6031 = vmatmul.mubr.f32.gmra.mxu0 %v5174
        %v6032 = vpop.f32.mrf.mxu0
        %v6033 = vadd.f32 %v5924, %v6032
        %v6034 = vpop.f32.mrf.mxu0
        %6035 = vmatprep.mubr.f32.mxu0 0.0
        %6036 = vmatmul.mubr.f32.gmra.mxu0 %v5278
        %v6037 = vpop.f32.mrf.mxu0
        %v6038 = vadd.f32 %v5924, %v6037
        %v6039 = vpop.f32.mrf.mxu0
        %6040 = vmatprep.mubr.f32.mxu0 0.0
        %6041 = vmatmul.mubr.f32.gmra.mxu0 %v5382
        %v6042 = vpop.f32.mrf.mxu0
        %v6043 = vadd.f32 %v5924, %v6042
        %v6044 = vpop.f32.mrf.mxu0
        %6045 = vmatprep.mubr.f32.mxu0 0.0
        %6046 = vmatmul.mubr.f32.gmra.mxu0 %v5486
        %v6047 = vpop.f32.mrf.mxu0
        %v6048 = vadd.f32 %v5924, %v6047
        %v6049 = vpop.f32.mrf.mxu0
        %6050 = vmatprep.mubr.f32.mxu0 0.0
        %6051 = vmatmul.mubr.f32.gmra.mxu0 %v5590
        %v6052 = vpop.f32.mrf.mxu0
        %v6053 = vadd.f32 %v5924, %v6052
        %v6054 = vpop.f32.mrf.mxu0
        %6055 = vmatprep.mubr.f32.mxu0 0.0
        %6056 = vmatmul.mubr.f32.gmra.mxu0 %v5694
        %v6057 = vpop.f32.mrf.mxu0
        %v6058 = vadd.f32 %v5924, %v6057
        %v6059 = vpop.f32.mrf.mxu0
        %6060 = vmatprep.mubr.f32.mxu0 0.0
        %6061 = vmatmul.mubr.f32.gmra.mxu0 %v5798
        %v6062 = vpop.f32.mrf.mxu0
        %v6063 = vadd.f32 %v5924, %v6062
        %v6064 = vpop.f32.mrf.mxu0
        %6065 = vmatprep.mubr.f32.mxu0 0.0
        %6066 = vmatmul.mubr.f32.gmra.mxu0 %v5902
        %v6067 = vpop.f32.mrf.mxu0
        %v6068 = vadd.f32 %v5924, %v6067
        %v6069 = vpop.f32.mrf.mxu0
        %6070 = vdwg.mxu0
        %6071 = vst [vmem:[%s326] sm:$0xff] %v5993
        %6072 = vst [vmem:[%s326 + $0x8] sm:$0xff] %v5998
        %6073 = vst [vmem:[%s326 + $0x10] sm:$0xff] %v6003
        %6074 = vst [vmem:[%s326 + $0x18] sm:$0xff] %v6008
        %6075 = vst [vmem:[%s326 + $0x20] sm:$0xff] %v6013
        %6076 = vst [vmem:[%s326 + $0x28] sm:$0xff] %v6018
        %6077 = vst [vmem:[%s326 + $0x30] sm:$0xff] %v6023
        %6078 = vst [vmem:[%s326 + $0x38] sm:$0xff] %v6028
        %6079 = vst [vmem:[%s326 + $0x40] sm:$0xff] %v6033
        %6080 = vst [vmem:[%s326 + $0x48] sm:$0xff] %v6038
        %6081 = vst [vmem:[%s326 + $0x50] sm:$0xff] %v6043
        %6082 = vst [vmem:[%s326 + $0x58] sm:$0xff] %v6048
        %6083 = vst [vmem:[%s326 + $0x60] sm:$0xff] %v6053
        %6084 = vst [vmem:[%s326 + $0x68] sm:$0xff] %v6058
        %6085 = vst [vmem:[%s326 + $0x70] sm:$0xff] %v6063
        %6086 = vst [vmem:[%s326 + $0x78] sm:$0xff] %v6068
        %s6087 = sand.u32 %s225, 1
        %s6088 = scalar_lea.sflag [#allocation3], %s6087
        %s6089 = sand.u32 %s225, 1
        %s6090 = smul.addr %s6089, 128
        %s6091 = scalar_lea.vmem [#allocation2], %s6090
        // Predicated region
        $region57: #{tpu_custom_call.1} parent=55 // pred_check
          %p6092 = pneg %p235
        $region58: #{tpu_custom_call.1} parent=55 // pred_check_branch
          %6094 = sbr.rel (%p6092) target = $region60
        $region59: #{tpu_custom_call.1} parent=55 // pred_region
          %s6095 = smul.u32 16, %s23
          %s6097 = ssub.s32 2048, 2048
          %6098 = vsyncadd %s6088, %s6097
          %s6099 = smul.addr %s6095, 128
          %s6100 = scalar_lea.hbm %s9, %s6099
          %s6101 = sshll.u32 %s6091, 4
          %s6102 = int_to_ptr.vmem [resolvable:$true] %s6101
          %6107 = dma.vmem_to_hbm [thread:$0]  %s6102, 2048, %s6100, %s6088, 128, 128, 8
        $region60: #{tpu_custom_call.1} parent=55 // pred_fallthru
          _
      $region56: #{tpu_custom_call.1} parent=5 // pred_fallthru
        _
      %p6108 = scmp.le.s32.totalorder 2, %s18
      // Predicated region
      $region61: #{tpu_custom_call.1} parent=5 // pred_check
        %p6109 = pneg %p6108
      $region62: #{tpu_custom_call.1} parent=5 // pred_check_branch
        %6111 = sbr.rel (%p6109) target = $region64
      $region63: #{tpu_custom_call.1} parent=5 // pred_region
        %s6112 = ssub.s32 %s18, 2
        // Predicated region
        $region65: #{tpu_custom_call.1} parent=63 // pred_check
          %p6113 = pneg %p241
        $region66: #{tpu_custom_call.1} parent=63 // pred_check_branch
          %6115 = sbr.rel (%p6113) target = $region68
        $region67: #{tpu_custom_call.1} parent=63 // pred_region
          %s6116 = sand.u32 %s226, 1
          %s6117 = scalar_lea.sflag [#allocation3], %s6116
          %s6118 = sand.u32 %s226, 1
          %s6119 = smul.addr %s6118, 128
          %s6120 = scalar_lea.vmem [#allocation2], %s6119
          %6121 = dma.done %s6117, 2048
        $region68: #{tpu_custom_call.1} parent=63 // pred_fallthru
          _
      $region64: #{tpu_custom_call.1} parent=5 // pred_fallthru
        _
    $region6: #{tpu_custom_call.1} parent=1 // loop_footer
      %s22 = sadd.s32 1, %s18
    $region7: #{tpu_custom_call.1} parent=1 // loop_footer_branch
      %17 = sbr.rel target = $region3
    $region8: #{tpu_custom_call.1} parent=1 // loop_exit
      _
    %6122 = vsyncpa [#allocation3], 1
    %s6123 = scalar_lea.sflag [#allocation3], 1
    %6124 = vsyncpa %s6123, 1

</llo_original>
